<compile_context>
chip_gen: v6e
topology: v6e:2x2x1
jax: 0.10.0
libtpu: 0.0.40
codegen_flags: <defaults>
</compile_context>

<pallas_src>
import functools
from typing import NamedTuple

import jax
import jax.numpy as jnp
from jax.experimental import pallas as pl
from jax.experimental.pallas import tpu as pltpu

BN_EPS = 1e-5
FOLD_M_THRESHOLD = 32      # loop images inside one grid step when rows <= this


def _round_up(x, m):
    return ((x + m - 1) // m) * m


def _vmem_cap():
    """Per-generation usable VMEM cap (leave headroom below physical capacity)."""
    try:
        total = int(pltpu.get_tpu_info().vmem_capacity_bytes)
    except Exception:
        total = 64 << 20                      # conservative: v7x per-TC VMEM
    return max((total * 3) // 4, 32 << 20)


class Geo(NamedTuple):
    """P-layout geometry: data for spatial (r, c) lives at flat row
    lead + (r+1)*Wp + (c+1); every other row is zero."""
    H: int
    W: int
    Hp: int
    Wp: int
    lead: int
    Mp: int


def _p_geo(H, W):
    Wp = _round_up(W + 2, 8)                  # width-halo row, sublane aligned
    Hp = H + 2
    lead = (-(Wp + 1)) % 8                    # makes the bulk output store aligned
    Mp = _round_up(lead + Hp * Wp + 2, 8)     # +2: worst-case halo-column tap read
    return Geo(H, W, Hp, Wp, lead, Mp)


def build_p_layout(x_nhwc):
    """(N, H, W, C) -> P-layout (N, Mp, C) bf16 + geometry."""
    N, H, W, C = x_nhwc.shape
    g = _p_geo(H, W)
    xp = jnp.pad(x_nhwc, ((0, 0), (1, 1), (1, g.Wp - W - 1), (0, 0)))
    flat = xp.reshape(N, g.Hp * g.Wp, C)
    flat = jnp.pad(flat, ((0, 0), (g.lead, g.Mp - g.lead - g.Hp * g.Wp), (0, 0)))
    return flat.astype(jnp.bfloat16), g


# ----------------------------------------------------------------------------
# Pallas kernels
# ----------------------------------------------------------------------------
def _conv_kernel(x_ref, w_ref, s_ref, b_ref, *rest, taps, cin, m_rows,
                 out_offset, relu, mode, emit):
    """Fused 3x3 conv (per-tap accumulating matmuls) + BN affine
    [+ residual | + fused 1x1-downsample+BN] + ReLU.

    x_ref : (NB, P, Mp, Cin)   P spatial phases (1 for stride-1, 4 for stride-2)
    w_ref : (9*Cin, Ct)        tap-major, cin-minor conv weights (bf16)
    s_ref, b_ref : (1, Ct)     folded BN scale / bias (f32)
    emit == "p"   : masked store into the padded P-layout (zero head/tail rows)
    emit == "rows": plain rows store
    """
    i = 0
    if emit == "p":
        mask_ref = rest[i]; i += 1
    if mode == "add":
        res_ref = rest[i]; i += 1
    elif mode == "down":
        xd_ref, wd_ref, sd_ref, bd_ref = rest[i:i + 4]; i += 4
    o_ref = rest[i]

    nb = x_ref.shape[0]
    ct = o_ref.shape[-1]
    out_rows = o_ref.shape[1]
    scale = s_ref[...]
    bias = b_ref[...]

    for n in range(nb):
        acc = None
        for t, (ph, start) in enumerate(taps):
            lhs = x_ref[n, ph, pl.ds(start, m_rows), :]           # (m_rows, Cin)
            rhs = w_ref[pl.ds(t * cin, cin), :]                   # (Cin, Ct)
            part = jnp.dot(lhs, rhs, preferred_element_type=jnp.float32)
            acc = part if acc is None else acc + part
        y = acc * scale + bias

        if mode == "add":
            y = y + res_ref[n, pl.ds(out_offset, m_rows), :].astype(jnp.float32)
        elif mode == "down":
            idn = jnp.dot(xd_ref[n], wd_ref[...], preferred_element_type=jnp.float32)
            y = y + (idn * sd_ref[...] + bd_ref[...])

        if relu:
            y = jnp.maximum(y, 0.0)

        if emit == "p":
            y = y * mask_ref[...]                                 # zero halo columns
            tail = out_rows - out_offset - m_rows
            o_ref[n, pl.ds(0, out_offset), :] = jnp.zeros((out_offset, ct), o_ref.dtype)
            o_ref[n, pl.ds(out_offset, m_rows), :] = y.astype(o_ref.dtype)
            if tail > 0:
                o_ref[n, pl.ds(out_offset + m_rows, tail), :] = (
                    jnp.zeros((tail, ct), o_ref.dtype))
        else:
            o_ref[n] = y.astype(o_ref.dtype)


# ----------------------------------------------------------------------------
# Launcher
# ----------------------------------------------------------------------------
def _conv_launch(x5, w, scale, bias, *, taps, cin, m_rows, out_rows,
                 out_offset, relu, emit, mask=None, res=None, down=None):
    N, P, Mp, Cin = x5.shape
    K, Cout = w.shape
    assert K == len(taps) * cin
    assert (mask is not None) == (emit == "p")

    fold = (m_rows <= FOLD_M_THRESHOLD) and (N > 1)
    NB = N if fold else 1
    mode = "add" if res is not None else ("down" if down is not None else "none")

    def footprint(ct):
        by = 2 * (NB * P * Mp * Cin * 2)                 # x block (double-buffered)
        by += 2 * (K * ct * 2 + 2 * ct * 4)              # weights + BN scale/bias
        by += 2 * (NB * out_rows * ct * 2)               # output block
        if mask is not None:
            by += 2 * (m_rows * 4)
        if mode == "add":
            by += 2 * (NB * res.shape[1] * ct * 2)
        elif mode == "down":
            Cd = down[0].shape[-1]
            by += 2 * (NB * m_rows * Cd * 2 + Cd * ct * 2 + 2 * ct * 4)
        by += NB * (3 * m_rows * ct * 4 + m_rows * cin * 2)   # live f32 values
        return by

    cap = _vmem_cap()
    ct = min(Cout, 256)
    while ct > 128 and footprint(ct) > cap:              # shrink the tile, never the limit
        ct //= 2
    need = footprint(ct)
    if need > cap:
        # TODO(synk): add a spatial (M-axis) grid with a 2-row halo for inputs
        #             large enough to overflow VMEM even at ct=128.
        raise ValueError("conv tile footprint exceeds the VMEM cap; "
                         "spatial M-tiling is required for this input size")
    assert Cout % ct == 0
    vmem_limit = int(min(max(need + (4 << 20), 32 << 20), cap))

    grid = (N // NB, Cout // ct)
    kernel = functools.partial(_conv_kernel, taps=taps, cin=cin, m_rows=m_rows,
                               out_offset=out_offset, relu=relu, mode=mode, emit=emit)

    in_specs = [
        pl.BlockSpec((NB, P, Mp, Cin), lambda n, j: (n, 0, 0, 0)),
        pl.BlockSpec((K, ct), lambda n, j: (0, j)),
        pl.BlockSpec((1, ct), lambda n, j: (0, j)),
        pl.BlockSpec((1, ct), lambda n, j: (0, j)),
    ]
    args = [x5, w, scale, bias]
    if emit == "p":
        in_specs.append(pl.BlockSpec((m_rows, 1), lambda n, j: (0, 0)))
        args.append(mask)
    if mode == "add":
        in_specs.append(pl.BlockSpec((NB, res.shape[1], ct), lambda n, j: (n, 0, j)))
        args.append(res)
    elif mode == "down":
        xd, wd, sd, bd = down
        Cd = xd.shape[-1]
        in_specs += [
            pl.BlockSpec((NB, m_rows, Cd), lambda n, j: (n, 0, 0)),
            pl.BlockSpec((Cd, ct), lambda n, j: (0, j)),
            pl.BlockSpec((1, ct), lambda n, j: (0, j)),
            pl.BlockSpec((1, ct), lambda n, j: (0, j)),
        ]
        args += [xd, wd, sd, bd]

    return pl.pallas_call(
        kernel,
        out_shape=jax.ShapeDtypeStruct((N, out_rows, Cout), jnp.bfloat16),
        grid_spec=pltpu.PrefetchScalarGridSpec(
            num_scalar_prefetch=0,
            grid=grid,
            in_specs=in_specs,
            out_specs=pl.BlockSpec((NB, out_rows, ct), lambda n, j: (n, 0, j)),
        ),
        compiler_params=pltpu.CompilerParams(
            dimension_semantics=("parallel", "parallel"),
            vmem_limit_bytes=vmem_limit,
        ),
    )(*args)


# ----------------------------------------------------------------------------
# Conv wrappers (P-layout in / P-layout out)
# ----------------------------------------------------------------------------
def conv3x3_bn_s1(xP, geo, w, scale, bias, *, relu=True, residual=None, down=None):
    """stride-1 3x3 conv + BN [+ residual or fused 1x1-downsample+BN] + ReLU."""
    N, Mp, Cin = xP.shape
    g = geo
    taps = tuple((0, g.lead + ki * g.Wp + kj) for ki in range(3) for kj in range(3))
    m_rows = g.H * g.Wp
    out_offset = g.lead + g.Wp + 1
    col = jnp.arange(m_rows, dtype=jnp.int32) % g.Wp
    mask = (col < g.W).astype(jnp.float32).reshape(m_rows, 1)
    x5 = xP.reshape(N, 1, Mp, Cin)
    out = _conv_launch(x5, w, scale, bias, taps=taps, cin=Cin, m_rows=m_rows,
                       out_rows=g.Mp, out_offset=out_offset, relu=relu,
                       emit="p", mask=mask, res=residual, down=down)
    return out, g


def conv3x3_bn_s2(xP, geo, w, scale, bias, *, relu=True):
    """stride-2 3x3 conv + BN + ReLU via a 4-phase space-to-depth view of the
    P-layout; re-emits a fresh 8-aligned P-layout for the downsampled stage."""
    N, Mp, Cin = xP.shape
    g = geo
    assert g.H % 2 == 0 and g.W % 2 == 0, "stride-2 path expects even spatial dims"
    Ho, Wo = g.H // 2, g.W // 2
    Hpo, Wpo = g.Hp // 2, g.Wp // 2
    x4 = xP[:, g.lead:g.lead + g.Hp * g.Wp, :].reshape(N, g.Hp, g.Wp, Cin)
    phases = jnp.stack([x4[:, pi::2, pj::2, :] for pi in range(2) for pj in range(2)],
                       axis=1)                                     # (N,4,Hpo,Wpo,Cin)
    Pm = _round_up(Hpo * Wpo + 1, 8)
    x5 = jnp.pad(phases.reshape(N, 4, Hpo * Wpo, Cin),
                 ((0, 0), (0, 0), (0, Pm - Hpo * Wpo), (0, 0)))
    taps = tuple(((ki % 2) * 2 + (kj % 2), (ki // 2) * Wpo + (kj // 2))
                 for ki in range(3) for kj in range(3))
    m_rows = Ho * Wpo
    rows = _conv_launch(x5, w, scale, bias, taps=taps, cin=Cin, m_rows=m_rows,
                        out_rows=m_rows, out_offset=0, relu=relu, emit="rows")
    Cout = w.shape[1]
    valid = rows.reshape(N, Ho, Wpo, Cout)[:, :, :Wo, :]
    return build_p_layout(valid)


def _downsample_rows(xP, gin, gout):
    """1x1-downsample input: block input subsampled by 2, laid out to match the
    conv2 output row indexing (m = r*Wp_out + c)."""
    N, _, C = xP.shape
    x4 = xP[:, gin.lead:gin.lead + gin.Hp * gin.Wp, :].reshape(N, gin.Hp, gin.Wp, C)
    xd = x4[:, 1:1 + 2 * gout.H:2, 1:1 + 2 * gout.W:2, :]          # x[::2, ::2]
    xd = jnp.pad(xd, ((0, 0), (0, 0), (0, gout.Wp - gout.W), (0, 0)))
    return xd.reshape(N, gout.H * gout.Wp, C)


def avgpool_fc(xP, geo, wfc, bfc):
    """Global average pool (P-layout pads are zero, so a flat sum works) + FC."""
    N, Mp, C = xP.shape
    NC = wfc.shape[1]
    inv_hw = 1.0 / float(geo.H * geo.W)

    def _head_kernel(x_ref, wfc_ref, bfc_ref, o_ref):
        pooled = jnp.sum(x_ref[...].astype(jnp.float32), axis=1) * inv_hw   # (N, C)
        o_ref[...] = (jnp.dot(pooled, wfc_ref[...],
                              preferred_element_type=jnp.float32) + bfc_ref[...])

    return pl.pallas_call(
        _head_kernel,
        out_shape=jax.ShapeDtypeStruct((N, NC), jnp.float32),
        grid_spec=pltpu.PrefetchScalarGridSpec(
            num_scalar_prefetch=0,
            grid=(1,),
            in_specs=[
                pl.BlockSpec((N, Mp, C), lambda i: (0, 0, 0)),
                pl.BlockSpec((C, NC), lambda i: (0, 0)),
                pl.BlockSpec((1, NC), lambda i: (0, 0)),
            ],
            out_specs=pl.BlockSpec((N, NC), lambda i: (0, 0)),
        ),
        compiler_params=pltpu.CompilerParams(vmem_limit_bytes=32 << 20),
    )(xP, wfc, bfc)


# ----------------------------------------------------------------------------
# Deterministic parameters (ResNet18: BasicBlockIFD, layers=[2,2,2,2])
# ----------------------------------------------------------------------------
def kaiming_conv3x3(key, cin, cout, cin_pad=None):
    # kaiming_normal_(mode='fan_out', nonlinearity='relu'): std = sqrt(2/(cout*9))
    std = (2.0 / (cout * 9)) ** 0.5
    w = jax.random.normal(key, (9, cin, cout), jnp.float32) * std
    if cin_pad is not None and cin_pad > cin:
        w = jnp.pad(w, ((0, 0), (0, cin_pad - cin), (0, 0)))
        cin = cin_pad
    return w.reshape(9 * cin, cout).astype(jnp.bfloat16)    # tap-major, cin-minor


def kaiming_conv1x1(key, cin, cout):
    std = (2.0 / cout) ** 0.5
    return (jax.random.normal(key, (cin, cout), jnp.float32) * std).astype(jnp.bfloat16)


def bn_params(c):
    gamma = jnp.ones((1, c), jnp.float32)
    beta = jnp.zeros((1, c), jnp.float32)
    running_mean = jnp.zeros((1, c), jnp.float32)
    running_var = jnp.ones((1, c), jnp.float32)
    scale = gamma / jnp.sqrt(running_var + BN_EPS)
    bias = beta - running_mean * scale
    return scale, bias


def build_params(key, num_classes=10):
    keys = iter(jax.random.split(key, 64))
    params = {"stem_w": kaiming_conv3x3(next(keys), 3, 64, cin_pad=8),  # K = 9*8
              "stem_bn": bn_params(64)}
    layers_cfg = [(64, 64, 1, 2), (64, 128, 2, 2), (128, 256, 2, 2), (256, 512, 2, 2)]
    blocks = []
    for cin, cout, stride, nblocks in layers_cfg:
        for b in range(nblocks):
            s = stride if b == 0 else 1
            bcin = cin if b == 0 else cout
            blk = {
                "stride": s,
                "conv1_w": kaiming_conv3x3(next(keys), bcin, cout),
                "bn1": bn_params(cout),
                "conv2_w": kaiming_conv3x3(next(keys), cout, cout),
                "bn2": bn_params(cout),
            }
            if s != 1 or bcin != cout:
                blk["down_w"] = kaiming_conv1x1(next(keys), bcin, cout)
                blk["down_bn"] = bn_params(cout)
            blocks.append(blk)
    params["blocks"] = blocks
    params["fc_w"] = (jax.random.normal(next(keys), (512, num_classes), jnp.float32)
                      * (1.0 / 512 ** 0.5))
    params["fc_b"] = jnp.zeros((1, num_classes), jnp.float32)
    return params


# ----------------------------------------------------------------------------
# Forward pass (use_info_dropout=False path of ResNetIFD.forward)
# ----------------------------------------------------------------------------
def resnet_ifd_forward(params, x_nchw):
    x = jnp.transpose(x_nchw, (0, 2, 3, 1)).astype(jnp.bfloat16)   # NCHW -> NHWC
    cin = x.shape[-1]
    if cin < 8:                                                    # stem channels 3 -> 8
        x = jnp.pad(x, ((0, 0), (0, 0), (0, 0), (0, 8 - cin)))
    xP, geo = build_p_layout(x)

    # stem: conv1 + bn1 + relu (Info_Dropout is a no-op with use_info_dropout=False)
    s, b = params["stem_bn"]
    xP, geo = conv3x3_bn_s1(xP, geo, params["stem_w"], s, b, relu=True)

    # layer1..layer4 (BasicBlockIFD)
    for blk in params["blocks"]:
        s1, b1 = blk["bn1"]
        s2, b2 = blk["bn2"]
        if blk["stride"] == 1:
            outP, og = conv3x3_bn_s1(xP, geo, blk["conv1_w"], s1, b1, relu=True)
            xP, geo = conv3x3_bn_s1(outP, og, blk["conv2_w"], s2, b2, relu=True,
                                    residual=xP)
        else:
            outP, og = conv3x3_bn_s2(xP, geo, blk["conv1_w"], s1, b1, relu=True)
            ds, db = blk["down_bn"]
            xd = _downsample_rows(xP, geo, og)     # 1x1-downsample fused into conv2
            xP, geo = conv3x3_bn_s1(outP, og, blk["conv2_w"], s2, b2, relu=True,
                                    down=(xd, blk["down_w"], ds, db))

    # adaptive avg pool (1,1) + fc
    return avgpool_fc(xP, geo, params["fc_w"], params["fc_b"])


# ----------------------------------------------------------------------------
if __name__ == "__main__":
    key = jax.random.PRNGKey(0)
    kx, kp = jax.random.split(key)

    # PyTorch-style NCHW input: module hard-codes Conv2d(3, 64); batch=2, spatial=16
    x = jax.random.normal(kx, (2, 3, 16, 16), jnp.float32)
    params = build_params(kp, num_classes=10)

    logits = resnet_ifd_forward(params, x)
    jax.block_until_ready(logits)
    assert logits.shape == (2, 10)
    assert bool(jnp.all(jnp.isfinite(logits)))
    print("KERNEL_OK")
</pallas_src>

<mosaic_0001>
module attributes {stable_mosaic.version = 11 : i64} {
  func.func @_conv_kernel(%arg0: i32, %arg1: i32, %arg2: memref<1x1x448x8xbf16, #tpu.memory_space<vmem>>, %arg3: memref<72x64xbf16, #tpu.memory_space<vmem>>, %arg4: memref<1x64xf32, #tpu.memory_space<vmem>>, %arg5: memref<1x64xf32, #tpu.memory_space<vmem>>, %arg6: memref<384x1xf32, #tpu.memory_space<vmem>>, %arg7: memref<1x448x64xbf16, #tpu.memory_space<vmem>>) attributes {dimension_semantics = [#tpu.dimension_semantics<parallel>, #tpu.dimension_semantics<parallel>], iteration_bounds = array<i64: 2, 1>, scalar_prefetch = 0 : i64, scratch_operands = 0 : i64, tpu.core_type = #tpu.core_type<tc>, window_params = [{transform_indices = @transform_0, window_bounds = array<i64: 1, 1, 448, 8>}, {transform_indices = @transform_1, window_bounds = array<i64: 72, 64>}, {transform_indices = @transform_2, window_bounds = array<i64: 1, 64>}, {transform_indices = @transform_3, window_bounds = array<i64: 1, 64>}, {pipeline_mode = #tpu.pipeline_mode<synchronous>, transform_indices = @transform_4, window_bounds = array<i64: 384, 1>}, {transform_indices = @transform_5, window_bounds = array<i64: 1, 448, 64>}]} {
    %c0 = arith.constant 0 : index
    %c0_0 = arith.constant 0 : index
    %0 = vector.load %arg4[%c0, %c0_0] : memref<1x64xf32, #tpu.memory_space<vmem>>, vector<1x64xf32>
    %c0_1 = arith.constant 0 : index
    %c0_2 = arith.constant 0 : index
    %1 = vector.load %arg5[%c0_1, %c0_2] : memref<1x64xf32, #tpu.memory_space<vmem>>, vector<1x64xf32>
    %c0_3 = arith.constant 0 : index
    %c0_4 = arith.constant 0 : index
    %c7 = arith.constant 7 : index
    %c0_5 = arith.constant 0 : index
    %2 = vector.load %arg2[%c0_3, %c0_4, %c7, %c0_5] : memref<1x1x448x8xbf16, #tpu.memory_space<vmem>>, vector<1x1x384x8xbf16>
    %3 = vector.shape_cast %2 : vector<1x1x384x8xbf16> to vector<384x8xbf16>
    %c0_6 = arith.constant 0 : index
    %c0_7 = arith.constant 0 : index
    %4 = vector.load %arg3[%c0_6, %c0_7] : memref<72x64xbf16, #tpu.memory_space<vmem>>, vector<8x64xbf16>
    %cst = arith.constant dense<0.000000e+00> : vector<384x64xf32>
    %5 = tpu.matmul %3, %4, %cst {dimension_numbers = #tpu.dot_dimension_numbers<[1], [0], [0], [1], [0, 0, 1, 1], [], []>} : vector<384x8xbf16>, vector<8x64xbf16>, vector<384x64xf32> -> vector<384x64xf32>
    %c0_8 = arith.constant 0 : index
    %c0_9 = arith.constant 0 : index
    %c8 = arith.constant 8 : index
    %c0_10 = arith.constant 0 : index
    %6 = vector.load %arg2[%c0_8, %c0_9, %c8, %c0_10] : memref<1x1x448x8xbf16, #tpu.memory_space<vmem>>, vector<1x1x384x8xbf16>
    %7 = vector.shape_cast %6 : vector<1x1x384x8xbf16> to vector<384x8xbf16>
    %c8_11 = arith.constant 8 : index
    %c0_12 = arith.constant 0 : index
    %8 = vector.load %arg3[%c8_11, %c0_12] : memref<72x64xbf16, #tpu.memory_space<vmem>>, vector<8x64xbf16>
    %cst_13 = arith.constant dense<0.000000e+00> : vector<384x64xf32>
    %9 = tpu.matmul %7, %8, %cst_13 {dimension_numbers = #tpu.dot_dimension_numbers<[1], [0], [0], [1], [0, 0, 1, 1], [], []>} : vector<384x8xbf16>, vector<8x64xbf16>, vector<384x64xf32> -> vector<384x64xf32>
    %10 = arith.addf %5, %9 : vector<384x64xf32>
    %c0_14 = arith.constant 0 : index
    %c0_15 = arith.constant 0 : index
    %c9 = arith.constant 9 : index
    %c0_16 = arith.constant 0 : index
    %11 = vector.load %arg2[%c0_14, %c0_15, %c9, %c0_16] : memref<1x1x448x8xbf16, #tpu.memory_space<vmem>>, vector<1x1x384x8xbf16>
    %12 = vector.shape_cast %11 : vector<1x1x384x8xbf16> to vector<384x8xbf16>
    %c16 = arith.constant 16 : index
    %c0_17 = arith.constant 0 : index
    %13 = vector.load %arg3[%c16, %c0_17] : memref<72x64xbf16, #tpu.memory_space<vmem>>, vector<8x64xbf16>
    %cst_18 = arith.constant dense<0.000000e+00> : vector<384x64xf32>
    %14 = tpu.matmul %12, %13, %cst_18 {dimension_numbers = #tpu.dot_dimension_numbers<[1], [0], [0], [1], [0, 0, 1, 1], [], []>} : vector<384x8xbf16>, vector<8x64xbf16>, vector<384x64xf32> -> vector<384x64xf32>
    %15 = arith.addf %10, %14 : vector<384x64xf32>
    %c0_19 = arith.constant 0 : index
    %c0_20 = arith.constant 0 : index
    %c31 = arith.constant 31 : index
    %c0_21 = arith.constant 0 : index
    %16 = vector.load %arg2[%c0_19, %c0_20, %c31, %c0_21] : memref<1x1x448x8xbf16, #tpu.memory_space<vmem>>, vector<1x1x384x8xbf16>
    %17 = vector.shape_cast %16 : vector<1x1x384x8xbf16> to vector<384x8xbf16>
    %c24 = arith.constant 24 : index
    %c0_22 = arith.constant 0 : index
    %18 = vector.load %arg3[%c24, %c0_22] : memref<72x64xbf16, #tpu.memory_space<vmem>>, vector<8x64xbf16>
    %cst_23 = arith.constant dense<0.000000e+00> : vector<384x64xf32>
    %19 = tpu.matmul %17, %18, %cst_23 {dimension_numbers = #tpu.dot_dimension_numbers<[1], [0], [0], [1], [0, 0, 1, 1], [], []>} : vector<384x8xbf16>, vector<8x64xbf16>, vector<384x64xf32> -> vector<384x64xf32>
    %20 = arith.addf %15, %19 : vector<384x64xf32>
    %c0_24 = arith.constant 0 : index
    %c0_25 = arith.constant 0 : index
    %c32 = arith.constant 32 : index
    %c0_26 = arith.constant 0 : index
    %21 = vector.load %arg2[%c0_24, %c0_25, %c32, %c0_26] : memref<1x1x448x8xbf16, #tpu.memory_space<vmem>>, vector<1x1x384x8xbf16>
    %22 = vector.shape_cast %21 : vector<1x1x384x8xbf16> to vector<384x8xbf16>
    %c32_27 = arith.constant 32 : index
    %c0_28 = arith.constant 0 : index
    %23 = vector.load %arg3[%c32_27, %c0_28] : memref<72x64xbf16, #tpu.memory_space<vmem>>, vector<8x64xbf16>
    %cst_29 = arith.constant dense<0.000000e+00> : vector<384x64xf32>
    %24 = tpu.matmul %22, %23, %cst_29 {dimension_numbers = #tpu.dot_dimension_numbers<[1], [0], [0], [1], [0, 0, 1, 1], [], []>} : vector<384x8xbf16>, vector<8x64xbf16>, vector<384x64xf32> -> vector<384x64xf32>
    %25 = arith.addf %20, %24 : vector<384x64xf32>
    %c0_30 = arith.constant 0 : index
    %c0_31 = arith.constant 0 : index
    %c33 = arith.constant 33 : index
    %c0_32 = arith.constant 0 : index
    %26 = vector.load %arg2[%c0_30, %c0_31, %c33, %c0_32] : memref<1x1x448x8xbf16, #tpu.memory_space<vmem>>, vector<1x1x384x8xbf16>
    %27 = vector.shape_cast %26 : vector<1x1x384x8xbf16> to vector<384x8xbf16>
    %c40 = arith.constant 40 : index
    %c0_33 = arith.constant 0 : index
    %28 = vector.load %arg3[%c40, %c0_33] : memref<72x64xbf16, #tpu.memory_space<vmem>>, vector<8x64xbf16>
    %cst_34 = arith.constant dense<0.000000e+00> : vector<384x64xf32>
    %29 = tpu.matmul %27, %28, %cst_34 {dimension_numbers = #tpu.dot_dimension_numbers<[1], [0], [0], [1], [0, 0, 1, 1], [], []>} : vector<384x8xbf16>, vector<8x64xbf16>, vector<384x64xf32> -> vector<384x64xf32>
    %30 = arith.addf %25, %29 : vector<384x64xf32>
    %c0_35 = arith.constant 0 : index
    %c0_36 = arith.constant 0 : index
    %c55 = arith.constant 55 : index
    %c0_37 = arith.constant 0 : index
    %31 = vector.load %arg2[%c0_35, %c0_36, %c55, %c0_37] : memref<1x1x448x8xbf16, #tpu.memory_space<vmem>>, vector<1x1x384x8xbf16>
    %32 = vector.shape_cast %31 : vector<1x1x384x8xbf16> to vector<384x8xbf16>
    %c48 = arith.constant 48 : index
    %c0_38 = arith.constant 0 : index
    %33 = vector.load %arg3[%c48, %c0_38] : memref<72x64xbf16, #tpu.memory_space<vmem>>, vector<8x64xbf16>
    %cst_39 = arith.constant dense<0.000000e+00> : vector<384x64xf32>
    %34 = tpu.matmul %32, %33, %cst_39 {dimension_numbers = #tpu.dot_dimension_numbers<[1], [0], [0], [1], [0, 0, 1, 1], [], []>} : vector<384x8xbf16>, vector<8x64xbf16>, vector<384x64xf32> -> vector<384x64xf32>
    %35 = arith.addf %30, %34 : vector<384x64xf32>
    %c0_40 = arith.constant 0 : index
    %c0_41 = arith.constant 0 : index
    %c56 = arith.constant 56 : index
    %c0_42 = arith.constant 0 : index
    %36 = vector.load %arg2[%c0_40, %c0_41, %c56, %c0_42] : memref<1x1x448x8xbf16, #tpu.memory_space<vmem>>, vector<1x1x384x8xbf16>
    %37 = vector.shape_cast %36 : vector<1x1x384x8xbf16> to vector<384x8xbf16>
    %c56_43 = arith.constant 56 : index
    %c0_44 = arith.constant 0 : index
    %38 = vector.load %arg3[%c56_43, %c0_44] : memref<72x64xbf16, #tpu.memory_space<vmem>>, vector<8x64xbf16>
    %cst_45 = arith.constant dense<0.000000e+00> : vector<384x64xf32>
    %39 = tpu.matmul %37, %38, %cst_45 {dimension_numbers = #tpu.dot_dimension_numbers<[1], [0], [0], [1], [0, 0, 1, 1], [], []>} : vector<384x8xbf16>, vector<8x64xbf16>, vector<384x64xf32> -> vector<384x64xf32>
    %40 = arith.addf %35, %39 : vector<384x64xf32>
    %c0_46 = arith.constant 0 : index
    %c0_47 = arith.constant 0 : index
    %c57 = arith.constant 57 : index
    %c0_48 = arith.constant 0 : index
    %41 = vector.load %arg2[%c0_46, %c0_47, %c57, %c0_48] : memref<1x1x448x8xbf16, #tpu.memory_space<vmem>>, vector<1x1x384x8xbf16>
    %42 = vector.shape_cast %41 : vector<1x1x384x8xbf16> to vector<384x8xbf16>
    %c64 = arith.constant 64 : index
    %c0_49 = arith.constant 0 : index
    %43 = vector.load %arg3[%c64, %c0_49] : memref<72x64xbf16, #tpu.memory_space<vmem>>, vector<8x64xbf16>
    %cst_50 = arith.constant dense<0.000000e+00> : vector<384x64xf32>
    %44 = tpu.matmul %42, %43, %cst_50 {dimension_numbers = #tpu.dot_dimension_numbers<[1], [0], [0], [1], [0, 0, 1, 1], [], []>} : vector<384x8xbf16>, vector<8x64xbf16>, vector<384x64xf32> -> vector<384x64xf32>
    %45 = arith.addf %40, %44 : vector<384x64xf32>
    %46 = vector.broadcast %0 : vector<1x64xf32> to vector<384x64xf32>
    %47 = arith.mulf %45, %46 : vector<384x64xf32>
    %48 = vector.broadcast %1 : vector<1x64xf32> to vector<384x64xf32>
    %49 = arith.addf %47, %48 : vector<384x64xf32>
    %cst_51 = arith.constant 0.000000e+00 : f32
    %50 = vector.broadcast %cst_51 : f32 to vector<384x64xf32>
    %51 = arith.maximumf %49, %50 : vector<384x64xf32>
    %c0_52 = arith.constant 0 : index
    %c0_53 = arith.constant 0 : index
    %52 = vector.load %arg6[%c0_52, %c0_53] : memref<384x1xf32, #tpu.memory_space<vmem>>, vector<384x1xf32>
    %53 = vector.broadcast %52 : vector<384x1xf32> to vector<384x64xf32>
    %54 = arith.mulf %51, %53 : vector<384x64xf32>
    %cst_54 = arith.constant 0.000000e+00 : bf16
    %55 = vector.broadcast %cst_54 : bf16 to vector<32x64xbf16>
    %c0_55 = arith.constant 0 : index
    %c0_56 = arith.constant 0 : index
    %c0_57 = arith.constant 0 : index
    %56 = vector.load %arg7[%c0_55, %c0_56, %c0_57] : memref<1x448x64xbf16, #tpu.memory_space<vmem>>, vector<1x32x64xbf16>
    %57 = vector.shape_cast %56 : vector<1x32x64xbf16> to vector<32x64xbf16>
    %58 = vector.shape_cast %55 : vector<32x64xbf16> to vector<1x32x64xbf16>
    tpu.vector_store %arg7[%c0_55, %c0_56, %c0_57], %58 {strides = array<i32>} : memref<1x448x64xbf16, #tpu.memory_space<vmem>>, vector<1x32x64xbf16>,
    %59 = arith.truncf %54 : vector<384x64xf32> to vector<384x64xbf16>
    %c0_58 = arith.constant 0 : index
    %c32_59 = arith.constant 32 : index
    %c0_60 = arith.constant 0 : index
    %60 = vector.load %arg7[%c0_58, %c32_59, %c0_60] : memref<1x448x64xbf16, #tpu.memory_space<vmem>>, vector<1x384x64xbf16>
    %61 = vector.shape_cast %60 : vector<1x384x64xbf16> to vector<384x64xbf16>
    %62 = vector.shape_cast %59 : vector<384x64xbf16> to vector<1x384x64xbf16>
    tpu.vector_store %arg7[%c0_58, %c32_59, %c0_60], %62 {strides = array<i32>} : memref<1x448x64xbf16, #tpu.memory_space<vmem>>, vector<1x384x64xbf16>,
    %cst_61 = arith.constant 0.000000e+00 : bf16
    %63 = vector.broadcast %cst_61 : bf16 to vector<32x64xbf16>
    %c0_62 = arith.constant 0 : index
    %c416 = arith.constant 416 : index
    %c0_63 = arith.constant 0 : index
    %64 = vector.load %arg7[%c0_62, %c416, %c0_63] : memref<1x448x64xbf16, #tpu.memory_space<vmem>>, vector<1x32x64xbf16>
    %65 = vector.shape_cast %64 : vector<1x32x64xbf16> to vector<32x64xbf16>
    %66 = vector.shape_cast %63 : vector<32x64xbf16> to vector<1x32x64xbf16>
    tpu.vector_store %arg7[%c0_62, %c416, %c0_63], %66 {strides = array<i32>} : memref<1x448x64xbf16, #tpu.memory_space<vmem>>, vector<1x32x64xbf16>,
    return
  }
  func.func @transform_0(%arg0: i32, %arg1: i32) -> (i32, i32, i32, i32) {
    %c0_i32 = arith.constant 0 : i32
    %c0_i32_0 = arith.constant 0 : i32
    %c0_i32_1 = arith.constant 0 : i32
    %c0_i32_2 = arith.constant 0 : i32
    return %arg0, %c0_i32, %c0_i32_0, %c0_i32_1 : i32, i32, i32, i32
  }
  func.func @transform_1(%arg0: i32, %arg1: i32) -> (i32, i32) {
    %c0_i32 = arith.constant 0 : i32
    %c0_i32_0 = arith.constant 0 : i32
    return %c0_i32, %arg1 : i32, i32
  }
  func.func @transform_2(%arg0: i32, %arg1: i32) -> (i32, i32) {
    %c0_i32 = arith.constant 0 : i32
    %c0_i32_0 = arith.constant 0 : i32
    return %c0_i32, %arg1 : i32, i32
  }
  func.func @transform_3(%arg0: i32, %arg1: i32) -> (i32, i32) {
    %c0_i32 = arith.constant 0 : i32
    %c0_i32_0 = arith.constant 0 : i32
    return %c0_i32, %arg1 : i32, i32
  }
  func.func @transform_4(%arg0: i32, %arg1: i32) -> (i32, i32) {
    %c0_i32 = arith.constant 0 : i32
    %c0_i32_0 = arith.constant 0 : i32
    %c0_i32_1 = arith.constant 0 : i32
    return %c0_i32, %c0_i32_0 : i32, i32
  }
  func.func @transform_5(%arg0: i32, %arg1: i32) -> (i32, i32, i32) {
    %c0_i32 = arith.constant 0 : i32
    %c0_i32_0 = arith.constant 0 : i32
    return %arg0, %c0_i32, %arg1 : i32, i32, i32
  }
}

</mosaic_0001>

<llo_original>
// kernel: tpu_custom_call.1
$region0: #{tpu_custom_call.1}
  #allocation0 [shape = 'u32[]', space=smem, size = 0x4, offset = 0x4, fixed_abs, tag = 'smem constant byte address 0x4 - core index']
  #allocation1 [shape = 'u32[144,128]{1,0:T(1,128)}', space=vmem, size = 0x12000, scoped, tag = 'internal scratch']
  %s0 = inlined_call_operand.vmem [shape: bf16[2,1,448,8], index: 0, kind: input, shape index: {}]
  %s1 = inlined_call_operand.vmem [shape: bf16[72,64], index: 1, kind: input, shape index: {}]
  %s2 = inlined_call_operand.vmem [shape: f32[1,64], index: 2, kind: input, shape index: {}]
  %s3 = inlined_call_operand.vmem [shape: f32[1,64], index: 3, kind: input, shape index: {}]
  %s4 = inlined_call_operand.vmem [shape: f32[384,1], index: 4, kind: input, shape index: {}]
  %s5 = inlined_call_operand.vmem [shape: bf16[2,448,64], index: 5, kind: output, shape index: {}]
  %s6 = sld [smem:[#allocation0]]
  $region53: #{tpu_custom_call.1} parent=0
    _
  %s8 = ssub.s32 1, %s6
  %s9 = scalar_select 0, %s8, %s6
  loop: start=0, step=1, limit=4
  $region2: #{tpu_custom_call.1} parent=0 // loop_pre_header
    _
  $region3: #{tpu_custom_call.1} parent=0 // loop_header
    %s11 = sphi 0, %s15
    %p12 = scmp.ge.s32.totalorder %s11, 4
    %s18 = sphi 0, %s30
    %s19 = sphi 0, %s26
    %s20 = sphi 0, %s18
    %s21 = sphi 0, %s19
    %s22 = sphi 0, %s20
    %s23 = sphi 0, %s21
    %s33 = sphi 0, %s35
    %s36 = sphi 0, %s33
    %s37 = sphi 0, %s36
    %s53 = sphi 0, %s37
    %s59 = sphi 0, %s61
    %s62 = sphi 0, %s59
    %s63 = sphi 0, %s62
    %s79 = sphi 0, %s63
    %s85 = sphi 0, %s87
    %s88 = sphi 0, %s85
    %s89 = sphi 0, %s88
    %s105 = sphi 0, %s89
    %s111 = sphi 0, %s113
    %s114 = sphi 0, %s111
    %s115 = sphi 0, %s114
    %s131 = sphi 0, %s115
    %s135 = sphi 0, %s135
    %s137 = sphi 0, %s135
    %s138 = sphi 0, %s137
    %s152 = sphi 0, %s138
    %s160 = sphi 0, %s162
    %s163 = sphi 0, %s160
    %s164 = sphi 0, %s163
    %s180 = sphi 0, %s164
  $region4: #{tpu_custom_call.1} parent=0 // loop_header_branch
    %14 = sbr.rel (%p12) target = $region8
  $region5: #{tpu_custom_call.1} parent=0 // loop_body
    %s16 = ssub.s32 %s11, 1
    %s17 = ssub.s32 %s11, 2
    %s24 = sadd.s32 1, %s19
    %p25 = scmp.ge.s32.totalorder %s24, 1
    %s26 = scalar_select %p25, 0, %s24
    %s27 = sadd.s32 1, %s18
    %s28 = scalar_select %p25, %s27, %s18
    %p29 = scmp.ge.s32.totalorder %s28, 2
    %s30 = scalar_select %p29, 0, %s28
    %s31 = ssub.s32 %s18, %s30
    %p32 = scmp.eq.s32.totalorder %s31, 0
    %s34 = sadd.s32 %s33, 1
    %s35 = scalar_select %p32, %s33, %s34
    %p38 = pneg %p32
    %p39 = scmp.eq.s32.totalorder %s11, 1
    %p40 = por %p38, %p39
    %p41 = scmp.ne.s32.totalorder %s33, %s36
    %p42 = scmp.eq.s32.totalorder %s11, 0
    %p43 = por %p41, %p42
    %p44 = scmp.ne.s32.totalorder %s33, %s36
    %p45 = scmp.eq.s32.totalorder %s16, 1
    %p46 = por %p44, %p45
    %p47 = scmp.ne.s32.totalorder %s36, %s37
    %p48 = scmp.eq.s32.totalorder %s16, 0
    %p49 = por %p47, %p48
    %p50 = scmp.ne.s32.totalorder %s36, %s37
    %p51 = scmp.eq.s32.totalorder %s17, 1
    %p52 = por %p50, %p51
    %p54 = scmp.ne.s32.totalorder %s37, %s53
    %p55 = scmp.eq.s32.totalorder %s17, 0
    %p56 = por %p54, %p55
    %s57 = ssub.s32 %s19, %s26
    %p58 = scmp.eq.s32.totalorder %s57, 0
    %s60 = sadd.s32 %s59, 1
    %s61 = scalar_select %p58, %s59, %s60
    %p64 = pneg %p58
    %p65 = scmp.eq.s32.totalorder %s11, 1
    %p66 = por %p64, %p65
    %p67 = scmp.ne.s32.totalorder %s59, %s62
    %p68 = scmp.eq.s32.totalorder %s11, 0
    %p69 = por %p67, %p68
    %p70 = scmp.ne.s32.totalorder %s59, %s62
    %p71 = scmp.eq.s32.totalorder %s16, 1
    %p72 = por %p70, %p71
    %p73 = scmp.ne.s32.totalorder %s62, %s63
    %p74 = scmp.eq.s32.totalorder %s16, 0
    %p75 = por %p73, %p74
    %p76 = scmp.ne.s32.totalorder %s62, %s63
    %p77 = scmp.eq.s32.totalorder %s17, 1
    %p78 = por %p76, %p77
    %p80 = scmp.ne.s32.totalorder %s63, %s79
    %p81 = scmp.eq.s32.totalorder %s17, 0
    %p82 = por %p80, %p81
    %s83 = ssub.s32 %s19, %s26
    %p84 = scmp.eq.s32.totalorder %s83, 0
    %s86 = sadd.s32 %s85, 1
    %s87 = scalar_select %p84, %s85, %s86
    %p90 = pneg %p84
    %p91 = scmp.eq.s32.totalorder %s11, 1
    %p92 = por %p90, %p91
    %p93 = scmp.ne.s32.totalorder %s85, %s88
    %p94 = scmp.eq.s32.totalorder %s11, 0
    %p95 = por %p93, %p94
    %p96 = scmp.ne.s32.totalorder %s85, %s88
    %p97 = scmp.eq.s32.totalorder %s16, 1
    %p98 = por %p96, %p97
    %p99 = scmp.ne.s32.totalorder %s88, %s89
    %p100 = scmp.eq.s32.totalorder %s16, 0
    %p101 = por %p99, %p100
    %p102 = scmp.ne.s32.totalorder %s88, %s89
    %p103 = scmp.eq.s32.totalorder %s17, 1
    %p104 = por %p102, %p103
    %p106 = scmp.ne.s32.totalorder %s89, %s105
    %p107 = scmp.eq.s32.totalorder %s17, 0
    %p108 = por %p106, %p107
    %s109 = ssub.s32 %s19, %s26
    %p110 = scmp.eq.s32.totalorder %s109, 0
    %s112 = sadd.s32 %s111, 1
    %s113 = scalar_select %p110, %s111, %s112
    %p116 = pneg %p110
    %p117 = scmp.eq.s32.totalorder %s11, 1
    %p118 = por %p116, %p117
    %p119 = scmp.ne.s32.totalorder %s111, %s114
    %p120 = scmp.eq.s32.totalorder %s11, 0
    %p121 = por %p119, %p120
    %p122 = scmp.ne.s32.totalorder %s111, %s114
    %p123 = scmp.eq.s32.totalorder %s16, 1
    %p124 = por %p122, %p123
    %p125 = scmp.ne.s32.totalorder %s114, %s115
    %p126 = scmp.eq.s32.totalorder %s16, 0
    %p127 = por %p125, %p126
    %p128 = scmp.ne.s32.totalorder %s114, %s115
    %p129 = scmp.eq.s32.totalorder %s17, 1
    %p130 = por %p128, %p129
    %p132 = scmp.ne.s32.totalorder %s115, %s131
    %p133 = scmp.eq.s32.totalorder %s17, 0
    %p134 = por %p132, %p133
    %s136 = sadd.s32 %s135, 1
    %p139 = scmp.eq.s32.totalorder %s11, 1
    %p140 = scmp.ne.s32.totalorder %s135, %s137
    %p141 = scmp.eq.s32.totalorder %s11, 0
    %p142 = por %p140, %p141
    %p143 = scmp.ne.s32.totalorder %s135, %s137
    %p144 = scmp.eq.s32.totalorder %s16, 1
    %p145 = por %p143, %p144
    %p146 = scmp.ne.s32.totalorder %s137, %s138
    %p147 = scmp.eq.s32.totalorder %s16, 0
    %p148 = por %p146, %p147
    %p149 = scmp.ne.s32.totalorder %s137, %s138
    %p150 = scmp.eq.s32.totalorder %s17, 1
    %p151 = por %p149, %p150
    %p153 = scmp.ne.s32.totalorder %s138, %s152
    %p154 = scmp.eq.s32.totalorder %s17, 0
    %p155 = por %p153, %p154
    %s156 = ssub.s32 %s18, %s30
    %s157 = ssub.s32 %s19, %s26
    %s158 = sor.u32 %s156, %s157
    %p159 = scmp.eq.s32.totalorder %s158, 0
    %s161 = sadd.s32 %s160, 1
    %s162 = scalar_select %p159, %s160, %s161
    %p165 = pneg %p159
    %p166 = scmp.eq.s32.totalorder %s11, 1
    %p167 = por %p165, %p166
    %p168 = scmp.ne.s32.totalorder %s160, %s163
    %p169 = scmp.eq.s32.totalorder %s11, 0
    %p170 = por %p168, %p169
    %p171 = scmp.ne.s32.totalorder %s160, %s163
    %p172 = scmp.eq.s32.totalorder %s16, 1
    %p173 = por %p171, %p172
    %p174 = scmp.ne.s32.totalorder %s163, %s164
    %p175 = scmp.eq.s32.totalorder %s16, 0
    %p176 = por %p174, %p175
    %p177 = scmp.ne.s32.totalorder %s163, %s164
    %p178 = scmp.eq.s32.totalorder %s17, 1
    %p179 = por %p177, %p178
    %p181 = scmp.ne.s32.totalorder %s164, %s180
    %p182 = scmp.eq.s32.totalorder %s17, 0
    %p183 = por %p181, %p182
    %p184 = scmp.le.s32.totalorder 1, %s11
    %p185 = scmp.lt.s32.totalorder %s11, 3
    %p186 = pnand %p184, %p185
    %p187 = pneg %p186
    // Predicated region
    $region9: #{tpu_custom_call.1} parent=5 // pred_check
      _
    $region10: #{tpu_custom_call.1} parent=5 // pred_check_branch
      %189 = sbr.rel (%p186) target = $region12
    $region11: #{tpu_custom_call.1} parent=5 // pred_region
      %s190 = ssub.s32 %s11, 1
      // Predicated region
      $region13: #{tpu_custom_call.1} parent=11 // pred_check
        %p191 = pneg %p75
      $region14: #{tpu_custom_call.1} parent=11 // pred_check_branch
        %193 = sbr.rel (%p191) target = $region16
      $region15: #{tpu_custom_call.1} parent=11 // pred_region
        %p194 = scmp.lt.s32.totalorder %s21, 0
        %s195 = scalar_select %p194, %s21, 0
        %s196 = smul.addr %s195, 4
        %s197 = scalar_lea.vmem %s1, %s196
      $region16: #{tpu_custom_call.1} parent=11 // pred_fallthru
        _
      // Predicated region
      $region17: #{tpu_custom_call.1} parent=11 // pred_check
        %p198 = pneg %p101
      $region18: #{tpu_custom_call.1} parent=11 // pred_check_branch
        %200 = sbr.rel (%p198) target = $region20
      $region19: #{tpu_custom_call.1} parent=11 // pred_region
        %p201 = scmp.lt.s32.totalorder %s21, 0
        %s202 = scalar_select %p201, %s21, 0
        %s203 = scalar_lea.vmem %s2, %s202
      $region20: #{tpu_custom_call.1} parent=11 // pred_fallthru
        _
      // Predicated region
      $region21: #{tpu_custom_call.1} parent=11 // pred_check
        %p204 = pneg %p127
      $region22: #{tpu_custom_call.1} parent=11 // pred_check_branch
        %206 = sbr.rel (%p204) target = $region24
      $region23: #{tpu_custom_call.1} parent=11 // pred_region
        %p207 = scmp.lt.s32.totalorder %s21, 0
        %s208 = scalar_select %p207, %s21, 0
        %s209 = scalar_lea.vmem %s3, %s208
      $region24: #{tpu_custom_call.1} parent=11 // pred_fallthru
        _
      // Predicated region
      $region25: #{tpu_custom_call.1} parent=11 // pred_check
        %p210 = pneg %p148
      $region26: #{tpu_custom_call.1} parent=11 // pred_check_branch
        %212 = sbr.rel (%p210) target = $region28
      $region27: #{tpu_custom_call.1} parent=11 // pred_region
        _
      $region28: #{tpu_custom_call.1} parent=11 // pred_fallthru
        _
    $region12: #{tpu_custom_call.1} parent=5 // pred_fallthru
      _
    %p213 = scmp.lt.s32.totalorder %s11, 2
    // Predicated region
    $region29: #{tpu_custom_call.1} parent=5 // pred_check
      %p214 = pneg %p213
    $region30: #{tpu_custom_call.1} parent=5 // pred_check_branch
      %216 = sbr.rel (%p214) target = $region32
    $region31: #{tpu_custom_call.1} parent=5 // pred_region
      // Predicated region
      $region33: #{tpu_custom_call.1} parent=31 // pred_check
        %p217 = pneg %p43
      $region34: #{tpu_custom_call.1} parent=31 // pred_check_branch
        %219 = sbr.rel (%p217) target = $region36
      $region35: #{tpu_custom_call.1} parent=31 // pred_region
        %p220 = scmp.lt.s32.totalorder %s18, 1
        %s221 = scalar_select %p220, %s18, 1
        %s222 = smul.addr %s221, 56
        %s223 = smul.addr %s222, 4
        %s224 = scalar_lea.vmem %s0, %s223
      $region36: #{tpu_custom_call.1} parent=31 // pred_fallthru
        _
    $region32: #{tpu_custom_call.1} parent=5 // pred_fallthru
      _
    %p225 = scmp.le.s32.totalorder 1, %s11
    %p226 = scmp.lt.s32.totalorder %s11, 3
    %p227 = pnand %p225, %p226
    %p228 = pneg %p227
    // Predicated region
    $region37: #{tpu_custom_call.1} parent=5 // pred_check
      _
    $region38: #{tpu_custom_call.1} parent=5 // pred_check_branch
      %230 = sbr.rel (%p227) target = $region40
    $region39: #{tpu_custom_call.1} parent=5 // pred_region
      %s231 = ssub.s32 %s11, 1
      %p232 = scmp.lt.s32.totalorder %s20, 1
      %s233 = scalar_select %p232, %s20, 1
      %s234 = smul.addr %s233, 56
      %s235 = smul.addr %s234, 4
      %s236 = scalar_lea.vmem %s0, %s235
      %p237 = pneg %p49
      %p238 = pneg %p46
      %p239 = scmp.lt.s32.totalorder %s21, 0
      %s240 = scalar_select %p239, %s21, 0
      %s241 = smul.addr %s240, 4
      %s242 = scalar_lea.vmem %s1, %s241
      %p243 = pneg %p75
      %p244 = pneg %p72
      %p245 = scmp.lt.s32.totalorder %s21, 0
      %s246 = scalar_select %p245, %s21, 0
      %s247 = scalar_lea.vmem %s2, %s246
      %p248 = pneg %p101
      %p249 = pneg %p98
      %p250 = scmp.lt.s32.totalorder %s21, 0
      %s251 = scalar_select %p250, %s21, 0
      %s252 = scalar_lea.vmem %s3, %s251
      %p253 = pneg %p127
      %p254 = pneg %p124
      %p255 = pneg %p148
      %p256 = pneg %p145
      %p257 = pneg %p176
      %p258 = pneg %p173
      %p259 = scmp.lt.s32.totalorder %s20, 1
      %s260 = scalar_select %p259, %s20, 1
      %p261 = scmp.lt.s32.totalorder %s21, 0
      %s262 = scalar_select %p261, %s21, 0
      %s263 = smul.addr %s260, 56
      %s264 = sadd.s32 %s262, %s263
      %s265 = smul.addr %s264, 4
      %s266 = scalar_lea.vmem %s5, %s265
      %p267 = scmp.lt.s32.totalorder %s20, 1
      %s268 = scalar_select %p267, %s20, 1
      %s269 = smul.addr %s268, 56
      %s270 = smul.addr %s269, 4
      %s271 = scalar_lea.vmem %s0, %s270
      %p272 = scmp.lt.s32.totalorder %s21, 0
      %s273 = scalar_select %p272, %s21, 0
      %s274 = smul.addr %s273, 4
      %s275 = scalar_lea.vmem %s1, %s274
      %p276 = scmp.lt.s32.totalorder %s21, 0
      %s277 = scalar_select %p276, %s21, 0
      %s278 = scalar_lea.vmem %s2, %s277
      %p279 = scmp.lt.s32.totalorder %s21, 0
      %s280 = scalar_select %p279, %s21, 0
      %s281 = scalar_lea.vmem %s3, %s280
      %p282 = scmp.lt.s32.totalorder %s20, 1
      %s283 = scalar_select %p282, %s20, 1
      %p284 = scmp.lt.s32.totalorder %s21, 0
      %s285 = scalar_select %p284, %s21, 0
      %s286 = smul.addr %s283, 56
      %s287 = sadd.s32 %s285, %s286
      %s288 = smul.addr %s287, 4
      %s289 = scalar_lea.vmem %s5, %s288
      %v291 = vld [vmem:[%s278] sm:$0x1]
      %v292 = vld [vmem:[%s281] sm:$0x1]
      %v293 = vld [vmem:[%s271] sm:$0x8]
      %v294 = vld [vmem:[%s271 + $0x4] sm:$0xf]
      %v295 = vld [vmem:[%s271 + $0x8] sm:$0xf]
      %v296 = vld [vmem:[%s271 + $0xc] sm:$0xf]
      %v297 = vld [vmem:[%s271 + $0x10] sm:$0xf]
      %v298 = vld [vmem:[%s271 + $0x14] sm:$0xf]
      %v299 = vld [vmem:[%s271 + $0x18] sm:$0xf]
      %v300 = vld [vmem:[%s271 + $0x1c] sm:$0xf]
      %v301 = vld [vmem:[%s271 + $0x20] sm:$0xf]
      %v302 = vld [vmem:[%s271 + $0x24] sm:$0xf]
      %v303 = vld [vmem:[%s271 + $0x28] sm:$0xf]
      %v304 = vld [vmem:[%s271 + $0x2c] sm:$0xf]
      %v305 = vld [vmem:[%s271 + $0x30] sm:$0xf]
      %v306 = vld [vmem:[%s271 + $0x34] sm:$0xf]
      %v307 = vld [vmem:[%s271 + $0x38] sm:$0xf]
      %v308 = vld [vmem:[%s271 + $0x3c] sm:$0xf]
      %v309 = vld [vmem:[%s271 + $0x40] sm:$0xf]
      %v310 = vld [vmem:[%s271 + $0x44] sm:$0xf]
      %v311 = vld [vmem:[%s271 + $0x48] sm:$0xf]
      %v312 = vld [vmem:[%s271 + $0x4c] sm:$0xf]
      %v313 = vld [vmem:[%s271 + $0x50] sm:$0xf]
      %v314 = vld [vmem:[%s271 + $0x54] sm:$0xf]
      %v315 = vld [vmem:[%s271 + $0x58] sm:$0xf]
      %v316 = vld [vmem:[%s271 + $0x5c] sm:$0xf]
      %v317 = vld [vmem:[%s271 + $0x60] sm:$0xf]
      %v318 = vld [vmem:[%s271 + $0x64] sm:$0xf]
      %v319 = vld [vmem:[%s271 + $0x68] sm:$0xf]
      %v320 = vld [vmem:[%s271 + $0x6c] sm:$0xf]
      %v321 = vld [vmem:[%s271 + $0x70] sm:$0xf]
      %v322 = vld [vmem:[%s271 + $0x74] sm:$0xf]
      %v323 = vld [vmem:[%s271 + $0x78] sm:$0xf]
      %v324 = vld [vmem:[%s271 + $0x7c] sm:$0xf]
      %v325 = vld [vmem:[%s271 + $0x80] sm:$0xf]
      %v326 = vld [vmem:[%s271 + $0x84] sm:$0xf]
      %v327 = vld [vmem:[%s271 + $0x88] sm:$0xf]
      %v328 = vld [vmem:[%s271 + $0x8c] sm:$0xf]
      %v329 = vld [vmem:[%s271 + $0x90] sm:$0xf]
      %v330 = vld [vmem:[%s271 + $0x94] sm:$0xf]
      %v331 = vld [vmem:[%s271 + $0x98] sm:$0xf]
      %v332 = vld [vmem:[%s271 + $0x9c] sm:$0xf]
      %v333 = vld [vmem:[%s271 + $0xa0] sm:$0xf]
      %v334 = vld [vmem:[%s271 + $0xa4] sm:$0xf]
      %v335 = vld [vmem:[%s271 + $0xa8] sm:$0xf]
      %v336 = vld [vmem:[%s271 + $0xac] sm:$0xf]
      %v337 = vld [vmem:[%s271 + $0xb0] sm:$0xf]
      %v338 = vld [vmem:[%s271 + $0xb4] sm:$0xf]
      %v339 = vld [vmem:[%s271 + $0xb8] sm:$0xf]
      %v340 = vld [vmem:[%s271 + $0xbc] sm:$0xf]
      %v341 = vld [vmem:[%s271 + $0xc0] sm:$0xf]
      %v342 = vld [vmem:[%s275] sm:$0xf]
      %v343 = vld [vmem:[%s275 + $0x4] sm:$0xf]
      %v392 = vunpack.c.l.b16 %v294
      %v393 = vunpack.c.l.b16 %v295
      %v394 = vunpack.c.l.b16 %v296
      %v395 = vunpack.c.l.b16 %v297
      %v396 = vunpack.c.l.b16 %v298
      %v397 = vunpack.c.l.b16 %v299
      %v398 = vunpack.c.l.b16 %v300
      %v399 = vunpack.c.l.b16 %v301
      %v400 = vunpack.c.l.b16 %v302
      %v401 = vunpack.c.l.b16 %v303
      %v402 = vunpack.c.l.b16 %v304
      %v403 = vunpack.c.l.b16 %v305
      %v404 = vunpack.c.l.b16 %v306
      %v405 = vunpack.c.l.b16 %v307
      %v406 = vunpack.c.l.b16 %v308
      %v407 = vunpack.c.l.b16 %v309
      %v408 = vunpack.c.l.b16 %v310
      %v409 = vunpack.c.l.b16 %v311
      %v410 = vunpack.c.l.b16 %v312
      %v411 = vunpack.c.l.b16 %v313
      %v412 = vunpack.c.l.b16 %v314
      %v413 = vunpack.c.l.b16 %v315
      %v414 = vunpack.c.l.b16 %v316
      %v415 = vunpack.c.l.b16 %v317
      %v416 = vunpack.c.l.b16 %v318
      %v417 = vunpack.c.l.b16 %v319
      %v418 = vunpack.c.l.b16 %v320
      %v419 = vunpack.c.l.b16 %v321
      %v420 = vunpack.c.l.b16 %v322
      %v421 = vunpack.c.l.b16 %v323
      %v422 = vunpack.c.l.b16 %v324
      %v423 = vunpack.c.l.b16 %v325
      %v424 = vunpack.c.l.b16 %v326
      %v425 = vunpack.c.l.b16 %v327
      %v426 = vunpack.c.l.b16 %v328
      %v427 = vunpack.c.l.b16 %v329
      %v428 = vunpack.c.l.b16 %v330
      %v429 = vunpack.c.l.b16 %v331
      %v430 = vunpack.c.l.b16 %v332
      %v431 = vunpack.c.l.b16 %v333
      %v432 = vunpack.c.l.b16 %v334
      %v433 = vunpack.c.l.b16 %v335
      %v434 = vunpack.c.l.b16 %v336
      %v435 = vunpack.c.l.b16 %v337
      %v436 = vunpack.c.l.b16 %v338
      %v437 = vunpack.c.l.b16 %v339
      %v438 = vunpack.c.l.b16 %v340
      %v439 = vunpack.c.l.b16 %v341
      %v440 = vpack.c.b16 %v393, %v392
      %v441 = vpack.c.b16 %v395, %v394
      %v442 = vpack.c.b16 %v397, %v396
      %v443 = vpack.c.b16 %v399, %v398
      %v444 = vpack.c.b16 %v401, %v400
      %v445 = vpack.c.b16 %v403, %v402
      %v446 = vpack.c.b16 %v405, %v404
      %v447 = vpack.c.b16 %v407, %v406
      %v448 = vpack.c.b16 %v409, %v408
      %v449 = vpack.c.b16 %v411, %v410
      %v450 = vpack.c.b16 %v413, %v412
      %v451 = vpack.c.b16 %v415, %v414
      %v452 = vpack.c.b16 %v417, %v416
      %v453 = vpack.c.b16 %v419, %v418
      %v454 = vpack.c.b16 %v421, %v420
      %v455 = vpack.c.b16 %v423, %v422
      %v456 = vpack.c.b16 %v425, %v424
      %v457 = vpack.c.b16 %v427, %v426
      %v458 = vpack.c.b16 %v429, %v428
      %v459 = vpack.c.b16 %v431, %v430
      %v460 = vpack.c.b16 %v433, %v432
      %v461 = vpack.c.b16 %v435, %v434
      %v462 = vpack.c.b16 %v437, %v436
      %v463 = vpack.c.b16 %v439, %v438
      %vm464 = vcmask 64512
      %v466 = vsel %vm464, %v440, 0
      %v469 = vsel %vm464, %v441, 0
      %v472 = vsel %vm464, %v442, 0
      %v475 = vsel %vm464, %v443, 0
      %v478 = vsel %vm464, %v444, 0
      %v481 = vsel %vm464, %v445, 0
      %v484 = vsel %vm464, %v446, 0
      %v487 = vsel %vm464, %v447, 0
      %v490 = vsel %vm464, %v448, 0
      %v493 = vsel %vm464, %v449, 0
      %v496 = vsel %vm464, %v450, 0
      %v499 = vsel %vm464, %v451, 0
      %v502 = vsel %vm464, %v452, 0
      %v505 = vsel %vm464, %v453, 0
      %v508 = vsel %vm464, %v454, 0
      %v511 = vsel %vm464, %v455, 0
      %v514 = vsel %vm464, %v456, 0
      %v517 = vsel %vm464, %v457, 0
      %v520 = vsel %vm464, %v458, 0
      %v523 = vsel %vm464, %v459, 0
      %v526 = vsel %vm464, %v460, 0
      %v529 = vsel %vm464, %v461, 0
      %v532 = vsel %vm464, %v462, 0
      %v535 = vsel %vm464, %v463, 0
      %vm537 = vcmask 1043456
      %v539 = vsel %vm537, %v343, 0
      %541 = vmatprep.subr.bf16.mxu0 0
      %542 = vmatpush1.bf16.msra.mxu0 0
      %543 = vmatprep.subr.bf16.mxu0 0
      %544 = vmatpush1.bf16.msra.mxu0 0
      %545 = vmatprep.subr.bf16.mxu0 0
      %546 = vmatpush1.bf16.msra.mxu0 0
      %547 = vmatprep.subr.bf16.mxu0 0
      %548 = vmatpush1.bf16.msra.mxu0 0
      %549 = vmatprep.subr.bf16.mxu0 0
      %550 = vmatpush1.bf16.msra.mxu0 0
      %551 = vmatprep.subr.bf16.mxu0 0
      %552 = vmatpush1.bf16.msra.mxu0 0
      %553 = vmatprep.subr.bf16.mxu0 0
      %554 = vmatpush1.bf16.msra.mxu0 0
      %555 = vmatprep.subr.bf16.mxu0 0
      %556 = vmatpush1.bf16.msra.mxu0 %v539
      %557 = vmatprep.subr.bf16.mxu0 0
      %558 = vmatpush2.bf16.msra.mxu0 0
      %559 = vmatprep.subr.bf16.mxu0 0
      %560 = vmatpush2.bf16.msra.mxu0 0
      %561 = vmatprep.subr.bf16.mxu0 0
      %562 = vmatpush2.bf16.msra.mxu0 0
      %563 = vmatprep.subr.bf16.mxu0 0
      %564 = vmatpush2.bf16.msra.mxu0 0
      %565 = vmatprep.subr.bf16.mxu0 0
      %566 = vmatpush2.bf16.msra.mxu0 0
      %567 = vmatprep.subr.bf16.mxu0 0
      %568 = vmatpush2.bf16.msra.mxu0 0
      %569 = vmatprep.subr.bf16.mxu0 0
      %570 = vmatpush2.bf16.msra.mxu0 0
      %571 = vmatprep.subr.bf16.mxu0 0
      %572 = vmatpush2.bf16.msra.mxu0 0
      %573 = vmatprep.mubr.bf16.mxu0 0
      %574 = vmatmul.mubr.bf16.gmra.mxu0 %v466
      %v575 = vpop.f32.mrf.mxu0
      %v576 = vadd.f32 0.0, %v575
      %v577 = vpop.f32.mrf.mxu0
      %v578 = vpop.f32.mrf.mxu0
      %v579 = vadd.f32 0.0, %v578
      %v580 = vpop.f32.mrf.mxu0
      %581 = vmatprep.mubr.bf16.mxu0 0
      %582 = vmatmul.mubr.bf16.gmra.mxu0 %v469
      %v583 = vpop.f32.mrf.mxu0
      %v584 = vadd.f32 0.0, %v583
      %v585 = vpop.f32.mrf.mxu0
      %v586 = vpop.f32.mrf.mxu0
      %v587 = vadd.f32 0.0, %v586
      %v588 = vpop.f32.mrf.mxu0
      %589 = vmatprep.mubr.bf16.mxu0 0
      %590 = vmatmul.mubr.bf16.gmra.mxu0 %v472
      %v591 = vpop.f32.mrf.mxu0
      %v592 = vadd.f32 0.0, %v591
      %v593 = vpop.f32.mrf.mxu0
      %v594 = vpop.f32.mrf.mxu0
      %v595 = vadd.f32 0.0, %v594
      %v596 = vpop.f32.mrf.mxu0
      %597 = vmatprep.mubr.bf16.mxu0 0
      %598 = vmatmul.mubr.bf16.gmra.mxu0 %v475
      %v599 = vpop.f32.mrf.mxu0
      %v600 = vadd.f32 0.0, %v599
      %v601 = vpop.f32.mrf.mxu0
      %v602 = vpop.f32.mrf.mxu0
      %v603 = vadd.f32 0.0, %v602
      %v604 = vpop.f32.mrf.mxu0
      %605 = vmatprep.mubr.bf16.mxu0 0
      %606 = vmatmul.mubr.bf16.gmra.mxu0 %v478
      %v607 = vpop.f32.mrf.mxu0
      %v608 = vadd.f32 0.0, %v607
      %v609 = vpop.f32.mrf.mxu0
      %v610 = vpop.f32.mrf.mxu0
      %v611 = vadd.f32 0.0, %v610
      %v612 = vpop.f32.mrf.mxu0
      %613 = vmatprep.mubr.bf16.mxu0 0
      %614 = vmatmul.mubr.bf16.gmra.mxu0 %v481
      %v615 = vpop.f32.mrf.mxu0
      %v616 = vadd.f32 0.0, %v615
      %v617 = vpop.f32.mrf.mxu0
      %v618 = vpop.f32.mrf.mxu0
      %v619 = vadd.f32 0.0, %v618
      %v620 = vpop.f32.mrf.mxu0
      %621 = vmatprep.mubr.bf16.mxu0 0
      %622 = vmatmul.mubr.bf16.gmra.mxu0 %v484
      %v623 = vpop.f32.mrf.mxu0
      %v624 = vadd.f32 0.0, %v623
      %v625 = vpop.f32.mrf.mxu0
      %v626 = vpop.f32.mrf.mxu0
      %v627 = vadd.f32 0.0, %v626
      %v628 = vpop.f32.mrf.mxu0
      %629 = vmatprep.mubr.bf16.mxu0 0
      %630 = vmatmul.mubr.bf16.gmra.mxu0 %v487
      %v631 = vpop.f32.mrf.mxu0
      %v632 = vadd.f32 0.0, %v631
      %v633 = vpop.f32.mrf.mxu0
      %v634 = vpop.f32.mrf.mxu0
      %v635 = vadd.f32 0.0, %v634
      %v636 = vpop.f32.mrf.mxu0
      %637 = vmatprep.mubr.bf16.mxu0 0
      %638 = vmatmul.mubr.bf16.gmra.mxu0 %v490
      %v639 = vpop.f32.mrf.mxu0
      %v640 = vadd.f32 0.0, %v639
      %v641 = vpop.f32.mrf.mxu0
      %v642 = vpop.f32.mrf.mxu0
      %v643 = vadd.f32 0.0, %v642
      %v644 = vpop.f32.mrf.mxu0
      %645 = vmatprep.mubr.bf16.mxu0 0
      %646 = vmatmul.mubr.bf16.gmra.mxu0 %v493
      %v647 = vpop.f32.mrf.mxu0
      %v648 = vadd.f32 0.0, %v647
      %v649 = vpop.f32.mrf.mxu0
      %v650 = vpop.f32.mrf.mxu0
      %v651 = vadd.f32 0.0, %v650
      %v652 = vpop.f32.mrf.mxu0
      %653 = vmatprep.mubr.bf16.mxu0 0
      %654 = vmatmul.mubr.bf16.gmra.mxu0 %v496
      %v655 = vpop.f32.mrf.mxu0
      %v656 = vadd.f32 0.0, %v655
      %v657 = vpop.f32.mrf.mxu0
      %v658 = vpop.f32.mrf.mxu0
      %v659 = vadd.f32 0.0, %v658
      %v660 = vpop.f32.mrf.mxu0
      %661 = vmatprep.mubr.bf16.mxu0 0
      %662 = vmatmul.mubr.bf16.gmra.mxu0 %v499
      %v663 = vpop.f32.mrf.mxu0
      %v664 = vadd.f32 0.0, %v663
      %v665 = vpop.f32.mrf.mxu0
      %v666 = vpop.f32.mrf.mxu0
      %v667 = vadd.f32 0.0, %v666
      %v668 = vpop.f32.mrf.mxu0
      %669 = vmatprep.mubr.bf16.mxu0 0
      %670 = vmatmul.mubr.bf16.gmra.mxu0 %v502
      %v671 = vpop.f32.mrf.mxu0
      %v672 = vadd.f32 0.0, %v671
      %v673 = vpop.f32.mrf.mxu0
      %v674 = vpop.f32.mrf.mxu0
      %v675 = vadd.f32 0.0, %v674
      %v676 = vpop.f32.mrf.mxu0
      %677 = vmatprep.mubr.bf16.mxu0 0
      %678 = vmatmul.mubr.bf16.gmra.mxu0 %v505
      %v679 = vpop.f32.mrf.mxu0
      %v680 = vadd.f32 0.0, %v679
      %v681 = vpop.f32.mrf.mxu0
      %v682 = vpop.f32.mrf.mxu0
      %v683 = vadd.f32 0.0, %v682
      %v684 = vpop.f32.mrf.mxu0
      %685 = vmatprep.mubr.bf16.mxu0 0
      %686 = vmatmul.mubr.bf16.gmra.mxu0 %v508
      %v687 = vpop.f32.mrf.mxu0
      %v688 = vadd.f32 0.0, %v687
      %v689 = vpop.f32.mrf.mxu0
      %v690 = vpop.f32.mrf.mxu0
      %v691 = vadd.f32 0.0, %v690
      %v692 = vpop.f32.mrf.mxu0
      %693 = vmatprep.mubr.bf16.mxu0 0
      %694 = vmatmul.mubr.bf16.gmra.mxu0 %v511
      %v695 = vpop.f32.mrf.mxu0
      %v696 = vadd.f32 0.0, %v695
      %v697 = vpop.f32.mrf.mxu0
      %v698 = vpop.f32.mrf.mxu0
      %v699 = vadd.f32 0.0, %v698
      %v700 = vpop.f32.mrf.mxu0
      %701 = vmatprep.mubr.bf16.mxu0 0
      %702 = vmatmul.mubr.bf16.gmra.mxu0 %v514
      %v703 = vpop.f32.mrf.mxu0
      %v704 = vadd.f32 0.0, %v703
      %v705 = vpop.f32.mrf.mxu0
      %v706 = vpop.f32.mrf.mxu0
      %v707 = vadd.f32 0.0, %v706
      %v708 = vpop.f32.mrf.mxu0
      %709 = vmatprep.mubr.bf16.mxu0 0
      %710 = vmatmul.mubr.bf16.gmra.mxu0 %v517
      %v711 = vpop.f32.mrf.mxu0
      %v712 = vadd.f32 0.0, %v711
      %v713 = vpop.f32.mrf.mxu0
      %v714 = vpop.f32.mrf.mxu0
      %v715 = vadd.f32 0.0, %v714
      %v716 = vpop.f32.mrf.mxu0
      %717 = vmatprep.mubr.bf16.mxu0 0
      %718 = vmatmul.mubr.bf16.gmra.mxu0 %v520
      %v719 = vpop.f32.mrf.mxu0
      %v720 = vadd.f32 0.0, %v719
      %v721 = vpop.f32.mrf.mxu0
      %v722 = vpop.f32.mrf.mxu0
      %v723 = vadd.f32 0.0, %v722
      %v724 = vpop.f32.mrf.mxu0
      %725 = vmatprep.mubr.bf16.mxu0 0
      %726 = vmatmul.mubr.bf16.gmra.mxu0 %v523
      %v727 = vpop.f32.mrf.mxu0
      %v728 = vadd.f32 0.0, %v727
      %v729 = vpop.f32.mrf.mxu0
      %v730 = vpop.f32.mrf.mxu0
      %v731 = vadd.f32 0.0, %v730
      %v732 = vpop.f32.mrf.mxu0
      %733 = vmatprep.mubr.bf16.mxu0 0
      %734 = vmatmul.mubr.bf16.gmra.mxu0 %v526
      %v735 = vpop.f32.mrf.mxu0
      %v736 = vadd.f32 0.0, %v735
      %v737 = vpop.f32.mrf.mxu0
      %v738 = vpop.f32.mrf.mxu0
      %v739 = vadd.f32 0.0, %v738
      %v740 = vpop.f32.mrf.mxu0
      %741 = vmatprep.mubr.bf16.mxu0 0
      %742 = vmatmul.mubr.bf16.gmra.mxu0 %v529
      %v743 = vpop.f32.mrf.mxu0
      %v744 = vadd.f32 0.0, %v743
      %v745 = vpop.f32.mrf.mxu0
      %v746 = vpop.f32.mrf.mxu0
      %v747 = vadd.f32 0.0, %v746
      %v748 = vpop.f32.mrf.mxu0
      %749 = vmatprep.mubr.bf16.mxu0 0
      %750 = vmatmul.mubr.bf16.gmra.mxu0 %v532
      %v751 = vpop.f32.mrf.mxu0
      %v752 = vadd.f32 0.0, %v751
      %v753 = vpop.f32.mrf.mxu0
      %v754 = vpop.f32.mrf.mxu0
      %v755 = vadd.f32 0.0, %v754
      %v756 = vpop.f32.mrf.mxu0
      %757 = vmatprep.mubr.bf16.mxu0 0
      %758 = vmatmul.mubr.bf16.gmra.mxu0 %v535
      %v759 = vpop.f32.mrf.mxu0
      %v760 = vadd.f32 0.0, %v759
      %v761 = vpop.f32.mrf.mxu0
      %v762 = vpop.f32.mrf.mxu0
      %v763 = vadd.f32 0.0, %v762
      %v764 = vpop.f32.mrf.mxu0
      %765 = vdwg.mxu0
      %v767 = vunpack.c.l.b16 %v293
      %v768 = vpack.c.b16 %v392, %v767
      %v769 = vpack.c.b16 %v394, %v393
      %v770 = vpack.c.b16 %v396, %v395
      %v771 = vpack.c.b16 %v398, %v397
      %v772 = vpack.c.b16 %v400, %v399
      %v773 = vpack.c.b16 %v402, %v401
      %v774 = vpack.c.b16 %v404, %v403
      %v775 = vpack.c.b16 %v406, %v405
      %v776 = vpack.c.b16 %v408, %v407
      %v777 = vpack.c.b16 %v410, %v409
      %v778 = vpack.c.b16 %v412, %v411
      %v779 = vpack.c.b16 %v414, %v413
      %v780 = vpack.c.b16 %v416, %v415
      %v781 = vpack.c.b16 %v418, %v417
      %v782 = vpack.c.b16 %v420, %v419
      %v783 = vpack.c.b16 %v422, %v421
      %v784 = vpack.c.b16 %v424, %v423
      %v785 = vpack.c.b16 %v426, %v425
      %v786 = vpack.c.b16 %v428, %v427
      %v787 = vpack.c.b16 %v430, %v429
      %v788 = vpack.c.b16 %v432, %v431
      %v789 = vpack.c.b16 %v434, %v433
      %v790 = vpack.c.b16 %v436, %v435
      %v791 = vpack.c.b16 %v438, %v437
      %v792 = vpack.c.b16 %v439, %v439
      %vm793 = vsmask.f32 4352
      %v795 = vshrl.u32 %v768, 16
      %v797 = vrot.slane %v795, 3
      %v798 = vshll.u32 %v768, 16
      %v800 = vrot.slane %v798, 4
      %v801 = vor.u32 %v797, %v800
      %v803 = vshrl.u32 %v769, 16
      %v805 = vrot.slane %v803, 3
      %v806 = vshll.u32 %v769, 16
      %v808 = vrot.slane %v806, 4
      %v809 = vor.u32 %v805, %v808
      %v810 = vsel %vm793, %v801, %v809
      %v812 = vshrl.u32 %v770, 16
      %v814 = vrot.slane %v812, 3
      %v815 = vshll.u32 %v770, 16
      %v817 = vrot.slane %v815, 4
      %v818 = vor.u32 %v814, %v817
      %v819 = vsel %vm793, %v809, %v818
      %v821 = vshrl.u32 %v771, 16
      %v823 = vrot.slane %v821, 3
      %v824 = vshll.u32 %v771, 16
      %v826 = vrot.slane %v824, 4
      %v827 = vor.u32 %v823, %v826
      %v828 = vsel %vm793, %v818, %v827
      %v830 = vshrl.u32 %v772, 16
      %v832 = vrot.slane %v830, 3
      %v833 = vshll.u32 %v772, 16
      %v835 = vrot.slane %v833, 4
      %v836 = vor.u32 %v832, %v835
      %v837 = vsel %vm793, %v827, %v836
      %v839 = vshrl.u32 %v773, 16
      %v841 = vrot.slane %v839, 3
      %v842 = vshll.u32 %v773, 16
      %v844 = vrot.slane %v842, 4
      %v845 = vor.u32 %v841, %v844
      %v846 = vsel %vm793, %v836, %v845
      %v848 = vshrl.u32 %v774, 16
      %v850 = vrot.slane %v848, 3
      %v851 = vshll.u32 %v774, 16
      %v853 = vrot.slane %v851, 4
      %v854 = vor.u32 %v850, %v853
      %v855 = vsel %vm793, %v845, %v854
      %v857 = vshrl.u32 %v775, 16
      %v859 = vrot.slane %v857, 3
      %v860 = vshll.u32 %v775, 16
      %v862 = vrot.slane %v860, 4
      %v863 = vor.u32 %v859, %v862
      %v864 = vsel %vm793, %v854, %v863
      %v866 = vshrl.u32 %v776, 16
      %v868 = vrot.slane %v866, 3
      %v869 = vshll.u32 %v776, 16
      %v871 = vrot.slane %v869, 4
      %v872 = vor.u32 %v868, %v871
      %v873 = vsel %vm793, %v863, %v872
      %v875 = vshrl.u32 %v777, 16
      %v877 = vrot.slane %v875, 3
      %v878 = vshll.u32 %v777, 16
      %v880 = vrot.slane %v878, 4
      %v881 = vor.u32 %v877, %v880
      %v882 = vsel %vm793, %v872, %v881
      %v884 = vshrl.u32 %v778, 16
      %v886 = vrot.slane %v884, 3
      %v887 = vshll.u32 %v778, 16
      %v889 = vrot.slane %v887, 4
      %v890 = vor.u32 %v886, %v889
      %v891 = vsel %vm793, %v881, %v890
      %v893 = vshrl.u32 %v779, 16
      %v895 = vrot.slane %v893, 3
      %v896 = vshll.u32 %v779, 16
      %v898 = vrot.slane %v896, 4
      %v899 = vor.u32 %v895, %v898
      %v900 = vsel %vm793, %v890, %v899
      %v902 = vshrl.u32 %v780, 16
      %v904 = vrot.slane %v902, 3
      %v905 = vshll.u32 %v780, 16
      %v907 = vrot.slane %v905, 4
      %v908 = vor.u32 %v904, %v907
      %v909 = vsel %vm793, %v899, %v908
      %v911 = vshrl.u32 %v781, 16
      %v913 = vrot.slane %v911, 3
      %v914 = vshll.u32 %v781, 16
      %v916 = vrot.slane %v914, 4
      %v917 = vor.u32 %v913, %v916
      %v918 = vsel %vm793, %v908, %v917
      %v920 = vshrl.u32 %v782, 16
      %v922 = vrot.slane %v920, 3
      %v923 = vshll.u32 %v782, 16
      %v925 = vrot.slane %v923, 4
      %v926 = vor.u32 %v922, %v925
      %v927 = vsel %vm793, %v917, %v926
      %v929 = vshrl.u32 %v783, 16
      %v931 = vrot.slane %v929, 3
      %v932 = vshll.u32 %v783, 16
      %v934 = vrot.slane %v932, 4
      %v935 = vor.u32 %v931, %v934
      %v936 = vsel %vm793, %v926, %v935
      %v938 = vshrl.u32 %v784, 16
      %v940 = vrot.slane %v938, 3
      %v941 = vshll.u32 %v784, 16
      %v943 = vrot.slane %v941, 4
      %v944 = vor.u32 %v940, %v943
      %v945 = vsel %vm793, %v935, %v944
      %v947 = vshrl.u32 %v785, 16
      %v949 = vrot.slane %v947, 3
      %v950 = vshll.u32 %v785, 16
      %v952 = vrot.slane %v950, 4
      %v953 = vor.u32 %v949, %v952
      %v954 = vsel %vm793, %v944, %v953
      %v956 = vshrl.u32 %v786, 16
      %v958 = vrot.slane %v956, 3
      %v959 = vshll.u32 %v786, 16
      %v961 = vrot.slane %v959, 4
      %v962 = vor.u32 %v958, %v961
      %v963 = vsel %vm793, %v953, %v962
      %v965 = vshrl.u32 %v787, 16
      %v967 = vrot.slane %v965, 3
      %v968 = vshll.u32 %v787, 16
      %v970 = vrot.slane %v968, 4
      %v971 = vor.u32 %v967, %v970
      %v972 = vsel %vm793, %v962, %v971
      %v974 = vshrl.u32 %v788, 16
      %v976 = vrot.slane %v974, 3
      %v977 = vshll.u32 %v788, 16
      %v979 = vrot.slane %v977, 4
      %v980 = vor.u32 %v976, %v979
      %v981 = vsel %vm793, %v971, %v980
      %v983 = vshrl.u32 %v789, 16
      %v985 = vrot.slane %v983, 3
      %v986 = vshll.u32 %v789, 16
      %v988 = vrot.slane %v986, 4
      %v989 = vor.u32 %v985, %v988
      %v990 = vsel %vm793, %v980, %v989
      %v992 = vshrl.u32 %v790, 16
      %v994 = vrot.slane %v992, 3
      %v995 = vshll.u32 %v790, 16
      %v997 = vrot.slane %v995, 4
      %v998 = vor.u32 %v994, %v997
      %v999 = vsel %vm793, %v989, %v998
      %v1001 = vshrl.u32 %v791, 16
      %v1003 = vrot.slane %v1001, 3
      %v1004 = vshll.u32 %v791, 16
      %v1006 = vrot.slane %v1004, 4
      %v1007 = vor.u32 %v1003, %v1006
      %v1008 = vsel %vm793, %v998, %v1007
      %v1010 = vshrl.u32 %v792, 16
      %v1012 = vrot.slane %v1010, 3
      %v1013 = vshll.u32 %v792, 16
      %v1015 = vrot.slane %v1013, 4
      %v1016 = vor.u32 %v1012, %v1015
      %v1017 = vsel %vm793, %v1007, %v1016
      %v1019 = vsel %vm464, %v810, 0
      %v1022 = vsel %vm464, %v819, 0
      %v1025 = vsel %vm464, %v828, 0
      %v1028 = vsel %vm464, %v837, 0
      %v1031 = vsel %vm464, %v846, 0
      %v1034 = vsel %vm464, %v855, 0
      %v1037 = vsel %vm464, %v864, 0
      %v1040 = vsel %vm464, %v873, 0
      %v1043 = vsel %vm464, %v882, 0
      %v1046 = vsel %vm464, %v891, 0
      %v1049 = vsel %vm464, %v900, 0
      %v1052 = vsel %vm464, %v909, 0
      %v1055 = vsel %vm464, %v918, 0
      %v1058 = vsel %vm464, %v927, 0
      %v1061 = vsel %vm464, %v936, 0
      %v1064 = vsel %vm464, %v945, 0
      %v1067 = vsel %vm464, %v954, 0
      %v1070 = vsel %vm464, %v963, 0
      %v1073 = vsel %vm464, %v972, 0
      %v1076 = vsel %vm464, %v981, 0
      %v1079 = vsel %vm464, %v990, 0
      %v1082 = vsel %vm464, %v999, 0
      %v1085 = vsel %vm464, %v1008, 0
      %v1088 = vsel %vm464, %v1017, 0
      %v1091 = vsel %vm537, %v342, 0
      %1093 = vmatprep.subr.bf16.mxu0 0
      %1094 = vmatpush1.bf16.msra.mxu0 0
      %1095 = vmatprep.subr.bf16.mxu0 0
      %1096 = vmatpush1.bf16.msra.mxu0 0
      %1097 = vmatprep.subr.bf16.mxu0 0
      %1098 = vmatpush1.bf16.msra.mxu0 0
      %1099 = vmatprep.subr.bf16.mxu0 0
      %1100 = vmatpush1.bf16.msra.mxu0 0
      %1101 = vmatprep.subr.bf16.mxu0 0
      %1102 = vmatpush1.bf16.msra.mxu0 0
      %1103 = vmatprep.subr.bf16.mxu0 0
      %1104 = vmatpush1.bf16.msra.mxu0 0
      %1105 = vmatprep.subr.bf16.mxu0 0
      %1106 = vmatpush1.bf16.msra.mxu0 0
      %1107 = vmatprep.subr.bf16.mxu0 0
      %1108 = vmatpush1.bf16.msra.mxu0 %v1091
      %1109 = vmatprep.subr.bf16.mxu0 0
      %1110 = vmatpush2.bf16.msra.mxu0 0
      %1111 = vmatprep.subr.bf16.mxu0 0
      %1112 = vmatpush2.bf16.msra.mxu0 0
      %1113 = vmatprep.subr.bf16.mxu0 0
      %1114 = vmatpush2.bf16.msra.mxu0 0
      %1115 = vmatprep.subr.bf16.mxu0 0
      %1116 = vmatpush2.bf16.msra.mxu0 0
      %1117 = vmatprep.subr.bf16.mxu0 0
      %1118 = vmatpush2.bf16.msra.mxu0 0
      %1119 = vmatprep.subr.bf16.mxu0 0
      %1120 = vmatpush2.bf16.msra.mxu0 0
      %1121 = vmatprep.subr.bf16.mxu0 0
      %1122 = vmatpush2.bf16.msra.mxu0 0
      %1123 = vmatprep.subr.bf16.mxu0 0
      %1124 = vmatpush2.bf16.msra.mxu0 0
      %1125 = vmatprep.mubr.bf16.mxu0 0
      %1126 = vmatmul.mubr.bf16.gmra.mxu0 %v1019
      %v1127 = vpop.f32.mrf.mxu0
      %v1128 = vadd.f32 %v576, %v1127
      %v1129 = vpop.f32.mrf.mxu0
      %v1130 = vpop.f32.mrf.mxu0
      %v1131 = vadd.f32 %v579, %v1130
      %v1132 = vpop.f32.mrf.mxu0
      %1133 = vmatprep.mubr.bf16.mxu0 0
      %1134 = vmatmul.mubr.bf16.gmra.mxu0 %v1022
      %v1135 = vpop.f32.mrf.mxu0
      %v1136 = vadd.f32 %v584, %v1135
      %v1137 = vpop.f32.mrf.mxu0
      %v1138 = vpop.f32.mrf.mxu0
      %v1139 = vadd.f32 %v587, %v1138
      %v1140 = vpop.f32.mrf.mxu0
      %1141 = vmatprep.mubr.bf16.mxu0 0
      %1142 = vmatmul.mubr.bf16.gmra.mxu0 %v1025
      %v1143 = vpop.f32.mrf.mxu0
      %v1144 = vadd.f32 %v592, %v1143
      %v1145 = vpop.f32.mrf.mxu0
      %v1146 = vpop.f32.mrf.mxu0
      %v1147 = vadd.f32 %v595, %v1146
      %v1148 = vpop.f32.mrf.mxu0
      %1149 = vmatprep.mubr.bf16.mxu0 0
      %1150 = vmatmul.mubr.bf16.gmra.mxu0 %v1028
      %v1151 = vpop.f32.mrf.mxu0
      %v1152 = vadd.f32 %v600, %v1151
      %v1153 = vpop.f32.mrf.mxu0
      %v1154 = vpop.f32.mrf.mxu0
      %v1155 = vadd.f32 %v603, %v1154
      %v1156 = vpop.f32.mrf.mxu0
      %1157 = vmatprep.mubr.bf16.mxu0 0
      %1158 = vmatmul.mubr.bf16.gmra.mxu0 %v1031
      %v1159 = vpop.f32.mrf.mxu0
      %v1160 = vadd.f32 %v608, %v1159
      %v1161 = vpop.f32.mrf.mxu0
      %v1162 = vpop.f32.mrf.mxu0
      %v1163 = vadd.f32 %v611, %v1162
      %v1164 = vpop.f32.mrf.mxu0
      %1165 = vmatprep.mubr.bf16.mxu0 0
      %1166 = vmatmul.mubr.bf16.gmra.mxu0 %v1034
      %v1167 = vpop.f32.mrf.mxu0
      %v1168 = vadd.f32 %v616, %v1167
      %v1169 = vpop.f32.mrf.mxu0
      %v1170 = vpop.f32.mrf.mxu0
      %v1171 = vadd.f32 %v619, %v1170
      %v1172 = vpop.f32.mrf.mxu0
      %1173 = vmatprep.mubr.bf16.mxu0 0
      %1174 = vmatmul.mubr.bf16.gmra.mxu0 %v1037
      %v1175 = vpop.f32.mrf.mxu0
      %v1176 = vadd.f32 %v624, %v1175
      %v1177 = vpop.f32.mrf.mxu0
      %v1178 = vpop.f32.mrf.mxu0
      %v1179 = vadd.f32 %v627, %v1178
      %v1180 = vpop.f32.mrf.mxu0
      %1181 = vmatprep.mubr.bf16.mxu0 0
      %1182 = vmatmul.mubr.bf16.gmra.mxu0 %v1040
      %v1183 = vpop.f32.mrf.mxu0
      %v1184 = vadd.f32 %v632, %v1183
      %v1185 = vpop.f32.mrf.mxu0
      %v1186 = vpop.f32.mrf.mxu0
      %v1187 = vadd.f32 %v635, %v1186
      %v1188 = vpop.f32.mrf.mxu0
      %1189 = vmatprep.mubr.bf16.mxu0 0
      %1190 = vmatmul.mubr.bf16.gmra.mxu0 %v1043
      %v1191 = vpop.f32.mrf.mxu0
      %v1192 = vadd.f32 %v640, %v1191
      %v1193 = vpop.f32.mrf.mxu0
      %v1194 = vpop.f32.mrf.mxu0
      %v1195 = vadd.f32 %v643, %v1194
      %v1196 = vpop.f32.mrf.mxu0
      %1197 = vmatprep.mubr.bf16.mxu0 0
      %1198 = vmatmul.mubr.bf16.gmra.mxu0 %v1046
      %v1199 = vpop.f32.mrf.mxu0
      %v1200 = vadd.f32 %v648, %v1199
      %v1201 = vpop.f32.mrf.mxu0
      %v1202 = vpop.f32.mrf.mxu0
      %v1203 = vadd.f32 %v651, %v1202
      %v1204 = vpop.f32.mrf.mxu0
      %1205 = vmatprep.mubr.bf16.mxu0 0
      %1206 = vmatmul.mubr.bf16.gmra.mxu0 %v1049
      %v1207 = vpop.f32.mrf.mxu0
      %v1208 = vadd.f32 %v656, %v1207
      %v1209 = vpop.f32.mrf.mxu0
      %v1210 = vpop.f32.mrf.mxu0
      %v1211 = vadd.f32 %v659, %v1210
      %v1212 = vpop.f32.mrf.mxu0
      %1213 = vmatprep.mubr.bf16.mxu0 0
      %1214 = vmatmul.mubr.bf16.gmra.mxu0 %v1052
      %v1215 = vpop.f32.mrf.mxu0
      %v1216 = vadd.f32 %v664, %v1215
      %v1217 = vpop.f32.mrf.mxu0
      %v1218 = vpop.f32.mrf.mxu0
      %v1219 = vadd.f32 %v667, %v1218
      %v1220 = vpop.f32.mrf.mxu0
      %1221 = vmatprep.mubr.bf16.mxu0 0
      %1222 = vmatmul.mubr.bf16.gmra.mxu0 %v1055
      %v1223 = vpop.f32.mrf.mxu0
      %v1224 = vadd.f32 %v672, %v1223
      %v1225 = vpop.f32.mrf.mxu0
      %v1226 = vpop.f32.mrf.mxu0
      %v1227 = vadd.f32 %v675, %v1226
      %v1228 = vpop.f32.mrf.mxu0
      %1229 = vmatprep.mubr.bf16.mxu0 0
      %1230 = vmatmul.mubr.bf16.gmra.mxu0 %v1058
      %v1231 = vpop.f32.mrf.mxu0
      %v1232 = vadd.f32 %v680, %v1231
      %v1233 = vpop.f32.mrf.mxu0
      %v1234 = vpop.f32.mrf.mxu0
      %v1235 = vadd.f32 %v683, %v1234
      %v1236 = vpop.f32.mrf.mxu0
      %1237 = vmatprep.mubr.bf16.mxu0 0
      %1238 = vmatmul.mubr.bf16.gmra.mxu0 %v1061
      %v1239 = vpop.f32.mrf.mxu0
      %v1240 = vadd.f32 %v688, %v1239
      %v1241 = vpop.f32.mrf.mxu0
      %v1242 = vpop.f32.mrf.mxu0
      %v1243 = vadd.f32 %v691, %v1242
      %v1244 = vpop.f32.mrf.mxu0
      %1245 = vmatprep.mubr.bf16.mxu0 0
      %1246 = vmatmul.mubr.bf16.gmra.mxu0 %v1064
      %v1247 = vpop.f32.mrf.mxu0
      %v1248 = vadd.f32 %v696, %v1247
      %v1249 = vpop.f32.mrf.mxu0
      %v1250 = vpop.f32.mrf.mxu0
      %v1251 = vadd.f32 %v699, %v1250
      %v1252 = vpop.f32.mrf.mxu0
      %1253 = vmatprep.mubr.bf16.mxu0 0
      %1254 = vmatmul.mubr.bf16.gmra.mxu0 %v1067
      %v1255 = vpop.f32.mrf.mxu0
      %v1256 = vadd.f32 %v704, %v1255
      %v1257 = vpop.f32.mrf.mxu0
      %v1258 = vpop.f32.mrf.mxu0
      %v1259 = vadd.f32 %v707, %v1258
      %v1260 = vpop.f32.mrf.mxu0
      %1261 = vmatprep.mubr.bf16.mxu0 0
      %1262 = vmatmul.mubr.bf16.gmra.mxu0 %v1070
      %v1263 = vpop.f32.mrf.mxu0
      %v1264 = vadd.f32 %v712, %v1263
      %v1265 = vpop.f32.mrf.mxu0
      %v1266 = vpop.f32.mrf.mxu0
      %v1267 = vadd.f32 %v715, %v1266
      %v1268 = vpop.f32.mrf.mxu0
      %1269 = vmatprep.mubr.bf16.mxu0 0
      %1270 = vmatmul.mubr.bf16.gmra.mxu0 %v1073
      %v1271 = vpop.f32.mrf.mxu0
      %v1272 = vadd.f32 %v720, %v1271
      %v1273 = vpop.f32.mrf.mxu0
      %v1274 = vpop.f32.mrf.mxu0
      %v1275 = vadd.f32 %v723, %v1274
      %v1276 = vpop.f32.mrf.mxu0
      %1277 = vmatprep.mubr.bf16.mxu0 0
      %1278 = vmatmul.mubr.bf16.gmra.mxu0 %v1076
      %v1279 = vpop.f32.mrf.mxu0
      %v1280 = vadd.f32 %v728, %v1279
      %v1281 = vpop.f32.mrf.mxu0
      %v1282 = vpop.f32.mrf.mxu0
      %v1283 = vadd.f32 %v731, %v1282
      %v1284 = vpop.f32.mrf.mxu0
      %1285 = vmatprep.mubr.bf16.mxu0 0
      %1286 = vmatmul.mubr.bf16.gmra.mxu0 %v1079
      %v1287 = vpop.f32.mrf.mxu0
      %v1288 = vadd.f32 %v736, %v1287
      %v1289 = vpop.f32.mrf.mxu0
      %v1290 = vpop.f32.mrf.mxu0
      %v1291 = vadd.f32 %v739, %v1290
      %v1292 = vpop.f32.mrf.mxu0
      %1293 = vmatprep.mubr.bf16.mxu0 0
      %1294 = vmatmul.mubr.bf16.gmra.mxu0 %v1082
      %v1295 = vpop.f32.mrf.mxu0
      %v1296 = vadd.f32 %v744, %v1295
      %v1297 = vpop.f32.mrf.mxu0
      %v1298 = vpop.f32.mrf.mxu0
      %v1299 = vadd.f32 %v747, %v1298
      %v1300 = vpop.f32.mrf.mxu0
      %1301 = vmatprep.mubr.bf16.mxu0 0
      %1302 = vmatmul.mubr.bf16.gmra.mxu0 %v1085
      %v1303 = vpop.f32.mrf.mxu0
      %v1304 = vadd.f32 %v752, %v1303
      %v1305 = vpop.f32.mrf.mxu0
      %v1306 = vpop.f32.mrf.mxu0
      %v1307 = vadd.f32 %v755, %v1306
      %v1308 = vpop.f32.mrf.mxu0
      %1309 = vmatprep.mubr.bf16.mxu0 0
      %1310 = vmatmul.mubr.bf16.gmra.mxu0 %v1088
      %v1311 = vpop.f32.mrf.mxu0
      %v1312 = vadd.f32 %v760, %v1311
      %v1313 = vpop.f32.mrf.mxu0
      %v1314 = vpop.f32.mrf.mxu0
      %v1315 = vadd.f32 %v763, %v1314
      %v1316 = vpop.f32.mrf.mxu0
      %1317 = vdwg.mxu0
      %v1318 = vld [vmem:[%s271 + $0x4] sm:$0xf]
      %v1319 = vld [vmem:[%s271 + $0x8] sm:$0xf]
      %v1320 = vld [vmem:[%s271 + $0xc] sm:$0xf]
      %v1321 = vld [vmem:[%s271 + $0x10] sm:$0xf]
      %v1322 = vld [vmem:[%s271 + $0x14] sm:$0xf]
      %v1323 = vld [vmem:[%s271 + $0x18] sm:$0xf]
      %v1324 = vld [vmem:[%s271 + $0x1c] sm:$0xf]
      %v1325 = vld [vmem:[%s271 + $0x20] sm:$0xf]
      %v1326 = vld [vmem:[%s271 + $0x24] sm:$0xf]
      %v1327 = vld [vmem:[%s271 + $0x28] sm:$0xf]
      %v1328 = vld [vmem:[%s271 + $0x2c] sm:$0xf]
      %v1329 = vld [vmem:[%s271 + $0x30] sm:$0xf]
      %v1330 = vld [vmem:[%s271 + $0x34] sm:$0xf]
      %v1331 = vld [vmem:[%s271 + $0x38] sm:$0xf]
      %v1332 = vld [vmem:[%s271 + $0x3c] sm:$0xf]
      %v1333 = vld [vmem:[%s271 + $0x40] sm:$0xf]
      %v1334 = vld [vmem:[%s271 + $0x44] sm:$0xf]
      %v1335 = vld [vmem:[%s271 + $0x48] sm:$0xf]
      %v1336 = vld [vmem:[%s271 + $0x4c] sm:$0xf]
      %v1337 = vld [vmem:[%s271 + $0x50] sm:$0xf]
      %v1338 = vld [vmem:[%s271 + $0x54] sm:$0xf]
      %v1339 = vld [vmem:[%s271 + $0x58] sm:$0xf]
      %v1340 = vld [vmem:[%s271 + $0x5c] sm:$0xf]
      %v1341 = vld [vmem:[%s271 + $0x60] sm:$0xf]
      %v1342 = vld [vmem:[%s271 + $0x64] sm:$0xf]
      %v1343 = vld [vmem:[%s271 + $0x68] sm:$0xf]
      %v1344 = vld [vmem:[%s271 + $0x6c] sm:$0xf]
      %v1345 = vld [vmem:[%s271 + $0x70] sm:$0xf]
      %v1346 = vld [vmem:[%s271 + $0x74] sm:$0xf]
      %v1347 = vld [vmem:[%s271 + $0x78] sm:$0xf]
      %v1348 = vld [vmem:[%s271 + $0x7c] sm:$0xf]
      %v1349 = vld [vmem:[%s271 + $0x80] sm:$0xf]
      %v1350 = vld [vmem:[%s271 + $0x84] sm:$0xf]
      %v1351 = vld [vmem:[%s271 + $0x88] sm:$0xf]
      %v1352 = vld [vmem:[%s271 + $0x8c] sm:$0xf]
      %v1353 = vld [vmem:[%s271 + $0x90] sm:$0xf]
      %v1354 = vld [vmem:[%s271 + $0x94] sm:$0xf]
      %v1355 = vld [vmem:[%s271 + $0x98] sm:$0xf]
      %v1356 = vld [vmem:[%s271 + $0x9c] sm:$0xf]
      %v1357 = vld [vmem:[%s271 + $0xa0] sm:$0xf]
      %v1358 = vld [vmem:[%s271 + $0xa4] sm:$0xf]
      %v1359 = vld [vmem:[%s271 + $0xa8] sm:$0xf]
      %v1360 = vld [vmem:[%s271 + $0xac] sm:$0xf]
      %v1361 = vld [vmem:[%s271 + $0xb0] sm:$0xf]
      %v1362 = vld [vmem:[%s271 + $0xb4] sm:$0xf]
      %v1363 = vld [vmem:[%s271 + $0xb8] sm:$0xf]
      %v1364 = vld [vmem:[%s271 + $0xbc] sm:$0xf]
      %v1365 = vld [vmem:[%s271 + $0xc0] sm:$0xf]
      %v1366 = vld [vmem:[%s271 + $0xc4] sm:$0x1]
      %v1367 = vld [vmem:[%s275 + $0x8] sm:$0xf]
      %v1417 = vunpack.c.l.b16 %v1318
      %v1418 = vunpack.c.l.b16 %v1319
      %v1419 = vunpack.c.l.b16 %v1320
      %v1420 = vunpack.c.l.b16 %v1321
      %v1421 = vunpack.c.l.b16 %v1322
      %v1422 = vunpack.c.l.b16 %v1323
      %v1423 = vunpack.c.l.b16 %v1324
      %v1424 = vunpack.c.l.b16 %v1325
      %v1425 = vunpack.c.l.b16 %v1326
      %v1426 = vunpack.c.l.b16 %v1327
      %v1427 = vunpack.c.l.b16 %v1328
      %v1428 = vunpack.c.l.b16 %v1329
      %v1429 = vunpack.c.l.b16 %v1330
      %v1430 = vunpack.c.l.b16 %v1331
      %v1431 = vunpack.c.l.b16 %v1332
      %v1432 = vunpack.c.l.b16 %v1333
      %v1433 = vunpack.c.l.b16 %v1334
      %v1434 = vunpack.c.l.b16 %v1335
      %v1435 = vunpack.c.l.b16 %v1336
      %v1436 = vunpack.c.l.b16 %v1337
      %v1437 = vunpack.c.l.b16 %v1338
      %v1438 = vunpack.c.l.b16 %v1339
      %v1439 = vunpack.c.l.b16 %v1340
      %v1440 = vunpack.c.l.b16 %v1341
      %v1441 = vunpack.c.l.b16 %v1342
      %v1442 = vunpack.c.l.b16 %v1343
      %v1443 = vunpack.c.l.b16 %v1344
      %v1444 = vunpack.c.l.b16 %v1345
      %v1445 = vunpack.c.l.b16 %v1346
      %v1446 = vunpack.c.l.b16 %v1347
      %v1447 = vunpack.c.l.b16 %v1348
      %v1448 = vunpack.c.l.b16 %v1349
      %v1449 = vunpack.c.l.b16 %v1350
      %v1450 = vunpack.c.l.b16 %v1351
      %v1451 = vunpack.c.l.b16 %v1352
      %v1452 = vunpack.c.l.b16 %v1353
      %v1453 = vunpack.c.l.b16 %v1354
      %v1454 = vunpack.c.l.b16 %v1355
      %v1455 = vunpack.c.l.b16 %v1356
      %v1456 = vunpack.c.l.b16 %v1357
      %v1457 = vunpack.c.l.b16 %v1358
      %v1458 = vunpack.c.l.b16 %v1359
      %v1459 = vunpack.c.l.b16 %v1360
      %v1460 = vunpack.c.l.b16 %v1361
      %v1461 = vunpack.c.l.b16 %v1362
      %v1462 = vunpack.c.l.b16 %v1363
      %v1463 = vunpack.c.l.b16 %v1364
      %v1464 = vunpack.c.l.b16 %v1365
      %v1465 = vunpack.c.l.b16 %v1366
      %v1466 = vpack.c.b16 %v1418, %v1417
      %v1467 = vpack.c.b16 %v1420, %v1419
      %v1468 = vpack.c.b16 %v1422, %v1421
      %v1469 = vpack.c.b16 %v1424, %v1423
      %v1470 = vpack.c.b16 %v1426, %v1425
      %v1471 = vpack.c.b16 %v1428, %v1427
      %v1472 = vpack.c.b16 %v1430, %v1429
      %v1473 = vpack.c.b16 %v1432, %v1431
      %v1474 = vpack.c.b16 %v1434, %v1433
      %v1475 = vpack.c.b16 %v1436, %v1435
      %v1476 = vpack.c.b16 %v1438, %v1437
      %v1477 = vpack.c.b16 %v1440, %v1439
      %v1478 = vpack.c.b16 %v1442, %v1441
      %v1479 = vpack.c.b16 %v1444, %v1443
      %v1480 = vpack.c.b16 %v1446, %v1445
      %v1481 = vpack.c.b16 %v1448, %v1447
      %v1482 = vpack.c.b16 %v1450, %v1449
      %v1483 = vpack.c.b16 %v1452, %v1451
      %v1484 = vpack.c.b16 %v1454, %v1453
      %v1485 = vpack.c.b16 %v1456, %v1455
      %v1486 = vpack.c.b16 %v1458, %v1457
      %v1487 = vpack.c.b16 %v1460, %v1459
      %v1488 = vpack.c.b16 %v1462, %v1461
      %v1489 = vpack.c.b16 %v1464, %v1463
      %v1490 = vpack.c.b16 %v1465, %v1465
      %vm1491 = vsmask.f32 7424
      %v1493 = vshrl.u32 %v1466, 16
      %v1495 = vshll.u32 %v1466, 16
      %v1497 = vrot.slane %v1495, 1
      %v1498 = vor.u32 %v1493, %v1497
      %v1500 = vshll.u32 %v1467, 16
      %v1502 = vrot.slane %v1500, 1
      %v1503 = vsel %vm1491, %v1498, %v1502
      %v1504 = vshrl.u32 %v1467, 16
      %v1506 = vor.u32 %v1504, %v1502
      %v1508 = vshll.u32 %v1468, 16
      %v1510 = vrot.slane %v1508, 1
      %v1511 = vsel %vm1491, %v1506, %v1510
      %v1512 = vshrl.u32 %v1468, 16
      %v1514 = vor.u32 %v1512, %v1510
      %v1516 = vshll.u32 %v1469, 16
      %v1518 = vrot.slane %v1516, 1
      %v1519 = vsel %vm1491, %v1514, %v1518
      %v1520 = vshrl.u32 %v1469, 16
      %v1522 = vor.u32 %v1520, %v1518
      %v1524 = vshll.u32 %v1470, 16
      %v1526 = vrot.slane %v1524, 1
      %v1527 = vsel %vm1491, %v1522, %v1526
      %v1528 = vshrl.u32 %v1470, 16
      %v1530 = vor.u32 %v1528, %v1526
      %v1532 = vshll.u32 %v1471, 16
      %v1534 = vrot.slane %v1532, 1
      %v1535 = vsel %vm1491, %v1530, %v1534
      %v1536 = vshrl.u32 %v1471, 16
      %v1538 = vor.u32 %v1536, %v1534
      %v1540 = vshll.u32 %v1472, 16
      %v1542 = vrot.slane %v1540, 1
      %v1543 = vsel %vm1491, %v1538, %v1542
      %v1544 = vshrl.u32 %v1472, 16
      %v1546 = vor.u32 %v1544, %v1542
      %v1548 = vshll.u32 %v1473, 16
      %v1550 = vrot.slane %v1548, 1
      %v1551 = vsel %vm1491, %v1546, %v1550
      %v1552 = vshrl.u32 %v1473, 16
      %v1554 = vor.u32 %v1552, %v1550
      %v1556 = vshll.u32 %v1474, 16
      %v1558 = vrot.slane %v1556, 1
      %v1559 = vsel %vm1491, %v1554, %v1558
      %v1560 = vshrl.u32 %v1474, 16
      %v1562 = vor.u32 %v1560, %v1558
      %v1564 = vshll.u32 %v1475, 16
      %v1566 = vrot.slane %v1564, 1
      %v1567 = vsel %vm1491, %v1562, %v1566
      %v1568 = vshrl.u32 %v1475, 16
      %v1570 = vor.u32 %v1568, %v1566
      %v1572 = vshll.u32 %v1476, 16
      %v1574 = vrot.slane %v1572, 1
      %v1575 = vsel %vm1491, %v1570, %v1574
      %v1576 = vshrl.u32 %v1476, 16
      %v1578 = vor.u32 %v1576, %v1574
      %v1580 = vshll.u32 %v1477, 16
      %v1582 = vrot.slane %v1580, 1
      %v1583 = vsel %vm1491, %v1578, %v1582
      %v1584 = vshrl.u32 %v1477, 16
      %v1586 = vor.u32 %v1584, %v1582
      %v1588 = vshll.u32 %v1478, 16
      %v1590 = vrot.slane %v1588, 1
      %v1591 = vsel %vm1491, %v1586, %v1590
      %v1592 = vshrl.u32 %v1478, 16
      %v1594 = vor.u32 %v1592, %v1590
      %v1596 = vshll.u32 %v1479, 16
      %v1598 = vrot.slane %v1596, 1
      %v1599 = vsel %vm1491, %v1594, %v1598
      %v1600 = vshrl.u32 %v1479, 16
      %v1602 = vor.u32 %v1600, %v1598
      %v1604 = vshll.u32 %v1480, 16
      %v1606 = vrot.slane %v1604, 1
      %v1607 = vsel %vm1491, %v1602, %v1606
      %v1608 = vshrl.u32 %v1480, 16
      %v1610 = vor.u32 %v1608, %v1606
      %v1612 = vshll.u32 %v1481, 16
      %v1614 = vrot.slane %v1612, 1
      %v1615 = vsel %vm1491, %v1610, %v1614
      %v1616 = vshrl.u32 %v1481, 16
      %v1618 = vor.u32 %v1616, %v1614
      %v1620 = vshll.u32 %v1482, 16
      %v1622 = vrot.slane %v1620, 1
      %v1623 = vsel %vm1491, %v1618, %v1622
      %v1624 = vshrl.u32 %v1482, 16
      %v1626 = vor.u32 %v1624, %v1622
      %v1628 = vshll.u32 %v1483, 16
      %v1630 = vrot.slane %v1628, 1
      %v1631 = vsel %vm1491, %v1626, %v1630
      %v1632 = vshrl.u32 %v1483, 16
      %v1634 = vor.u32 %v1632, %v1630
      %v1636 = vshll.u32 %v1484, 16
      %v1638 = vrot.slane %v1636, 1
      %v1639 = vsel %vm1491, %v1634, %v1638
      %v1640 = vshrl.u32 %v1484, 16
      %v1642 = vor.u32 %v1640, %v1638
      %v1644 = vshll.u32 %v1485, 16
      %v1646 = vrot.slane %v1644, 1
      %v1647 = vsel %vm1491, %v1642, %v1646
      %v1648 = vshrl.u32 %v1485, 16
      %v1650 = vor.u32 %v1648, %v1646
      %v1652 = vshll.u32 %v1486, 16
      %v1654 = vrot.slane %v1652, 1
      %v1655 = vsel %vm1491, %v1650, %v1654
      %v1656 = vshrl.u32 %v1486, 16
      %v1658 = vor.u32 %v1656, %v1654
      %v1660 = vshll.u32 %v1487, 16
      %v1662 = vrot.slane %v1660, 1
      %v1663 = vsel %vm1491, %v1658, %v1662
      %v1664 = vshrl.u32 %v1487, 16
      %v1666 = vor.u32 %v1664, %v1662
      %v1668 = vshll.u32 %v1488, 16
      %v1670 = vrot.slane %v1668, 1
      %v1671 = vsel %vm1491, %v1666, %v1670
      %v1672 = vshrl.u32 %v1488, 16
      %v1674 = vor.u32 %v1672, %v1670
      %v1676 = vshll.u32 %v1489, 16
      %v1678 = vrot.slane %v1676, 1
      %v1679 = vsel %vm1491, %v1674, %v1678
      %v1680 = vshrl.u32 %v1489, 16
      %v1682 = vor.u32 %v1680, %v1678
      %v1684 = vshll.u32 %v1490, 16
      %v1686 = vrot.slane %v1684, 1
      %v1687 = vsel %vm1491, %v1682, %v1686
      %v1689 = vsel %vm464, %v1503, 0
      %v1692 = vsel %vm464, %v1511, 0
      %v1695 = vsel %vm464, %v1519, 0
      %v1698 = vsel %vm464, %v1527, 0
      %v1701 = vsel %vm464, %v1535, 0
      %v1704 = vsel %vm464, %v1543, 0
      %v1707 = vsel %vm464, %v1551, 0
      %v1710 = vsel %vm464, %v1559, 0
      %v1713 = vsel %vm464, %v1567, 0
      %v1716 = vsel %vm464, %v1575, 0
      %v1719 = vsel %vm464, %v1583, 0
      %v1722 = vsel %vm464, %v1591, 0
      %v1725 = vsel %vm464, %v1599, 0
      %v1728 = vsel %vm464, %v1607, 0
      %v1731 = vsel %vm464, %v1615, 0
      %v1734 = vsel %vm464, %v1623, 0
      %v1737 = vsel %vm464, %v1631, 0
      %v1740 = vsel %vm464, %v1639, 0
      %v1743 = vsel %vm464, %v1647, 0
      %v1746 = vsel %vm464, %v1655, 0
      %v1749 = vsel %vm464, %v1663, 0
      %v1752 = vsel %vm464, %v1671, 0
      %v1755 = vsel %vm464, %v1679, 0
      %v1758 = vsel %vm464, %v1687, 0
      %v1761 = vsel %vm537, %v1367, 0
      %1763 = vmatprep.subr.bf16.mxu0 0
      %1764 = vmatpush1.bf16.msra.mxu0 0
      %1765 = vmatprep.subr.bf16.mxu0 0
      %1766 = vmatpush1.bf16.msra.mxu0 0
      %1767 = vmatprep.subr.bf16.mxu0 0
      %1768 = vmatpush1.bf16.msra.mxu0 0
      %1769 = vmatprep.subr.bf16.mxu0 0
      %1770 = vmatpush1.bf16.msra.mxu0 0
      %1771 = vmatprep.subr.bf16.mxu0 0
      %1772 = vmatpush1.bf16.msra.mxu0 0
      %1773 = vmatprep.subr.bf16.mxu0 0
      %1774 = vmatpush1.bf16.msra.mxu0 0
      %1775 = vmatprep.subr.bf16.mxu0 0
      %1776 = vmatpush1.bf16.msra.mxu0 0
      %1777 = vmatprep.subr.bf16.mxu0 0
      %1778 = vmatpush1.bf16.msra.mxu0 %v1761
      %1779 = vmatprep.subr.bf16.mxu0 0
      %1780 = vmatpush2.bf16.msra.mxu0 0
      %1781 = vmatprep.subr.bf16.mxu0 0
      %1782 = vmatpush2.bf16.msra.mxu0 0
      %1783 = vmatprep.subr.bf16.mxu0 0
      %1784 = vmatpush2.bf16.msra.mxu0 0
      %1785 = vmatprep.subr.bf16.mxu0 0
      %1786 = vmatpush2.bf16.msra.mxu0 0
      %1787 = vmatprep.subr.bf16.mxu0 0
      %1788 = vmatpush2.bf16.msra.mxu0 0
      %1789 = vmatprep.subr.bf16.mxu0 0
      %1790 = vmatpush2.bf16.msra.mxu0 0
      %1791 = vmatprep.subr.bf16.mxu0 0
      %1792 = vmatpush2.bf16.msra.mxu0 0
      %1793 = vmatprep.subr.bf16.mxu0 0
      %1794 = vmatpush2.bf16.msra.mxu0 0
      %1795 = vmatprep.mubr.bf16.mxu0 0
      %1796 = vmatmul.mubr.bf16.gmra.mxu0 %v1689
      %v1797 = vpop.f32.mrf.mxu0
      %v1798 = vadd.f32 0.0, %v1797
      %v1799 = vpop.f32.mrf.mxu0
      %v1800 = vpop.f32.mrf.mxu0
      %v1801 = vadd.f32 0.0, %v1800
      %v1802 = vpop.f32.mrf.mxu0
      %1803 = vmatprep.mubr.bf16.mxu0 0
      %1804 = vmatmul.mubr.bf16.gmra.mxu0 %v1692
      %v1805 = vpop.f32.mrf.mxu0
      %v1806 = vadd.f32 0.0, %v1805
      %v1807 = vpop.f32.mrf.mxu0
      %v1808 = vpop.f32.mrf.mxu0
      %v1809 = vadd.f32 0.0, %v1808
      %v1810 = vpop.f32.mrf.mxu0
      %1811 = vmatprep.mubr.bf16.mxu0 0
      %1812 = vmatmul.mubr.bf16.gmra.mxu0 %v1695
      %v1813 = vpop.f32.mrf.mxu0
      %v1814 = vadd.f32 0.0, %v1813
      %v1815 = vpop.f32.mrf.mxu0
      %v1816 = vpop.f32.mrf.mxu0
      %v1817 = vadd.f32 0.0, %v1816
      %v1818 = vpop.f32.mrf.mxu0
      %1819 = vmatprep.mubr.bf16.mxu0 0
      %1820 = vmatmul.mubr.bf16.gmra.mxu0 %v1698
      %v1821 = vpop.f32.mrf.mxu0
      %v1822 = vadd.f32 0.0, %v1821
      %v1823 = vpop.f32.mrf.mxu0
      %v1824 = vpop.f32.mrf.mxu0
      %v1825 = vadd.f32 0.0, %v1824
      %v1826 = vpop.f32.mrf.mxu0
      %1827 = vmatprep.mubr.bf16.mxu0 0
      %1828 = vmatmul.mubr.bf16.gmra.mxu0 %v1701
      %v1829 = vpop.f32.mrf.mxu0
      %v1830 = vadd.f32 0.0, %v1829
      %v1831 = vpop.f32.mrf.mxu0
      %v1832 = vpop.f32.mrf.mxu0
      %v1833 = vadd.f32 0.0, %v1832
      %v1834 = vpop.f32.mrf.mxu0
      %1835 = vmatprep.mubr.bf16.mxu0 0
      %1836 = vmatmul.mubr.bf16.gmra.mxu0 %v1704
      %v1837 = vpop.f32.mrf.mxu0
      %v1838 = vadd.f32 0.0, %v1837
      %v1839 = vpop.f32.mrf.mxu0
      %v1840 = vpop.f32.mrf.mxu0
      %v1841 = vadd.f32 0.0, %v1840
      %v1842 = vpop.f32.mrf.mxu0
      %1843 = vmatprep.mubr.bf16.mxu0 0
      %1844 = vmatmul.mubr.bf16.gmra.mxu0 %v1707
      %v1845 = vpop.f32.mrf.mxu0
      %v1846 = vadd.f32 0.0, %v1845
      %v1847 = vpop.f32.mrf.mxu0
      %v1848 = vpop.f32.mrf.mxu0
      %v1849 = vadd.f32 0.0, %v1848
      %v1850 = vpop.f32.mrf.mxu0
      %1851 = vmatprep.mubr.bf16.mxu0 0
      %1852 = vmatmul.mubr.bf16.gmra.mxu0 %v1710
      %v1853 = vpop.f32.mrf.mxu0
      %v1854 = vadd.f32 0.0, %v1853
      %v1855 = vpop.f32.mrf.mxu0
      %v1856 = vpop.f32.mrf.mxu0
      %v1857 = vadd.f32 0.0, %v1856
      %v1858 = vpop.f32.mrf.mxu0
      %1859 = vmatprep.mubr.bf16.mxu0 0
      %1860 = vmatmul.mubr.bf16.gmra.mxu0 %v1713
      %v1861 = vpop.f32.mrf.mxu0
      %v1862 = vadd.f32 0.0, %v1861
      %v1863 = vpop.f32.mrf.mxu0
      %v1864 = vpop.f32.mrf.mxu0
      %v1865 = vadd.f32 0.0, %v1864
      %v1866 = vpop.f32.mrf.mxu0
      %1867 = vmatprep.mubr.bf16.mxu0 0
      %1868 = vmatmul.mubr.bf16.gmra.mxu0 %v1716
      %v1869 = vpop.f32.mrf.mxu0
      %v1870 = vadd.f32 0.0, %v1869
      %v1871 = vpop.f32.mrf.mxu0
      %v1872 = vpop.f32.mrf.mxu0
      %v1873 = vadd.f32 0.0, %v1872
      %v1874 = vpop.f32.mrf.mxu0
      %1875 = vmatprep.mubr.bf16.mxu0 0
      %1876 = vmatmul.mubr.bf16.gmra.mxu0 %v1719
      %v1877 = vpop.f32.mrf.mxu0
      %v1878 = vadd.f32 0.0, %v1877
      %v1879 = vpop.f32.mrf.mxu0
      %v1880 = vpop.f32.mrf.mxu0
      %v1881 = vadd.f32 0.0, %v1880
      %v1882 = vpop.f32.mrf.mxu0
      %1883 = vmatprep.mubr.bf16.mxu0 0
      %1884 = vmatmul.mubr.bf16.gmra.mxu0 %v1722
      %v1885 = vpop.f32.mrf.mxu0
      %v1886 = vadd.f32 0.0, %v1885
      %v1887 = vpop.f32.mrf.mxu0
      %v1888 = vpop.f32.mrf.mxu0
      %v1889 = vadd.f32 0.0, %v1888
      %v1890 = vpop.f32.mrf.mxu0
      %1891 = vmatprep.mubr.bf16.mxu0 0
      %1892 = vmatmul.mubr.bf16.gmra.mxu0 %v1725
      %v1893 = vpop.f32.mrf.mxu0
      %v1894 = vadd.f32 0.0, %v1893
      %v1895 = vpop.f32.mrf.mxu0
      %v1896 = vpop.f32.mrf.mxu0
      %v1897 = vadd.f32 0.0, %v1896
      %v1898 = vpop.f32.mrf.mxu0
      %1899 = vmatprep.mubr.bf16.mxu0 0
      %1900 = vmatmul.mubr.bf16.gmra.mxu0 %v1728
      %v1901 = vpop.f32.mrf.mxu0
      %v1902 = vadd.f32 0.0, %v1901
      %v1903 = vpop.f32.mrf.mxu0
      %v1904 = vpop.f32.mrf.mxu0
      %v1905 = vadd.f32 0.0, %v1904
      %v1906 = vpop.f32.mrf.mxu0
      %1907 = vmatprep.mubr.bf16.mxu0 0
      %1908 = vmatmul.mubr.bf16.gmra.mxu0 %v1731
      %v1909 = vpop.f32.mrf.mxu0
      %v1910 = vadd.f32 0.0, %v1909
      %v1911 = vpop.f32.mrf.mxu0
      %v1912 = vpop.f32.mrf.mxu0
      %v1913 = vadd.f32 0.0, %v1912
      %v1914 = vpop.f32.mrf.mxu0
      %1915 = vmatprep.mubr.bf16.mxu0 0
      %1916 = vmatmul.mubr.bf16.gmra.mxu0 %v1734
      %v1917 = vpop.f32.mrf.mxu0
      %v1918 = vadd.f32 0.0, %v1917
      %v1919 = vpop.f32.mrf.mxu0
      %v1920 = vpop.f32.mrf.mxu0
      %v1921 = vadd.f32 0.0, %v1920
      %v1922 = vpop.f32.mrf.mxu0
      %1923 = vmatprep.mubr.bf16.mxu0 0
      %1924 = vmatmul.mubr.bf16.gmra.mxu0 %v1737
      %v1925 = vpop.f32.mrf.mxu0
      %v1926 = vadd.f32 0.0, %v1925
      %v1927 = vpop.f32.mrf.mxu0
      %v1928 = vpop.f32.mrf.mxu0
      %v1929 = vadd.f32 0.0, %v1928
      %v1930 = vpop.f32.mrf.mxu0
      %1931 = vmatprep.mubr.bf16.mxu0 0
      %1932 = vmatmul.mubr.bf16.gmra.mxu0 %v1740
      %v1933 = vpop.f32.mrf.mxu0
      %v1934 = vadd.f32 0.0, %v1933
      %v1935 = vpop.f32.mrf.mxu0
      %v1936 = vpop.f32.mrf.mxu0
      %v1937 = vadd.f32 0.0, %v1936
      %v1938 = vpop.f32.mrf.mxu0
      %1939 = vmatprep.mubr.bf16.mxu0 0
      %1940 = vmatmul.mubr.bf16.gmra.mxu0 %v1743
      %v1941 = vpop.f32.mrf.mxu0
      %v1942 = vadd.f32 0.0, %v1941
      %v1943 = vpop.f32.mrf.mxu0
      %v1944 = vpop.f32.mrf.mxu0
      %v1945 = vadd.f32 0.0, %v1944
      %v1946 = vpop.f32.mrf.mxu0
      %1947 = vmatprep.mubr.bf16.mxu0 0
      %1948 = vmatmul.mubr.bf16.gmra.mxu0 %v1746
      %v1949 = vpop.f32.mrf.mxu0
      %v1950 = vadd.f32 0.0, %v1949
      %v1951 = vpop.f32.mrf.mxu0
      %v1952 = vpop.f32.mrf.mxu0
      %v1953 = vadd.f32 0.0, %v1952
      %v1954 = vpop.f32.mrf.mxu0
      %1955 = vmatprep.mubr.bf16.mxu0 0
      %1956 = vmatmul.mubr.bf16.gmra.mxu0 %v1749
      %v1957 = vpop.f32.mrf.mxu0
      %v1958 = vadd.f32 0.0, %v1957
      %v1959 = vpop.f32.mrf.mxu0
      %v1960 = vpop.f32.mrf.mxu0
      %v1961 = vadd.f32 0.0, %v1960
      %v1962 = vpop.f32.mrf.mxu0
      %1963 = vmatprep.mubr.bf16.mxu0 0
      %1964 = vmatmul.mubr.bf16.gmra.mxu0 %v1752
      %v1965 = vpop.f32.mrf.mxu0
      %v1966 = vadd.f32 0.0, %v1965
      %v1967 = vpop.f32.mrf.mxu0
      %v1968 = vpop.f32.mrf.mxu0
      %v1969 = vadd.f32 0.0, %v1968
      %v1970 = vpop.f32.mrf.mxu0
      %1971 = vmatprep.mubr.bf16.mxu0 0
      %1972 = vmatmul.mubr.bf16.gmra.mxu0 %v1755
      %v1973 = vpop.f32.mrf.mxu0
      %v1974 = vadd.f32 0.0, %v1973
      %v1975 = vpop.f32.mrf.mxu0
      %v1976 = vpop.f32.mrf.mxu0
      %v1977 = vadd.f32 0.0, %v1976
      %v1978 = vpop.f32.mrf.mxu0
      %1979 = vmatprep.mubr.bf16.mxu0 0
      %1980 = vmatmul.mubr.bf16.gmra.mxu0 %v1758
      %v1981 = vpop.f32.mrf.mxu0
      %v1982 = vadd.f32 0.0, %v1981
      %v1983 = vpop.f32.mrf.mxu0
      %v1984 = vpop.f32.mrf.mxu0
      %v1985 = vadd.f32 0.0, %v1984
      %v1986 = vpop.f32.mrf.mxu0
      %1987 = vdwg.mxu0
      %v1988 = vadd.f32 %v1128, %v1798
      %v1989 = vadd.f32 %v1131, %v1801
      %v1990 = vadd.f32 %v1136, %v1806
      %v1991 = vadd.f32 %v1139, %v1809
      %v1992 = vadd.f32 %v1144, %v1814
      %v1993 = vadd.f32 %v1147, %v1817
      %v1994 = vadd.f32 %v1152, %v1822
      %v1995 = vadd.f32 %v1155, %v1825
      %v1996 = vadd.f32 %v1160, %v1830
      %v1997 = vadd.f32 %v1163, %v1833
      %v1998 = vadd.f32 %v1168, %v1838
      %v1999 = vadd.f32 %v1171, %v1841
      %v2000 = vadd.f32 %v1176, %v1846
      %v2001 = vadd.f32 %v1179, %v1849
      %v2002 = vadd.f32 %v1184, %v1854
      %v2003 = vadd.f32 %v1187, %v1857
      %v2004 = vadd.f32 %v1192, %v1862
      %v2005 = vadd.f32 %v1195, %v1865
      %v2006 = vadd.f32 %v1200, %v1870
      %v2007 = vadd.f32 %v1203, %v1873
      %v2008 = vadd.f32 %v1208, %v1878
      %v2009 = vadd.f32 %v1211, %v1881
      %v2010 = vadd.f32 %v1216, %v1886
      %v2011 = vadd.f32 %v1219, %v1889
      %v2012 = vadd.f32 %v1224, %v1894
      %v2013 = vadd.f32 %v1227, %v1897
      %v2014 = vadd.f32 %v1232, %v1902
      %v2015 = vadd.f32 %v1235, %v1905
      %v2016 = vadd.f32 %v1240, %v1910
      %v2017 = vadd.f32 %v1243, %v1913
      %v2018 = vadd.f32 %v1248, %v1918
      %v2019 = vadd.f32 %v1251, %v1921
      %v2020 = vadd.f32 %v1256, %v1926
      %v2021 = vadd.f32 %v1259, %v1929
      %v2022 = vadd.f32 %v1264, %v1934
      %v2023 = vadd.f32 %v1267, %v1937
      %v2024 = vadd.f32 %v1272, %v1942
      %v2025 = vadd.f32 %v1275, %v1945
      %v2026 = vadd.f32 %v1280, %v1950
      %v2027 = vadd.f32 %v1283, %v1953
      %v2028 = vadd.f32 %v1288, %v1958
      %v2029 = vadd.f32 %v1291, %v1961
      %v2030 = vadd.f32 %v1296, %v1966
      %v2031 = vadd.f32 %v1299, %v1969
      %v2032 = vadd.f32 %v1304, %v1974
      %v2033 = vadd.f32 %v1307, %v1977
      %v2034 = vadd.f32 %v1312, %v1982
      %v2035 = vadd.f32 %v1315, %v1985
      %v2036 = vld [vmem:[%s271 + $0xc] sm:$0x8]
      %v2037 = vld [vmem:[%s271 + $0x10] sm:$0xf]
      %v2038 = vld [vmem:[%s271 + $0x14] sm:$0xf]
      %v2039 = vld [vmem:[%s271 + $0x18] sm:$0xf]
      %v2040 = vld [vmem:[%s271 + $0x1c] sm:$0xf]
      %v2041 = vld [vmem:[%s271 + $0x20] sm:$0xf]
      %v2042 = vld [vmem:[%s271 + $0x24] sm:$0xf]
      %v2043 = vld [vmem:[%s271 + $0x28] sm:$0xf]
      %v2044 = vld [vmem:[%s271 + $0x2c] sm:$0xf]
      %v2045 = vld [vmem:[%s271 + $0x30] sm:$0xf]
      %v2046 = vld [vmem:[%s271 + $0x34] sm:$0xf]
      %v2047 = vld [vmem:[%s271 + $0x38] sm:$0xf]
      %v2048 = vld [vmem:[%s271 + $0x3c] sm:$0xf]
      %v2049 = vld [vmem:[%s271 + $0x40] sm:$0xf]
      %v2050 = vld [vmem:[%s271 + $0x44] sm:$0xf]
      %v2051 = vld [vmem:[%s271 + $0x48] sm:$0xf]
      %v2052 = vld [vmem:[%s271 + $0x4c] sm:$0xf]
      %v2053 = vld [vmem:[%s271 + $0x50] sm:$0xf]
      %v2054 = vld [vmem:[%s271 + $0x54] sm:$0xf]
      %v2055 = vld [vmem:[%s271 + $0x58] sm:$0xf]
      %v2056 = vld [vmem:[%s271 + $0x5c] sm:$0xf]
      %v2057 = vld [vmem:[%s271 + $0x60] sm:$0xf]
      %v2058 = vld [vmem:[%s271 + $0x64] sm:$0xf]
      %v2059 = vld [vmem:[%s271 + $0x68] sm:$0xf]
      %v2060 = vld [vmem:[%s271 + $0x6c] sm:$0xf]
      %v2061 = vld [vmem:[%s271 + $0x70] sm:$0xf]
      %v2062 = vld [vmem:[%s271 + $0x74] sm:$0xf]
      %v2063 = vld [vmem:[%s271 + $0x78] sm:$0xf]
      %v2064 = vld [vmem:[%s271 + $0x7c] sm:$0xf]
      %v2065 = vld [vmem:[%s271 + $0x80] sm:$0xf]
      %v2066 = vld [vmem:[%s271 + $0x84] sm:$0xf]
      %v2067 = vld [vmem:[%s271 + $0x88] sm:$0xf]
      %v2068 = vld [vmem:[%s271 + $0x8c] sm:$0xf]
      %v2069 = vld [vmem:[%s271 + $0x90] sm:$0xf]
      %v2070 = vld [vmem:[%s271 + $0x94] sm:$0xf]
      %v2071 = vld [vmem:[%s271 + $0x98] sm:$0xf]
      %v2072 = vld [vmem:[%s271 + $0x9c] sm:$0xf]
      %v2073 = vld [vmem:[%s271 + $0xa0] sm:$0xf]
      %v2074 = vld [vmem:[%s271 + $0xa4] sm:$0xf]
      %v2075 = vld [vmem:[%s271 + $0xa8] sm:$0xf]
      %v2076 = vld [vmem:[%s271 + $0xac] sm:$0xf]
      %v2077 = vld [vmem:[%s271 + $0xb0] sm:$0xf]
      %v2078 = vld [vmem:[%s271 + $0xb4] sm:$0xf]
      %v2079 = vld [vmem:[%s271 + $0xb8] sm:$0xf]
      %v2080 = vld [vmem:[%s271 + $0xbc] sm:$0xf]
      %v2081 = vld [vmem:[%s271 + $0xc0] sm:$0xf]
      %v2082 = vld [vmem:[%s271 + $0xc4] sm:$0xf]
      %v2083 = vld [vmem:[%s271 + $0xc8] sm:$0xf]
      %v2084 = vld [vmem:[%s271 + $0xcc] sm:$0xf]
      %v2085 = vld [vmem:[%s275 + $0xc] sm:$0xf]
      %v2135 = vunpack.c.l.b16 %v2036
      %v2136 = vunpack.c.l.b16 %v2037
      %v2137 = vunpack.c.l.b16 %v2038
      %v2138 = vunpack.c.l.b16 %v2039
      %v2139 = vunpack.c.l.b16 %v2040
      %v2140 = vunpack.c.l.b16 %v2041
      %v2141 = vunpack.c.l.b16 %v2042
      %v2142 = vunpack.c.l.b16 %v2043
      %v2143 = vunpack.c.l.b16 %v2044
      %v2144 = vunpack.c.l.b16 %v2045
      %v2145 = vunpack.c.l.b16 %v2046
      %v2146 = vunpack.c.l.b16 %v2047
      %v2147 = vunpack.c.l.b16 %v2048
      %v2148 = vunpack.c.l.b16 %v2049
      %v2149 = vunpack.c.l.b16 %v2050
      %v2150 = vunpack.c.l.b16 %v2051
      %v2151 = vunpack.c.l.b16 %v2052
      %v2152 = vunpack.c.l.b16 %v2053
      %v2153 = vunpack.c.l.b16 %v2054
      %v2154 = vunpack.c.l.b16 %v2055
      %v2155 = vunpack.c.l.b16 %v2056
      %v2156 = vunpack.c.l.b16 %v2057
      %v2157 = vunpack.c.l.b16 %v2058
      %v2158 = vunpack.c.l.b16 %v2059
      %v2159 = vunpack.c.l.b16 %v2060
      %v2160 = vunpack.c.l.b16 %v2061
      %v2161 = vunpack.c.l.b16 %v2062
      %v2162 = vunpack.c.l.b16 %v2063
      %v2163 = vunpack.c.l.b16 %v2064
      %v2164 = vunpack.c.l.b16 %v2065
      %v2165 = vunpack.c.l.b16 %v2066
      %v2166 = vunpack.c.l.b16 %v2067
      %v2167 = vunpack.c.l.b16 %v2068
      %v2168 = vunpack.c.l.b16 %v2069
      %v2169 = vunpack.c.l.b16 %v2070
      %v2170 = vunpack.c.l.b16 %v2071
      %v2171 = vunpack.c.l.b16 %v2072
      %v2172 = vunpack.c.l.b16 %v2073
      %v2173 = vunpack.c.l.b16 %v2074
      %v2174 = vunpack.c.l.b16 %v2075
      %v2175 = vunpack.c.l.b16 %v2076
      %v2176 = vunpack.c.l.b16 %v2077
      %v2177 = vunpack.c.l.b16 %v2078
      %v2178 = vunpack.c.l.b16 %v2079
      %v2179 = vunpack.c.l.b16 %v2080
      %v2180 = vunpack.c.l.b16 %v2081
      %v2181 = vunpack.c.l.b16 %v2082
      %v2182 = vunpack.c.l.b16 %v2083
      %v2183 = vunpack.c.l.b16 %v2084
      %v2184 = vpack.c.b16 %v2136, %v2135
      %v2185 = vpack.c.b16 %v2138, %v2137
      %v2186 = vpack.c.b16 %v2140, %v2139
      %v2187 = vpack.c.b16 %v2142, %v2141
      %v2188 = vpack.c.b16 %v2144, %v2143
      %v2189 = vpack.c.b16 %v2146, %v2145
      %v2190 = vpack.c.b16 %v2148, %v2147
      %v2191 = vpack.c.b16 %v2150, %v2149
      %v2192 = vpack.c.b16 %v2152, %v2151
      %v2193 = vpack.c.b16 %v2154, %v2153
      %v2194 = vpack.c.b16 %v2156, %v2155
      %v2195 = vpack.c.b16 %v2158, %v2157
      %v2196 = vpack.c.b16 %v2160, %v2159
      %v2197 = vpack.c.b16 %v2162, %v2161
      %v2198 = vpack.c.b16 %v2164, %v2163
      %v2199 = vpack.c.b16 %v2166, %v2165
      %v2200 = vpack.c.b16 %v2168, %v2167
      %v2201 = vpack.c.b16 %v2170, %v2169
      %v2202 = vpack.c.b16 %v2172, %v2171
      %v2203 = vpack.c.b16 %v2174, %v2173
      %v2204 = vpack.c.b16 %v2176, %v2175
      %v2205 = vpack.c.b16 %v2178, %v2177
      %v2206 = vpack.c.b16 %v2180, %v2179
      %v2207 = vpack.c.b16 %v2182, %v2181
      %v2208 = vpack.c.b16 %v2183, %v2183
      %v2210 = vshrl.u32 %v2184, 16
      %v2212 = vrot.slane %v2210, 3
      %v2213 = vshll.u32 %v2184, 16
      %v2215 = vrot.slane %v2213, 4
      %v2216 = vor.u32 %v2212, %v2215
      %v2218 = vshrl.u32 %v2185, 16
      %v2220 = vrot.slane %v2218, 3
      %v2221 = vshll.u32 %v2185, 16
      %v2223 = vrot.slane %v2221, 4
      %v2224 = vor.u32 %v2220, %v2223
      %v2225 = vsel %vm793, %v2216, %v2224
      %v2227 = vshrl.u32 %v2186, 16
      %v2229 = vrot.slane %v2227, 3
      %v2230 = vshll.u32 %v2186, 16
      %v2232 = vrot.slane %v2230, 4
      %v2233 = vor.u32 %v2229, %v2232
      %v2234 = vsel %vm793, %v2224, %v2233
      %v2236 = vshrl.u32 %v2187, 16
      %v2238 = vrot.slane %v2236, 3
      %v2239 = vshll.u32 %v2187, 16
      %v2241 = vrot.slane %v2239, 4
      %v2242 = vor.u32 %v2238, %v2241
      %v2243 = vsel %vm793, %v2233, %v2242
      %v2245 = vshrl.u32 %v2188, 16
      %v2247 = vrot.slane %v2245, 3
      %v2248 = vshll.u32 %v2188, 16
      %v2250 = vrot.slane %v2248, 4
      %v2251 = vor.u32 %v2247, %v2250
      %v2252 = vsel %vm793, %v2242, %v2251
      %v2254 = vshrl.u32 %v2189, 16
      %v2256 = vrot.slane %v2254, 3
      %v2257 = vshll.u32 %v2189, 16
      %v2259 = vrot.slane %v2257, 4
      %v2260 = vor.u32 %v2256, %v2259
      %v2261 = vsel %vm793, %v2251, %v2260
      %v2263 = vshrl.u32 %v2190, 16
      %v2265 = vrot.slane %v2263, 3
      %v2266 = vshll.u32 %v2190, 16
      %v2268 = vrot.slane %v2266, 4
      %v2269 = vor.u32 %v2265, %v2268
      %v2270 = vsel %vm793, %v2260, %v2269
      %v2272 = vshrl.u32 %v2191, 16
      %v2274 = vrot.slane %v2272, 3
      %v2275 = vshll.u32 %v2191, 16
      %v2277 = vrot.slane %v2275, 4
      %v2278 = vor.u32 %v2274, %v2277
      %v2279 = vsel %vm793, %v2269, %v2278
      %v2281 = vshrl.u32 %v2192, 16
      %v2283 = vrot.slane %v2281, 3
      %v2284 = vshll.u32 %v2192, 16
      %v2286 = vrot.slane %v2284, 4
      %v2287 = vor.u32 %v2283, %v2286
      %v2288 = vsel %vm793, %v2278, %v2287
      %v2290 = vshrl.u32 %v2193, 16
      %v2292 = vrot.slane %v2290, 3
      %v2293 = vshll.u32 %v2193, 16
      %v2295 = vrot.slane %v2293, 4
      %v2296 = vor.u32 %v2292, %v2295
      %v2297 = vsel %vm793, %v2287, %v2296
      %v2299 = vshrl.u32 %v2194, 16
      %v2301 = vrot.slane %v2299, 3
      %v2302 = vshll.u32 %v2194, 16
      %v2304 = vrot.slane %v2302, 4
      %v2305 = vor.u32 %v2301, %v2304
      %v2306 = vsel %vm793, %v2296, %v2305
      %v2308 = vshrl.u32 %v2195, 16
      %v2310 = vrot.slane %v2308, 3
      %v2311 = vshll.u32 %v2195, 16
      %v2313 = vrot.slane %v2311, 4
      %v2314 = vor.u32 %v2310, %v2313
      %v2315 = vsel %vm793, %v2305, %v2314
      %v2317 = vshrl.u32 %v2196, 16
      %v2319 = vrot.slane %v2317, 3
      %v2320 = vshll.u32 %v2196, 16
      %v2322 = vrot.slane %v2320, 4
      %v2323 = vor.u32 %v2319, %v2322
      %v2324 = vsel %vm793, %v2314, %v2323
      %v2326 = vshrl.u32 %v2197, 16
      %v2328 = vrot.slane %v2326, 3
      %v2329 = vshll.u32 %v2197, 16
      %v2331 = vrot.slane %v2329, 4
      %v2332 = vor.u32 %v2328, %v2331
      %v2333 = vsel %vm793, %v2323, %v2332
      %v2335 = vshrl.u32 %v2198, 16
      %v2337 = vrot.slane %v2335, 3
      %v2338 = vshll.u32 %v2198, 16
      %v2340 = vrot.slane %v2338, 4
      %v2341 = vor.u32 %v2337, %v2340
      %v2342 = vsel %vm793, %v2332, %v2341
      %v2344 = vshrl.u32 %v2199, 16
      %v2346 = vrot.slane %v2344, 3
      %v2347 = vshll.u32 %v2199, 16
      %v2349 = vrot.slane %v2347, 4
      %v2350 = vor.u32 %v2346, %v2349
      %v2351 = vsel %vm793, %v2341, %v2350
      %v2353 = vshrl.u32 %v2200, 16
      %v2355 = vrot.slane %v2353, 3
      %v2356 = vshll.u32 %v2200, 16
      %v2358 = vrot.slane %v2356, 4
      %v2359 = vor.u32 %v2355, %v2358
      %v2360 = vsel %vm793, %v2350, %v2359
      %v2362 = vshrl.u32 %v2201, 16
      %v2364 = vrot.slane %v2362, 3
      %v2365 = vshll.u32 %v2201, 16
      %v2367 = vrot.slane %v2365, 4
      %v2368 = vor.u32 %v2364, %v2367
      %v2369 = vsel %vm793, %v2359, %v2368
      %v2371 = vshrl.u32 %v2202, 16
      %v2373 = vrot.slane %v2371, 3
      %v2374 = vshll.u32 %v2202, 16
      %v2376 = vrot.slane %v2374, 4
      %v2377 = vor.u32 %v2373, %v2376
      %v2378 = vsel %vm793, %v2368, %v2377
      %v2380 = vshrl.u32 %v2203, 16
      %v2382 = vrot.slane %v2380, 3
      %v2383 = vshll.u32 %v2203, 16
      %v2385 = vrot.slane %v2383, 4
      %v2386 = vor.u32 %v2382, %v2385
      %v2387 = vsel %vm793, %v2377, %v2386
      %v2389 = vshrl.u32 %v2204, 16
      %v2391 = vrot.slane %v2389, 3
      %v2392 = vshll.u32 %v2204, 16
      %v2394 = vrot.slane %v2392, 4
      %v2395 = vor.u32 %v2391, %v2394
      %v2396 = vsel %vm793, %v2386, %v2395
      %v2398 = vshrl.u32 %v2205, 16
      %v2400 = vrot.slane %v2398, 3
      %v2401 = vshll.u32 %v2205, 16
      %v2403 = vrot.slane %v2401, 4
      %v2404 = vor.u32 %v2400, %v2403
      %v2405 = vsel %vm793, %v2395, %v2404
      %v2407 = vshrl.u32 %v2206, 16
      %v2409 = vrot.slane %v2407, 3
      %v2410 = vshll.u32 %v2206, 16
      %v2412 = vrot.slane %v2410, 4
      %v2413 = vor.u32 %v2409, %v2412
      %v2414 = vsel %vm793, %v2404, %v2413
      %v2416 = vshrl.u32 %v2207, 16
      %v2418 = vrot.slane %v2416, 3
      %v2419 = vshll.u32 %v2207, 16
      %v2421 = vrot.slane %v2419, 4
      %v2422 = vor.u32 %v2418, %v2421
      %v2423 = vsel %vm793, %v2413, %v2422
      %v2425 = vshrl.u32 %v2208, 16
      %v2427 = vrot.slane %v2425, 3
      %v2428 = vshll.u32 %v2208, 16
      %v2430 = vrot.slane %v2428, 4
      %v2431 = vor.u32 %v2427, %v2430
      %v2432 = vsel %vm793, %v2422, %v2431
      %v2434 = vsel %vm464, %v2225, 0
      %v2437 = vsel %vm464, %v2234, 0
      %v2440 = vsel %vm464, %v2243, 0
      %v2443 = vsel %vm464, %v2252, 0
      %v2446 = vsel %vm464, %v2261, 0
      %v2449 = vsel %vm464, %v2270, 0
      %v2452 = vsel %vm464, %v2279, 0
      %v2455 = vsel %vm464, %v2288, 0
      %v2458 = vsel %vm464, %v2297, 0
      %v2461 = vsel %vm464, %v2306, 0
      %v2464 = vsel %vm464, %v2315, 0
      %v2467 = vsel %vm464, %v2324, 0
      %v2470 = vsel %vm464, %v2333, 0
      %v2473 = vsel %vm464, %v2342, 0
      %v2476 = vsel %vm464, %v2351, 0
      %v2479 = vsel %vm464, %v2360, 0
      %v2482 = vsel %vm464, %v2369, 0
      %v2485 = vsel %vm464, %v2378, 0
      %v2488 = vsel %vm464, %v2387, 0
      %v2491 = vsel %vm464, %v2396, 0
      %v2494 = vsel %vm464, %v2405, 0
      %v2497 = vsel %vm464, %v2414, 0
      %v2500 = vsel %vm464, %v2423, 0
      %v2503 = vsel %vm464, %v2432, 0
      %v2506 = vsel %vm537, %v2085, 0
      %2508 = vmatprep.subr.bf16.mxu0 0
      %2509 = vmatpush1.bf16.msra.mxu0 0
      %2510 = vmatprep.subr.bf16.mxu0 0
      %2511 = vmatpush1.bf16.msra.mxu0 0
      %2512 = vmatprep.subr.bf16.mxu0 0
      %2513 = vmatpush1.bf16.msra.mxu0 0
      %2514 = vmatprep.subr.bf16.mxu0 0
      %2515 = vmatpush1.bf16.msra.mxu0 0
      %2516 = vmatprep.subr.bf16.mxu0 0
      %2517 = vmatpush1.bf16.msra.mxu0 0
      %2518 = vmatprep.subr.bf16.mxu0 0
      %2519 = vmatpush1.bf16.msra.mxu0 0
      %2520 = vmatprep.subr.bf16.mxu0 0
      %2521 = vmatpush1.bf16.msra.mxu0 0
      %2522 = vmatprep.subr.bf16.mxu0 0
      %2523 = vmatpush1.bf16.msra.mxu0 %v2506
      %2524 = vmatprep.subr.bf16.mxu0 0
      %2525 = vmatpush2.bf16.msra.mxu0 0
      %2526 = vmatprep.subr.bf16.mxu0 0
      %2527 = vmatpush2.bf16.msra.mxu0 0
      %2528 = vmatprep.subr.bf16.mxu0 0
      %2529 = vmatpush2.bf16.msra.mxu0 0
      %2530 = vmatprep.subr.bf16.mxu0 0
      %2531 = vmatpush2.bf16.msra.mxu0 0
      %2532 = vmatprep.subr.bf16.mxu0 0
      %2533 = vmatpush2.bf16.msra.mxu0 0
      %2534 = vmatprep.subr.bf16.mxu0 0
      %2535 = vmatpush2.bf16.msra.mxu0 0
      %2536 = vmatprep.subr.bf16.mxu0 0
      %2537 = vmatpush2.bf16.msra.mxu0 0
      %2538 = vmatprep.subr.bf16.mxu0 0
      %2539 = vmatpush2.bf16.msra.mxu0 0
      %2540 = vmatprep.mubr.bf16.mxu0 0
      %2541 = vmatmul.mubr.bf16.gmra.mxu0 %v2434
      %v2542 = vpop.f32.mrf.mxu0
      %v2543 = vadd.f32 0.0, %v2542
      %v2544 = vpop.f32.mrf.mxu0
      %v2545 = vpop.f32.mrf.mxu0
      %v2546 = vadd.f32 0.0, %v2545
      %v2547 = vpop.f32.mrf.mxu0
      %2548 = vmatprep.mubr.bf16.mxu0 0
      %2549 = vmatmul.mubr.bf16.gmra.mxu0 %v2437
      %v2550 = vpop.f32.mrf.mxu0
      %v2551 = vadd.f32 0.0, %v2550
      %v2552 = vpop.f32.mrf.mxu0
      %v2553 = vpop.f32.mrf.mxu0
      %v2554 = vadd.f32 0.0, %v2553
      %v2555 = vpop.f32.mrf.mxu0
      %2556 = vmatprep.mubr.bf16.mxu0 0
      %2557 = vmatmul.mubr.bf16.gmra.mxu0 %v2440
      %v2558 = vpop.f32.mrf.mxu0
      %v2559 = vadd.f32 0.0, %v2558
      %v2560 = vpop.f32.mrf.mxu0
      %v2561 = vpop.f32.mrf.mxu0
      %v2562 = vadd.f32 0.0, %v2561
      %v2563 = vpop.f32.mrf.mxu0
      %2564 = vmatprep.mubr.bf16.mxu0 0
      %2565 = vmatmul.mubr.bf16.gmra.mxu0 %v2443
      %v2566 = vpop.f32.mrf.mxu0
      %v2567 = vadd.f32 0.0, %v2566
      %v2568 = vpop.f32.mrf.mxu0
      %v2569 = vpop.f32.mrf.mxu0
      %v2570 = vadd.f32 0.0, %v2569
      %v2571 = vpop.f32.mrf.mxu0
      %2572 = vmatprep.mubr.bf16.mxu0 0
      %2573 = vmatmul.mubr.bf16.gmra.mxu0 %v2446
      %v2574 = vpop.f32.mrf.mxu0
      %v2575 = vadd.f32 0.0, %v2574
      %v2576 = vpop.f32.mrf.mxu0
      %v2577 = vpop.f32.mrf.mxu0
      %v2578 = vadd.f32 0.0, %v2577
      %v2579 = vpop.f32.mrf.mxu0
      %2580 = vmatprep.mubr.bf16.mxu0 0
      %2581 = vmatmul.mubr.bf16.gmra.mxu0 %v2449
      %v2582 = vpop.f32.mrf.mxu0
      %v2583 = vadd.f32 0.0, %v2582
      %v2584 = vpop.f32.mrf.mxu0
      %v2585 = vpop.f32.mrf.mxu0
      %v2586 = vadd.f32 0.0, %v2585
      %v2587 = vpop.f32.mrf.mxu0
      %2588 = vmatprep.mubr.bf16.mxu0 0
      %2589 = vmatmul.mubr.bf16.gmra.mxu0 %v2452
      %v2590 = vpop.f32.mrf.mxu0
      %v2591 = vadd.f32 0.0, %v2590
      %v2592 = vpop.f32.mrf.mxu0
      %v2593 = vpop.f32.mrf.mxu0
      %v2594 = vadd.f32 0.0, %v2593
      %v2595 = vpop.f32.mrf.mxu0
      %2596 = vmatprep.mubr.bf16.mxu0 0
      %2597 = vmatmul.mubr.bf16.gmra.mxu0 %v2455
      %v2598 = vpop.f32.mrf.mxu0
      %v2599 = vadd.f32 0.0, %v2598
      %v2600 = vpop.f32.mrf.mxu0
      %v2601 = vpop.f32.mrf.mxu0
      %v2602 = vadd.f32 0.0, %v2601
      %v2603 = vpop.f32.mrf.mxu0
      %2604 = vmatprep.mubr.bf16.mxu0 0
      %2605 = vmatmul.mubr.bf16.gmra.mxu0 %v2458
      %v2606 = vpop.f32.mrf.mxu0
      %v2607 = vadd.f32 0.0, %v2606
      %v2608 = vpop.f32.mrf.mxu0
      %v2609 = vpop.f32.mrf.mxu0
      %v2610 = vadd.f32 0.0, %v2609
      %v2611 = vpop.f32.mrf.mxu0
      %2612 = vmatprep.mubr.bf16.mxu0 0
      %2613 = vmatmul.mubr.bf16.gmra.mxu0 %v2461
      %v2614 = vpop.f32.mrf.mxu0
      %v2615 = vadd.f32 0.0, %v2614
      %v2616 = vpop.f32.mrf.mxu0
      %v2617 = vpop.f32.mrf.mxu0
      %v2618 = vadd.f32 0.0, %v2617
      %v2619 = vpop.f32.mrf.mxu0
      %2620 = vmatprep.mubr.bf16.mxu0 0
      %2621 = vmatmul.mubr.bf16.gmra.mxu0 %v2464
      %v2622 = vpop.f32.mrf.mxu0
      %v2623 = vadd.f32 0.0, %v2622
      %v2624 = vpop.f32.mrf.mxu0
      %v2625 = vpop.f32.mrf.mxu0
      %v2626 = vadd.f32 0.0, %v2625
      %v2627 = vpop.f32.mrf.mxu0
      %2628 = vmatprep.mubr.bf16.mxu0 0
      %2629 = vmatmul.mubr.bf16.gmra.mxu0 %v2467
      %v2630 = vpop.f32.mrf.mxu0
      %v2631 = vadd.f32 0.0, %v2630
      %v2632 = vpop.f32.mrf.mxu0
      %v2633 = vpop.f32.mrf.mxu0
      %v2634 = vadd.f32 0.0, %v2633
      %v2635 = vpop.f32.mrf.mxu0
      %2636 = vmatprep.mubr.bf16.mxu0 0
      %2637 = vmatmul.mubr.bf16.gmra.mxu0 %v2470
      %v2638 = vpop.f32.mrf.mxu0
      %v2639 = vadd.f32 0.0, %v2638
      %v2640 = vpop.f32.mrf.mxu0
      %v2641 = vpop.f32.mrf.mxu0
      %v2642 = vadd.f32 0.0, %v2641
      %v2643 = vpop.f32.mrf.mxu0
      %2644 = vmatprep.mubr.bf16.mxu0 0
      %2645 = vmatmul.mubr.bf16.gmra.mxu0 %v2473
      %v2646 = vpop.f32.mrf.mxu0
      %v2647 = vadd.f32 0.0, %v2646
      %v2648 = vpop.f32.mrf.mxu0
      %v2649 = vpop.f32.mrf.mxu0
      %v2650 = vadd.f32 0.0, %v2649
      %v2651 = vpop.f32.mrf.mxu0
      %2652 = vmatprep.mubr.bf16.mxu0 0
      %2653 = vmatmul.mubr.bf16.gmra.mxu0 %v2476
      %v2654 = vpop.f32.mrf.mxu0
      %v2655 = vadd.f32 0.0, %v2654
      %v2656 = vpop.f32.mrf.mxu0
      %v2657 = vpop.f32.mrf.mxu0
      %v2658 = vadd.f32 0.0, %v2657
      %v2659 = vpop.f32.mrf.mxu0
      %2660 = vmatprep.mubr.bf16.mxu0 0
      %2661 = vmatmul.mubr.bf16.gmra.mxu0 %v2479
      %v2662 = vpop.f32.mrf.mxu0
      %v2663 = vadd.f32 0.0, %v2662
      %v2664 = vpop.f32.mrf.mxu0
      %v2665 = vpop.f32.mrf.mxu0
      %v2666 = vadd.f32 0.0, %v2665
      %v2667 = vpop.f32.mrf.mxu0
      %2668 = vmatprep.mubr.bf16.mxu0 0
      %2669 = vmatmul.mubr.bf16.gmra.mxu0 %v2482
      %v2670 = vpop.f32.mrf.mxu0
      %v2671 = vadd.f32 0.0, %v2670
      %v2672 = vpop.f32.mrf.mxu0
      %v2673 = vpop.f32.mrf.mxu0
      %v2674 = vadd.f32 0.0, %v2673
      %v2675 = vpop.f32.mrf.mxu0
      %2676 = vmatprep.mubr.bf16.mxu0 0
      %2677 = vmatmul.mubr.bf16.gmra.mxu0 %v2485
      %v2678 = vpop.f32.mrf.mxu0
      %v2679 = vadd.f32 0.0, %v2678
      %v2680 = vpop.f32.mrf.mxu0
      %v2681 = vpop.f32.mrf.mxu0
      %v2682 = vadd.f32 0.0, %v2681
      %v2683 = vpop.f32.mrf.mxu0
      %2684 = vmatprep.mubr.bf16.mxu0 0
      %2685 = vmatmul.mubr.bf16.gmra.mxu0 %v2488
      %v2686 = vpop.f32.mrf.mxu0
      %v2687 = vadd.f32 0.0, %v2686
      %v2688 = vpop.f32.mrf.mxu0
      %v2689 = vpop.f32.mrf.mxu0
      %v2690 = vadd.f32 0.0, %v2689
      %v2691 = vpop.f32.mrf.mxu0
      %2692 = vmatprep.mubr.bf16.mxu0 0
      %2693 = vmatmul.mubr.bf16.gmra.mxu0 %v2491
      %v2694 = vpop.f32.mrf.mxu0
      %v2695 = vadd.f32 0.0, %v2694
      %v2696 = vpop.f32.mrf.mxu0
      %v2697 = vpop.f32.mrf.mxu0
      %v2698 = vadd.f32 0.0, %v2697
      %v2699 = vpop.f32.mrf.mxu0
      %2700 = vmatprep.mubr.bf16.mxu0 0
      %2701 = vmatmul.mubr.bf16.gmra.mxu0 %v2494
      %v2702 = vpop.f32.mrf.mxu0
      %v2703 = vadd.f32 0.0, %v2702
      %v2704 = vpop.f32.mrf.mxu0
      %v2705 = vpop.f32.mrf.mxu0
      %v2706 = vadd.f32 0.0, %v2705
      %v2707 = vpop.f32.mrf.mxu0
      %2708 = vmatprep.mubr.bf16.mxu0 0
      %2709 = vmatmul.mubr.bf16.gmra.mxu0 %v2497
      %v2710 = vpop.f32.mrf.mxu0
      %v2711 = vadd.f32 0.0, %v2710
      %v2712 = vpop.f32.mrf.mxu0
      %v2713 = vpop.f32.mrf.mxu0
      %v2714 = vadd.f32 0.0, %v2713
      %v2715 = vpop.f32.mrf.mxu0
      %2716 = vmatprep.mubr.bf16.mxu0 0
      %2717 = vmatmul.mubr.bf16.gmra.mxu0 %v2500
      %v2718 = vpop.f32.mrf.mxu0
      %v2719 = vadd.f32 0.0, %v2718
      %v2720 = vpop.f32.mrf.mxu0
      %v2721 = vpop.f32.mrf.mxu0
      %v2722 = vadd.f32 0.0, %v2721
      %v2723 = vpop.f32.mrf.mxu0
      %2724 = vmatprep.mubr.bf16.mxu0 0
      %2725 = vmatmul.mubr.bf16.gmra.mxu0 %v2503
      %v2726 = vpop.f32.mrf.mxu0
      %v2727 = vadd.f32 0.0, %v2726
      %v2728 = vpop.f32.mrf.mxu0
      %v2729 = vpop.f32.mrf.mxu0
      %v2730 = vadd.f32 0.0, %v2729
      %v2731 = vpop.f32.mrf.mxu0
      %2732 = vdwg.mxu0
      %v2733 = vadd.f32 %v1988, %v2543
      %v2734 = vadd.f32 %v1989, %v2546
      %v2735 = vadd.f32 %v1990, %v2551
      %v2736 = vadd.f32 %v1991, %v2554
      %v2737 = vadd.f32 %v1992, %v2559
      %v2738 = vadd.f32 %v1993, %v2562
      %v2739 = vadd.f32 %v1994, %v2567
      %v2740 = vadd.f32 %v1995, %v2570
      %v2741 = vadd.f32 %v1996, %v2575
      %v2742 = vadd.f32 %v1997, %v2578
      %v2743 = vadd.f32 %v1998, %v2583
      %v2744 = vadd.f32 %v1999, %v2586
      %v2745 = vadd.f32 %v2000, %v2591
      %v2746 = vadd.f32 %v2001, %v2594
      %v2747 = vadd.f32 %v2002, %v2599
      %v2748 = vadd.f32 %v2003, %v2602
      %v2749 = vadd.f32 %v2004, %v2607
      %v2750 = vadd.f32 %v2005, %v2610
      %v2751 = vadd.f32 %v2006, %v2615
      %v2752 = vadd.f32 %v2007, %v2618
      %v2753 = vadd.f32 %v2008, %v2623
      %v2754 = vadd.f32 %v2009, %v2626
      %v2755 = vadd.f32 %v2010, %v2631
      %v2756 = vadd.f32 %v2011, %v2634
      %v2757 = vadd.f32 %v2012, %v2639
      %v2758 = vadd.f32 %v2013, %v2642
      %v2759 = vadd.f32 %v2014, %v2647
      %v2760 = vadd.f32 %v2015, %v2650
      %v2761 = vadd.f32 %v2016, %v2655
      %v2762 = vadd.f32 %v2017, %v2658
      %v2763 = vadd.f32 %v2018, %v2663
      %v2764 = vadd.f32 %v2019, %v2666
      %v2765 = vadd.f32 %v2020, %v2671
      %v2766 = vadd.f32 %v2021, %v2674
      %v2767 = vadd.f32 %v2022, %v2679
      %v2768 = vadd.f32 %v2023, %v2682
      %v2769 = vadd.f32 %v2024, %v2687
      %v2770 = vadd.f32 %v2025, %v2690
      %v2771 = vadd.f32 %v2026, %v2695
      %v2772 = vadd.f32 %v2027, %v2698
      %v2773 = vadd.f32 %v2028, %v2703
      %v2774 = vadd.f32 %v2029, %v2706
      %v2775 = vadd.f32 %v2030, %v2711
      %v2776 = vadd.f32 %v2031, %v2714
      %v2777 = vadd.f32 %v2032, %v2719
      %v2778 = vadd.f32 %v2033, %v2722
      %v2779 = vadd.f32 %v2034, %v2727
      %v2780 = vadd.f32 %v2035, %v2730
      %v2781 = vld [vmem:[%s275 + $0x10] sm:$0xf]
      %v2782 = vpack.c.b16 %v2137, %v2136
      %v2783 = vpack.c.b16 %v2139, %v2138
      %v2784 = vpack.c.b16 %v2141, %v2140
      %v2785 = vpack.c.b16 %v2143, %v2142
      %v2786 = vpack.c.b16 %v2145, %v2144
      %v2787 = vpack.c.b16 %v2147, %v2146
      %v2788 = vpack.c.b16 %v2149, %v2148
      %v2789 = vpack.c.b16 %v2151, %v2150
      %v2790 = vpack.c.b16 %v2153, %v2152
      %v2791 = vpack.c.b16 %v2155, %v2154
      %v2792 = vpack.c.b16 %v2157, %v2156
      %v2793 = vpack.c.b16 %v2159, %v2158
      %v2794 = vpack.c.b16 %v2161, %v2160
      %v2795 = vpack.c.b16 %v2163, %v2162
      %v2796 = vpack.c.b16 %v2165, %v2164
      %v2797 = vpack.c.b16 %v2167, %v2166
      %v2798 = vpack.c.b16 %v2169, %v2168
      %v2799 = vpack.c.b16 %v2171, %v2170
      %v2800 = vpack.c.b16 %v2173, %v2172
      %v2801 = vpack.c.b16 %v2175, %v2174
      %v2802 = vpack.c.b16 %v2177, %v2176
      %v2803 = vpack.c.b16 %v2179, %v2178
      %v2804 = vpack.c.b16 %v2181, %v2180
      %v2805 = vpack.c.b16 %v2183, %v2182
      %v2807 = vsel %vm464, %v2782, 0
      %v2810 = vsel %vm464, %v2783, 0
      %v2813 = vsel %vm464, %v2784, 0
      %v2816 = vsel %vm464, %v2785, 0
      %v2819 = vsel %vm464, %v2786, 0
      %v2822 = vsel %vm464, %v2787, 0
      %v2825 = vsel %vm464, %v2788, 0
      %v2828 = vsel %vm464, %v2789, 0
      %v2831 = vsel %vm464, %v2790, 0
      %v2834 = vsel %vm464, %v2791, 0
      %v2837 = vsel %vm464, %v2792, 0
      %v2840 = vsel %vm464, %v2793, 0
      %v2843 = vsel %vm464, %v2794, 0
      %v2846 = vsel %vm464, %v2795, 0
      %v2849 = vsel %vm464, %v2796, 0
      %v2852 = vsel %vm464, %v2797, 0
      %v2855 = vsel %vm464, %v2798, 0
      %v2858 = vsel %vm464, %v2799, 0
      %v2861 = vsel %vm464, %v2800, 0
      %v2864 = vsel %vm464, %v2801, 0
      %v2867 = vsel %vm464, %v2802, 0
      %v2870 = vsel %vm464, %v2803, 0
      %v2873 = vsel %vm464, %v2804, 0
      %v2876 = vsel %vm464, %v2805, 0
      %v2879 = vsel %vm537, %v2781, 0
      %2881 = vmatprep.subr.bf16.mxu0 0
      %2882 = vmatpush1.bf16.msra.mxu0 0
      %2883 = vmatprep.subr.bf16.mxu0 0
      %2884 = vmatpush1.bf16.msra.mxu0 0
      %2885 = vmatprep.subr.bf16.mxu0 0
      %2886 = vmatpush1.bf16.msra.mxu0 0
      %2887 = vmatprep.subr.bf16.mxu0 0
      %2888 = vmatpush1.bf16.msra.mxu0 0
      %2889 = vmatprep.subr.bf16.mxu0 0
      %2890 = vmatpush1.bf16.msra.mxu0 0
      %2891 = vmatprep.subr.bf16.mxu0 0
      %2892 = vmatpush1.bf16.msra.mxu0 0
      %2893 = vmatprep.subr.bf16.mxu0 0
      %2894 = vmatpush1.bf16.msra.mxu0 0
      %2895 = vmatprep.subr.bf16.mxu0 0
      %2896 = vmatpush1.bf16.msra.mxu0 %v2879
      %2897 = vmatprep.subr.bf16.mxu0 0
      %2898 = vmatpush2.bf16.msra.mxu0 0
      %2899 = vmatprep.subr.bf16.mxu0 0
      %2900 = vmatpush2.bf16.msra.mxu0 0
      %2901 = vmatprep.subr.bf16.mxu0 0
      %2902 = vmatpush2.bf16.msra.mxu0 0
      %2903 = vmatprep.subr.bf16.mxu0 0
      %2904 = vmatpush2.bf16.msra.mxu0 0
      %2905 = vmatprep.subr.bf16.mxu0 0
      %2906 = vmatpush2.bf16.msra.mxu0 0
      %2907 = vmatprep.subr.bf16.mxu0 0
      %2908 = vmatpush2.bf16.msra.mxu0 0
      %2909 = vmatprep.subr.bf16.mxu0 0
      %2910 = vmatpush2.bf16.msra.mxu0 0
      %2911 = vmatprep.subr.bf16.mxu0 0
      %2912 = vmatpush2.bf16.msra.mxu0 0
      %2913 = vmatprep.mubr.bf16.mxu0 0
      %2914 = vmatmul.mubr.bf16.gmra.mxu0 %v2807
      %v2915 = vpop.f32.mrf.mxu0
      %v2916 = vadd.f32 0.0, %v2915
      %v2917 = vpop.f32.mrf.mxu0
      %v2918 = vpop.f32.mrf.mxu0
      %v2919 = vadd.f32 0.0, %v2918
      %v2920 = vpop.f32.mrf.mxu0
      %2921 = vmatprep.mubr.bf16.mxu0 0
      %2922 = vmatmul.mubr.bf16.gmra.mxu0 %v2810
      %v2923 = vpop.f32.mrf.mxu0
      %v2924 = vadd.f32 0.0, %v2923
      %v2925 = vpop.f32.mrf.mxu0
      %v2926 = vpop.f32.mrf.mxu0
      %v2927 = vadd.f32 0.0, %v2926
      %v2928 = vpop.f32.mrf.mxu0
      %2929 = vmatprep.mubr.bf16.mxu0 0
      %2930 = vmatmul.mubr.bf16.gmra.mxu0 %v2813
      %v2931 = vpop.f32.mrf.mxu0
      %v2932 = vadd.f32 0.0, %v2931
      %v2933 = vpop.f32.mrf.mxu0
      %v2934 = vpop.f32.mrf.mxu0
      %v2935 = vadd.f32 0.0, %v2934
      %v2936 = vpop.f32.mrf.mxu0
      %2937 = vmatprep.mubr.bf16.mxu0 0
      %2938 = vmatmul.mubr.bf16.gmra.mxu0 %v2816
      %v2939 = vpop.f32.mrf.mxu0
      %v2940 = vadd.f32 0.0, %v2939
      %v2941 = vpop.f32.mrf.mxu0
      %v2942 = vpop.f32.mrf.mxu0
      %v2943 = vadd.f32 0.0, %v2942
      %v2944 = vpop.f32.mrf.mxu0
      %2945 = vmatprep.mubr.bf16.mxu0 0
      %2946 = vmatmul.mubr.bf16.gmra.mxu0 %v2819
      %v2947 = vpop.f32.mrf.mxu0
      %v2948 = vadd.f32 0.0, %v2947
      %v2949 = vpop.f32.mrf.mxu0
      %v2950 = vpop.f32.mrf.mxu0
      %v2951 = vadd.f32 0.0, %v2950
      %v2952 = vpop.f32.mrf.mxu0
      %2953 = vmatprep.mubr.bf16.mxu0 0
      %2954 = vmatmul.mubr.bf16.gmra.mxu0 %v2822
      %v2955 = vpop.f32.mrf.mxu0
      %v2956 = vadd.f32 0.0, %v2955
      %v2957 = vpop.f32.mrf.mxu0
      %v2958 = vpop.f32.mrf.mxu0
      %v2959 = vadd.f32 0.0, %v2958
      %v2960 = vpop.f32.mrf.mxu0
      %2961 = vmatprep.mubr.bf16.mxu0 0
      %2962 = vmatmul.mubr.bf16.gmra.mxu0 %v2825
      %v2963 = vpop.f32.mrf.mxu0
      %v2964 = vadd.f32 0.0, %v2963
      %v2965 = vpop.f32.mrf.mxu0
      %v2966 = vpop.f32.mrf.mxu0
      %v2967 = vadd.f32 0.0, %v2966
      %v2968 = vpop.f32.mrf.mxu0
      %2969 = vmatprep.mubr.bf16.mxu0 0
      %2970 = vmatmul.mubr.bf16.gmra.mxu0 %v2828
      %v2971 = vpop.f32.mrf.mxu0
      %v2972 = vadd.f32 0.0, %v2971
      %v2973 = vpop.f32.mrf.mxu0
      %v2974 = vpop.f32.mrf.mxu0
      %v2975 = vadd.f32 0.0, %v2974
      %v2976 = vpop.f32.mrf.mxu0
      %2977 = vmatprep.mubr.bf16.mxu0 0
      %2978 = vmatmul.mubr.bf16.gmra.mxu0 %v2831
      %v2979 = vpop.f32.mrf.mxu0
      %v2980 = vadd.f32 0.0, %v2979
      %v2981 = vpop.f32.mrf.mxu0
      %v2982 = vpop.f32.mrf.mxu0
      %v2983 = vadd.f32 0.0, %v2982
      %v2984 = vpop.f32.mrf.mxu0
      %2985 = vmatprep.mubr.bf16.mxu0 0
      %2986 = vmatmul.mubr.bf16.gmra.mxu0 %v2834
      %v2987 = vpop.f32.mrf.mxu0
      %v2988 = vadd.f32 0.0, %v2987
      %v2989 = vpop.f32.mrf.mxu0
      %v2990 = vpop.f32.mrf.mxu0
      %v2991 = vadd.f32 0.0, %v2990
      %v2992 = vpop.f32.mrf.mxu0
      %2993 = vmatprep.mubr.bf16.mxu0 0
      %2994 = vmatmul.mubr.bf16.gmra.mxu0 %v2837
      %v2995 = vpop.f32.mrf.mxu0
      %v2996 = vadd.f32 0.0, %v2995
      %v2997 = vpop.f32.mrf.mxu0
      %v2998 = vpop.f32.mrf.mxu0
      %v2999 = vadd.f32 0.0, %v2998
      %v3000 = vpop.f32.mrf.mxu0
      %3001 = vmatprep.mubr.bf16.mxu0 0
      %3002 = vmatmul.mubr.bf16.gmra.mxu0 %v2840
      %v3003 = vpop.f32.mrf.mxu0
      %v3004 = vadd.f32 0.0, %v3003
      %v3005 = vpop.f32.mrf.mxu0
      %v3006 = vpop.f32.mrf.mxu0
      %v3007 = vadd.f32 0.0, %v3006
      %v3008 = vpop.f32.mrf.mxu0
      %3009 = vmatprep.mubr.bf16.mxu0 0
      %3010 = vmatmul.mubr.bf16.gmra.mxu0 %v2843
      %v3011 = vpop.f32.mrf.mxu0
      %v3012 = vadd.f32 0.0, %v3011
      %v3013 = vpop.f32.mrf.mxu0
      %v3014 = vpop.f32.mrf.mxu0
      %v3015 = vadd.f32 0.0, %v3014
      %v3016 = vpop.f32.mrf.mxu0
      %3017 = vmatprep.mubr.bf16.mxu0 0
      %3018 = vmatmul.mubr.bf16.gmra.mxu0 %v2846
      %v3019 = vpop.f32.mrf.mxu0
      %v3020 = vadd.f32 0.0, %v3019
      %v3021 = vpop.f32.mrf.mxu0
      %v3022 = vpop.f32.mrf.mxu0
      %v3023 = vadd.f32 0.0, %v3022
      %v3024 = vpop.f32.mrf.mxu0
      %3025 = vmatprep.mubr.bf16.mxu0 0
      %3026 = vmatmul.mubr.bf16.gmra.mxu0 %v2849
      %v3027 = vpop.f32.mrf.mxu0
      %v3028 = vadd.f32 0.0, %v3027
      %v3029 = vpop.f32.mrf.mxu0
      %v3030 = vpop.f32.mrf.mxu0
      %v3031 = vadd.f32 0.0, %v3030
      %v3032 = vpop.f32.mrf.mxu0
      %3033 = vmatprep.mubr.bf16.mxu0 0
      %3034 = vmatmul.mubr.bf16.gmra.mxu0 %v2852
      %v3035 = vpop.f32.mrf.mxu0
      %v3036 = vadd.f32 0.0, %v3035
      %v3037 = vpop.f32.mrf.mxu0
      %v3038 = vpop.f32.mrf.mxu0
      %v3039 = vadd.f32 0.0, %v3038
      %v3040 = vpop.f32.mrf.mxu0
      %3041 = vmatprep.mubr.bf16.mxu0 0
      %3042 = vmatmul.mubr.bf16.gmra.mxu0 %v2855
      %v3043 = vpop.f32.mrf.mxu0
      %v3044 = vadd.f32 0.0, %v3043
      %v3045 = vpop.f32.mrf.mxu0
      %v3046 = vpop.f32.mrf.mxu0
      %v3047 = vadd.f32 0.0, %v3046
      %v3048 = vpop.f32.mrf.mxu0
      %3049 = vmatprep.mubr.bf16.mxu0 0
      %3050 = vmatmul.mubr.bf16.gmra.mxu0 %v2858
      %v3051 = vpop.f32.mrf.mxu0
      %v3052 = vadd.f32 0.0, %v3051
      %v3053 = vpop.f32.mrf.mxu0
      %v3054 = vpop.f32.mrf.mxu0
      %v3055 = vadd.f32 0.0, %v3054
      %v3056 = vpop.f32.mrf.mxu0
      %3057 = vmatprep.mubr.bf16.mxu0 0
      %3058 = vmatmul.mubr.bf16.gmra.mxu0 %v2861
      %v3059 = vpop.f32.mrf.mxu0
      %v3060 = vadd.f32 0.0, %v3059
      %v3061 = vpop.f32.mrf.mxu0
      %v3062 = vpop.f32.mrf.mxu0
      %v3063 = vadd.f32 0.0, %v3062
      %v3064 = vpop.f32.mrf.mxu0
      %3065 = vmatprep.mubr.bf16.mxu0 0
      %3066 = vmatmul.mubr.bf16.gmra.mxu0 %v2864
      %v3067 = vpop.f32.mrf.mxu0
      %v3068 = vadd.f32 0.0, %v3067
      %v3069 = vpop.f32.mrf.mxu0
      %v3070 = vpop.f32.mrf.mxu0
      %v3071 = vadd.f32 0.0, %v3070
      %v3072 = vpop.f32.mrf.mxu0
      %3073 = vmatprep.mubr.bf16.mxu0 0
      %3074 = vmatmul.mubr.bf16.gmra.mxu0 %v2867
      %v3075 = vpop.f32.mrf.mxu0
      %v3076 = vadd.f32 0.0, %v3075
      %v3077 = vpop.f32.mrf.mxu0
      %v3078 = vpop.f32.mrf.mxu0
      %v3079 = vadd.f32 0.0, %v3078
      %v3080 = vpop.f32.mrf.mxu0
      %3081 = vmatprep.mubr.bf16.mxu0 0
      %3082 = vmatmul.mubr.bf16.gmra.mxu0 %v2870
      %v3083 = vpop.f32.mrf.mxu0
      %v3084 = vadd.f32 0.0, %v3083
      %v3085 = vpop.f32.mrf.mxu0
      %v3086 = vpop.f32.mrf.mxu0
      %v3087 = vadd.f32 0.0, %v3086
      %v3088 = vpop.f32.mrf.mxu0
      %3089 = vmatprep.mubr.bf16.mxu0 0
      %3090 = vmatmul.mubr.bf16.gmra.mxu0 %v2873
      %v3091 = vpop.f32.mrf.mxu0
      %v3092 = vadd.f32 0.0, %v3091
      %v3093 = vpop.f32.mrf.mxu0
      %v3094 = vpop.f32.mrf.mxu0
      %v3095 = vadd.f32 0.0, %v3094
      %v3096 = vpop.f32.mrf.mxu0
      %3097 = vmatprep.mubr.bf16.mxu0 0
      %3098 = vmatmul.mubr.bf16.gmra.mxu0 %v2876
      %v3099 = vpop.f32.mrf.mxu0
      %v3100 = vadd.f32 0.0, %v3099
      %v3101 = vpop.f32.mrf.mxu0
      %v3102 = vpop.f32.mrf.mxu0
      %v3103 = vadd.f32 0.0, %v3102
      %v3104 = vpop.f32.mrf.mxu0
      %3105 = vdwg.mxu0
      %v3106 = vadd.f32 %v2733, %v2916
      %v3107 = vadd.f32 %v2734, %v2919
      %v3108 = vadd.f32 %v2735, %v2924
      %v3109 = vadd.f32 %v2736, %v2927
      %v3110 = vadd.f32 %v2737, %v2932
      %v3111 = vadd.f32 %v2738, %v2935
      %v3112 = vadd.f32 %v2739, %v2940
      %v3113 = vadd.f32 %v2740, %v2943
      %v3114 = vadd.f32 %v2741, %v2948
      %v3115 = vadd.f32 %v2742, %v2951
      %v3116 = vadd.f32 %v2743, %v2956
      %v3117 = vadd.f32 %v2744, %v2959
      %v3118 = vadd.f32 %v2745, %v2964
      %v3119 = vadd.f32 %v2746, %v2967
      %v3120 = vadd.f32 %v2747, %v2972
      %v3121 = vadd.f32 %v2748, %v2975
      %v3122 = vadd.f32 %v2749, %v2980
      %v3123 = vadd.f32 %v2750, %v2983
      %v3124 = vadd.f32 %v2751, %v2988
      %v3125 = vadd.f32 %v2752, %v2991
      %v3126 = vadd.f32 %v2753, %v2996
      %v3127 = vadd.f32 %v2754, %v2999
      %v3128 = vadd.f32 %v2755, %v3004
      %v3129 = vadd.f32 %v2756, %v3007
      %v3130 = vadd.f32 %v2757, %v3012
      %v3131 = vadd.f32 %v2758, %v3015
      %v3132 = vadd.f32 %v2759, %v3020
      %v3133 = vadd.f32 %v2760, %v3023
      %v3134 = vadd.f32 %v2761, %v3028
      %v3135 = vadd.f32 %v2762, %v3031
      %v3136 = vadd.f32 %v2763, %v3036
      %v3137 = vadd.f32 %v2764, %v3039
      %v3138 = vadd.f32 %v2765, %v3044
      %v3139 = vadd.f32 %v2766, %v3047
      %v3140 = vadd.f32 %v2767, %v3052
      %v3141 = vadd.f32 %v2768, %v3055
      %v3142 = vadd.f32 %v2769, %v3060
      %v3143 = vadd.f32 %v2770, %v3063
      %v3144 = vadd.f32 %v2771, %v3068
      %v3145 = vadd.f32 %v2772, %v3071
      %v3146 = vadd.f32 %v2773, %v3076
      %v3147 = vadd.f32 %v2774, %v3079
      %v3148 = vadd.f32 %v2775, %v3084
      %v3149 = vadd.f32 %v2776, %v3087
      %v3150 = vadd.f32 %v2777, %v3092
      %v3151 = vadd.f32 %v2778, %v3095
      %v3152 = vadd.f32 %v2779, %v3100
      %v3153 = vadd.f32 %v2780, %v3103
      %v3154 = vld [vmem:[%s271 + $0x10] sm:$0xf]
      %v3155 = vld [vmem:[%s271 + $0x14] sm:$0xf]
      %v3156 = vld [vmem:[%s271 + $0x18] sm:$0xf]
      %v3157 = vld [vmem:[%s271 + $0x1c] sm:$0xf]
      %v3158 = vld [vmem:[%s271 + $0x20] sm:$0xf]
      %v3159 = vld [vmem:[%s271 + $0x24] sm:$0xf]
      %v3160 = vld [vmem:[%s271 + $0x28] sm:$0xf]
      %v3161 = vld [vmem:[%s271 + $0x2c] sm:$0xf]
      %v3162 = vld [vmem:[%s271 + $0x30] sm:$0xf]
      %v3163 = vld [vmem:[%s271 + $0x34] sm:$0xf]
      %v3164 = vld [vmem:[%s271 + $0x38] sm:$0xf]
      %v3165 = vld [vmem:[%s271 + $0x3c] sm:$0xf]
      %v3166 = vld [vmem:[%s271 + $0x40] sm:$0xf]
      %v3167 = vld [vmem:[%s271 + $0x44] sm:$0xf]
      %v3168 = vld [vmem:[%s271 + $0x48] sm:$0xf]
      %v3169 = vld [vmem:[%s271 + $0x4c] sm:$0xf]
      %v3170 = vld [vmem:[%s271 + $0x50] sm:$0xf]
      %v3171 = vld [vmem:[%s271 + $0x54] sm:$0xf]
      %v3172 = vld [vmem:[%s271 + $0x58] sm:$0xf]
      %v3173 = vld [vmem:[%s271 + $0x5c] sm:$0xf]
      %v3174 = vld [vmem:[%s271 + $0x60] sm:$0xf]
      %v3175 = vld [vmem:[%s271 + $0x64] sm:$0xf]
      %v3176 = vld [vmem:[%s271 + $0x68] sm:$0xf]
      %v3177 = vld [vmem:[%s271 + $0x6c] sm:$0xf]
      %v3178 = vld [vmem:[%s271 + $0x70] sm:$0xf]
      %v3179 = vld [vmem:[%s271 + $0x74] sm:$0xf]
      %v3180 = vld [vmem:[%s271 + $0x78] sm:$0xf]
      %v3181 = vld [vmem:[%s271 + $0x7c] sm:$0xf]
      %v3182 = vld [vmem:[%s271 + $0x80] sm:$0xf]
      %v3183 = vld [vmem:[%s271 + $0x84] sm:$0xf]
      %v3184 = vld [vmem:[%s271 + $0x88] sm:$0xf]
      %v3185 = vld [vmem:[%s271 + $0x8c] sm:$0xf]
      %v3186 = vld [vmem:[%s271 + $0x90] sm:$0xf]
      %v3187 = vld [vmem:[%s271 + $0x94] sm:$0xf]
      %v3188 = vld [vmem:[%s271 + $0x98] sm:$0xf]
      %v3189 = vld [vmem:[%s271 + $0x9c] sm:$0xf]
      %v3190 = vld [vmem:[%s271 + $0xa0] sm:$0xf]
      %v3191 = vld [vmem:[%s271 + $0xa4] sm:$0xf]
      %v3192 = vld [vmem:[%s271 + $0xa8] sm:$0xf]
      %v3193 = vld [vmem:[%s271 + $0xac] sm:$0xf]
      %v3194 = vld [vmem:[%s271 + $0xb0] sm:$0xf]
      %v3195 = vld [vmem:[%s271 + $0xb4] sm:$0xf]
      %v3196 = vld [vmem:[%s271 + $0xb8] sm:$0xf]
      %v3197 = vld [vmem:[%s271 + $0xbc] sm:$0xf]
      %v3198 = vld [vmem:[%s271 + $0xc0] sm:$0xf]
      %v3199 = vld [vmem:[%s271 + $0xc4] sm:$0xf]
      %v3200 = vld [vmem:[%s271 + $0xc8] sm:$0xf]
      %v3201 = vld [vmem:[%s271 + $0xcc] sm:$0xf]
      %v3202 = vld [vmem:[%s271 + $0xd0] sm:$0x1]
      %v3203 = vld [vmem:[%s275 + $0x14] sm:$0xf]
      %v3253 = vunpack.c.l.b16 %v3154
      %v3254 = vunpack.c.l.b16 %v3155
      %v3255 = vunpack.c.l.b16 %v3156
      %v3256 = vunpack.c.l.b16 %v3157
      %v3257 = vunpack.c.l.b16 %v3158
      %v3258 = vunpack.c.l.b16 %v3159
      %v3259 = vunpack.c.l.b16 %v3160
      %v3260 = vunpack.c.l.b16 %v3161
      %v3261 = vunpack.c.l.b16 %v3162
      %v3262 = vunpack.c.l.b16 %v3163
      %v3263 = vunpack.c.l.b16 %v3164
      %v3264 = vunpack.c.l.b16 %v3165
      %v3265 = vunpack.c.l.b16 %v3166
      %v3266 = vunpack.c.l.b16 %v3167
      %v3267 = vunpack.c.l.b16 %v3168
      %v3268 = vunpack.c.l.b16 %v3169
      %v3269 = vunpack.c.l.b16 %v3170
      %v3270 = vunpack.c.l.b16 %v3171
      %v3271 = vunpack.c.l.b16 %v3172
      %v3272 = vunpack.c.l.b16 %v3173
      %v3273 = vunpack.c.l.b16 %v3174
      %v3274 = vunpack.c.l.b16 %v3175
      %v3275 = vunpack.c.l.b16 %v3176
      %v3276 = vunpack.c.l.b16 %v3177
      %v3277 = vunpack.c.l.b16 %v3178
      %v3278 = vunpack.c.l.b16 %v3179
      %v3279 = vunpack.c.l.b16 %v3180
      %v3280 = vunpack.c.l.b16 %v3181
      %v3281 = vunpack.c.l.b16 %v3182
      %v3282 = vunpack.c.l.b16 %v3183
      %v3283 = vunpack.c.l.b16 %v3184
      %v3284 = vunpack.c.l.b16 %v3185
      %v3285 = vunpack.c.l.b16 %v3186
      %v3286 = vunpack.c.l.b16 %v3187
      %v3287 = vunpack.c.l.b16 %v3188
      %v3288 = vunpack.c.l.b16 %v3189
      %v3289 = vunpack.c.l.b16 %v3190
      %v3290 = vunpack.c.l.b16 %v3191
      %v3291 = vunpack.c.l.b16 %v3192
      %v3292 = vunpack.c.l.b16 %v3193
      %v3293 = vunpack.c.l.b16 %v3194
      %v3294 = vunpack.c.l.b16 %v3195
      %v3295 = vunpack.c.l.b16 %v3196
      %v3296 = vunpack.c.l.b16 %v3197
      %v3297 = vunpack.c.l.b16 %v3198
      %v3298 = vunpack.c.l.b16 %v3199
      %v3299 = vunpack.c.l.b16 %v3200
      %v3300 = vunpack.c.l.b16 %v3201
      %v3301 = vunpack.c.l.b16 %v3202
      %v3302 = vpack.c.b16 %v3254, %v3253
      %v3303 = vpack.c.b16 %v3256, %v3255
      %v3304 = vpack.c.b16 %v3258, %v3257
      %v3305 = vpack.c.b16 %v3260, %v3259
      %v3306 = vpack.c.b16 %v3262, %v3261
      %v3307 = vpack.c.b16 %v3264, %v3263
      %v3308 = vpack.c.b16 %v3266, %v3265
      %v3309 = vpack.c.b16 %v3268, %v3267
      %v3310 = vpack.c.b16 %v3270, %v3269
      %v3311 = vpack.c.b16 %v3272, %v3271
      %v3312 = vpack.c.b16 %v3274, %v3273
      %v3313 = vpack.c.b16 %v3276, %v3275
      %v3314 = vpack.c.b16 %v3278, %v3277
      %v3315 = vpack.c.b16 %v3280, %v3279
      %v3316 = vpack.c.b16 %v3282, %v3281
      %v3317 = vpack.c.b16 %v3284, %v3283
      %v3318 = vpack.c.b16 %v3286, %v3285
      %v3319 = vpack.c.b16 %v3288, %v3287
      %v3320 = vpack.c.b16 %v3290, %v3289
      %v3321 = vpack.c.b16 %v3292, %v3291
      %v3322 = vpack.c.b16 %v3294, %v3293
      %v3323 = vpack.c.b16 %v3296, %v3295
      %v3324 = vpack.c.b16 %v3298, %v3297
      %v3325 = vpack.c.b16 %v3300, %v3299
      %v3326 = vpack.c.b16 %v3301, %v3301
      %v3328 = vshrl.u32 %v3302, 16
      %v3330 = vshll.u32 %v3302, 16
      %v3332 = vrot.slane %v3330, 1
      %v3333 = vor.u32 %v3328, %v3332
      %v3335 = vshll.u32 %v3303, 16
      %v3337 = vrot.slane %v3335, 1
      %v3338 = vsel %vm1491, %v3333, %v3337
      %v3339 = vshrl.u32 %v3303, 16
      %v3341 = vor.u32 %v3339, %v3337
      %v3343 = vshll.u32 %v3304, 16
      %v3345 = vrot.slane %v3343, 1
      %v3346 = vsel %vm1491, %v3341, %v3345
      %v3347 = vshrl.u32 %v3304, 16
      %v3349 = vor.u32 %v3347, %v3345
      %v3351 = vshll.u32 %v3305, 16
      %v3353 = vrot.slane %v3351, 1
      %v3354 = vsel %vm1491, %v3349, %v3353
      %v3355 = vshrl.u32 %v3305, 16
      %v3357 = vor.u32 %v3355, %v3353
      %v3359 = vshll.u32 %v3306, 16
      %v3361 = vrot.slane %v3359, 1
      %v3362 = vsel %vm1491, %v3357, %v3361
      %v3363 = vshrl.u32 %v3306, 16
      %v3365 = vor.u32 %v3363, %v3361
      %v3367 = vshll.u32 %v3307, 16
      %v3369 = vrot.slane %v3367, 1
      %v3370 = vsel %vm1491, %v3365, %v3369
      %v3371 = vshrl.u32 %v3307, 16
      %v3373 = vor.u32 %v3371, %v3369
      %v3375 = vshll.u32 %v3308, 16
      %v3377 = vrot.slane %v3375, 1
      %v3378 = vsel %vm1491, %v3373, %v3377
      %v3379 = vshrl.u32 %v3308, 16
      %v3381 = vor.u32 %v3379, %v3377
      %v3383 = vshll.u32 %v3309, 16
      %v3385 = vrot.slane %v3383, 1
      %v3386 = vsel %vm1491, %v3381, %v3385
      %v3387 = vshrl.u32 %v3309, 16
      %v3389 = vor.u32 %v3387, %v3385
      %v3391 = vshll.u32 %v3310, 16
      %v3393 = vrot.slane %v3391, 1
      %v3394 = vsel %vm1491, %v3389, %v3393
      %v3395 = vshrl.u32 %v3310, 16
      %v3397 = vor.u32 %v3395, %v3393
      %v3399 = vshll.u32 %v3311, 16
      %v3401 = vrot.slane %v3399, 1
      %v3402 = vsel %vm1491, %v3397, %v3401
      %v3403 = vshrl.u32 %v3311, 16
      %v3405 = vor.u32 %v3403, %v3401
      %v3407 = vshll.u32 %v3312, 16
      %v3409 = vrot.slane %v3407, 1
      %v3410 = vsel %vm1491, %v3405, %v3409
      %v3411 = vshrl.u32 %v3312, 16
      %v3413 = vor.u32 %v3411, %v3409
      %v3415 = vshll.u32 %v3313, 16
      %v3417 = vrot.slane %v3415, 1
      %v3418 = vsel %vm1491, %v3413, %v3417
      %v3419 = vshrl.u32 %v3313, 16
      %v3421 = vor.u32 %v3419, %v3417
      %v3423 = vshll.u32 %v3314, 16
      %v3425 = vrot.slane %v3423, 1
      %v3426 = vsel %vm1491, %v3421, %v3425
      %v3427 = vshrl.u32 %v3314, 16
      %v3429 = vor.u32 %v3427, %v3425
      %v3431 = vshll.u32 %v3315, 16
      %v3433 = vrot.slane %v3431, 1
      %v3434 = vsel %vm1491, %v3429, %v3433
      %v3435 = vshrl.u32 %v3315, 16
      %v3437 = vor.u32 %v3435, %v3433
      %v3439 = vshll.u32 %v3316, 16
      %v3441 = vrot.slane %v3439, 1
      %v3442 = vsel %vm1491, %v3437, %v3441
      %v3443 = vshrl.u32 %v3316, 16
      %v3445 = vor.u32 %v3443, %v3441
      %v3447 = vshll.u32 %v3317, 16
      %v3449 = vrot.slane %v3447, 1
      %v3450 = vsel %vm1491, %v3445, %v3449
      %v3451 = vshrl.u32 %v3317, 16
      %v3453 = vor.u32 %v3451, %v3449
      %v3455 = vshll.u32 %v3318, 16
      %v3457 = vrot.slane %v3455, 1
      %v3458 = vsel %vm1491, %v3453, %v3457
      %v3459 = vshrl.u32 %v3318, 16
      %v3461 = vor.u32 %v3459, %v3457
      %v3463 = vshll.u32 %v3319, 16
      %v3465 = vrot.slane %v3463, 1
      %v3466 = vsel %vm1491, %v3461, %v3465
      %v3467 = vshrl.u32 %v3319, 16
      %v3469 = vor.u32 %v3467, %v3465
      %v3471 = vshll.u32 %v3320, 16
      %v3473 = vrot.slane %v3471, 1
      %v3474 = vsel %vm1491, %v3469, %v3473
      %v3475 = vshrl.u32 %v3320, 16
      %v3477 = vor.u32 %v3475, %v3473
      %v3479 = vshll.u32 %v3321, 16
      %v3481 = vrot.slane %v3479, 1
      %v3482 = vsel %vm1491, %v3477, %v3481
      %v3483 = vshrl.u32 %v3321, 16
      %v3485 = vor.u32 %v3483, %v3481
      %v3487 = vshll.u32 %v3322, 16
      %v3489 = vrot.slane %v3487, 1
      %v3490 = vsel %vm1491, %v3485, %v3489
      %v3491 = vshrl.u32 %v3322, 16
      %v3493 = vor.u32 %v3491, %v3489
      %v3495 = vshll.u32 %v3323, 16
      %v3497 = vrot.slane %v3495, 1
      %v3498 = vsel %vm1491, %v3493, %v3497
      %v3499 = vshrl.u32 %v3323, 16
      %v3501 = vor.u32 %v3499, %v3497
      %v3503 = vshll.u32 %v3324, 16
      %v3505 = vrot.slane %v3503, 1
      %v3506 = vsel %vm1491, %v3501, %v3505
      %v3507 = vshrl.u32 %v3324, 16
      %v3509 = vor.u32 %v3507, %v3505
      %v3511 = vshll.u32 %v3325, 16
      %v3513 = vrot.slane %v3511, 1
      %v3514 = vsel %vm1491, %v3509, %v3513
      %v3515 = vshrl.u32 %v3325, 16
      %v3517 = vor.u32 %v3515, %v3513
      %v3519 = vshll.u32 %v3326, 16
      %v3521 = vrot.slane %v3519, 1
      %v3522 = vsel %vm1491, %v3517, %v3521
      %v3524 = vsel %vm464, %v3338, 0
      %v3527 = vsel %vm464, %v3346, 0
      %v3530 = vsel %vm464, %v3354, 0
      %v3533 = vsel %vm464, %v3362, 0
      %v3536 = vsel %vm464, %v3370, 0
      %v3539 = vsel %vm464, %v3378, 0
      %v3542 = vsel %vm464, %v3386, 0
      %v3545 = vsel %vm464, %v3394, 0
      %v3548 = vsel %vm464, %v3402, 0
      %v3551 = vsel %vm464, %v3410, 0
      %v3554 = vsel %vm464, %v3418, 0
      %v3557 = vsel %vm464, %v3426, 0
      %v3560 = vsel %vm464, %v3434, 0
      %v3563 = vsel %vm464, %v3442, 0
      %v3566 = vsel %vm464, %v3450, 0
      %v3569 = vsel %vm464, %v3458, 0
      %v3572 = vsel %vm464, %v3466, 0
      %v3575 = vsel %vm464, %v3474, 0
      %v3578 = vsel %vm464, %v3482, 0
      %v3581 = vsel %vm464, %v3490, 0
      %v3584 = vsel %vm464, %v3498, 0
      %v3587 = vsel %vm464, %v3506, 0
      %v3590 = vsel %vm464, %v3514, 0
      %v3593 = vsel %vm464, %v3522, 0
      %v3596 = vsel %vm537, %v3203, 0
      %3598 = vmatprep.subr.bf16.mxu0 0
      %3599 = vmatpush1.bf16.msra.mxu0 0
      %3600 = vmatprep.subr.bf16.mxu0 0
      %3601 = vmatpush1.bf16.msra.mxu0 0
      %3602 = vmatprep.subr.bf16.mxu0 0
      %3603 = vmatpush1.bf16.msra.mxu0 0
      %3604 = vmatprep.subr.bf16.mxu0 0
      %3605 = vmatpush1.bf16.msra.mxu0 0
      %3606 = vmatprep.subr.bf16.mxu0 0
      %3607 = vmatpush1.bf16.msra.mxu0 0
      %3608 = vmatprep.subr.bf16.mxu0 0
      %3609 = vmatpush1.bf16.msra.mxu0 0
      %3610 = vmatprep.subr.bf16.mxu0 0
      %3611 = vmatpush1.bf16.msra.mxu0 0
      %3612 = vmatprep.subr.bf16.mxu0 0
      %3613 = vmatpush1.bf16.msra.mxu0 %v3596
      %3614 = vmatprep.subr.bf16.mxu0 0
      %3615 = vmatpush2.bf16.msra.mxu0 0
      %3616 = vmatprep.subr.bf16.mxu0 0
      %3617 = vmatpush2.bf16.msra.mxu0 0
      %3618 = vmatprep.subr.bf16.mxu0 0
      %3619 = vmatpush2.bf16.msra.mxu0 0
      %3620 = vmatprep.subr.bf16.mxu0 0
      %3621 = vmatpush2.bf16.msra.mxu0 0
      %3622 = vmatprep.subr.bf16.mxu0 0
      %3623 = vmatpush2.bf16.msra.mxu0 0
      %3624 = vmatprep.subr.bf16.mxu0 0
      %3625 = vmatpush2.bf16.msra.mxu0 0
      %3626 = vmatprep.subr.bf16.mxu0 0
      %3627 = vmatpush2.bf16.msra.mxu0 0
      %3628 = vmatprep.subr.bf16.mxu0 0
      %3629 = vmatpush2.bf16.msra.mxu0 0
      %3630 = vmatprep.mubr.bf16.mxu0 0
      %3631 = vmatmul.mubr.bf16.gmra.mxu0 %v3524
      %v3632 = vpop.f32.mrf.mxu0
      %v3633 = vadd.f32 0.0, %v3632
      %v3634 = vpop.f32.mrf.mxu0
      %v3635 = vpop.f32.mrf.mxu0
      %v3636 = vadd.f32 0.0, %v3635
      %v3637 = vpop.f32.mrf.mxu0
      %3638 = vmatprep.mubr.bf16.mxu0 0
      %3639 = vmatmul.mubr.bf16.gmra.mxu0 %v3527
      %v3640 = vpop.f32.mrf.mxu0
      %v3641 = vadd.f32 0.0, %v3640
      %v3642 = vpop.f32.mrf.mxu0
      %v3643 = vpop.f32.mrf.mxu0
      %v3644 = vadd.f32 0.0, %v3643
      %v3645 = vpop.f32.mrf.mxu0
      %3646 = vmatprep.mubr.bf16.mxu0 0
      %3647 = vmatmul.mubr.bf16.gmra.mxu0 %v3530
      %v3648 = vpop.f32.mrf.mxu0
      %v3649 = vadd.f32 0.0, %v3648
      %v3650 = vpop.f32.mrf.mxu0
      %v3651 = vpop.f32.mrf.mxu0
      %v3652 = vadd.f32 0.0, %v3651
      %v3653 = vpop.f32.mrf.mxu0
      %3654 = vmatprep.mubr.bf16.mxu0 0
      %3655 = vmatmul.mubr.bf16.gmra.mxu0 %v3533
      %v3656 = vpop.f32.mrf.mxu0
      %v3657 = vadd.f32 0.0, %v3656
      %v3658 = vpop.f32.mrf.mxu0
      %v3659 = vpop.f32.mrf.mxu0
      %v3660 = vadd.f32 0.0, %v3659
      %v3661 = vpop.f32.mrf.mxu0
      %3662 = vmatprep.mubr.bf16.mxu0 0
      %3663 = vmatmul.mubr.bf16.gmra.mxu0 %v3536
      %v3664 = vpop.f32.mrf.mxu0
      %v3665 = vadd.f32 0.0, %v3664
      %v3666 = vpop.f32.mrf.mxu0
      %v3667 = vpop.f32.mrf.mxu0
      %v3668 = vadd.f32 0.0, %v3667
      %v3669 = vpop.f32.mrf.mxu0
      %3670 = vmatprep.mubr.bf16.mxu0 0
      %3671 = vmatmul.mubr.bf16.gmra.mxu0 %v3539
      %v3672 = vpop.f32.mrf.mxu0
      %v3673 = vadd.f32 0.0, %v3672
      %v3674 = vpop.f32.mrf.mxu0
      %v3675 = vpop.f32.mrf.mxu0
      %v3676 = vadd.f32 0.0, %v3675
      %v3677 = vpop.f32.mrf.mxu0
      %3678 = vmatprep.mubr.bf16.mxu0 0
      %3679 = vmatmul.mubr.bf16.gmra.mxu0 %v3542
      %v3680 = vpop.f32.mrf.mxu0
      %v3681 = vadd.f32 0.0, %v3680
      %v3682 = vpop.f32.mrf.mxu0
      %v3683 = vpop.f32.mrf.mxu0
      %v3684 = vadd.f32 0.0, %v3683
      %v3685 = vpop.f32.mrf.mxu0
      %3686 = vmatprep.mubr.bf16.mxu0 0
      %3687 = vmatmul.mubr.bf16.gmra.mxu0 %v3545
      %v3688 = vpop.f32.mrf.mxu0
      %v3689 = vadd.f32 0.0, %v3688
      %v3690 = vpop.f32.mrf.mxu0
      %v3691 = vpop.f32.mrf.mxu0
      %v3692 = vadd.f32 0.0, %v3691
      %v3693 = vpop.f32.mrf.mxu0
      %3694 = vmatprep.mubr.bf16.mxu0 0
      %3695 = vmatmul.mubr.bf16.gmra.mxu0 %v3548
      %v3696 = vpop.f32.mrf.mxu0
      %v3697 = vadd.f32 0.0, %v3696
      %v3698 = vpop.f32.mrf.mxu0
      %v3699 = vpop.f32.mrf.mxu0
      %v3700 = vadd.f32 0.0, %v3699
      %v3701 = vpop.f32.mrf.mxu0
      %3702 = vmatprep.mubr.bf16.mxu0 0
      %3703 = vmatmul.mubr.bf16.gmra.mxu0 %v3551
      %v3704 = vpop.f32.mrf.mxu0
      %v3705 = vadd.f32 0.0, %v3704
      %v3706 = vpop.f32.mrf.mxu0
      %v3707 = vpop.f32.mrf.mxu0
      %v3708 = vadd.f32 0.0, %v3707
      %v3709 = vpop.f32.mrf.mxu0
      %3710 = vmatprep.mubr.bf16.mxu0 0
      %3711 = vmatmul.mubr.bf16.gmra.mxu0 %v3554
      %v3712 = vpop.f32.mrf.mxu0
      %v3713 = vadd.f32 0.0, %v3712
      %v3714 = vpop.f32.mrf.mxu0
      %v3715 = vpop.f32.mrf.mxu0
      %v3716 = vadd.f32 0.0, %v3715
      %v3717 = vpop.f32.mrf.mxu0
      %3718 = vmatprep.mubr.bf16.mxu0 0
      %3719 = vmatmul.mubr.bf16.gmra.mxu0 %v3557
      %v3720 = vpop.f32.mrf.mxu0
      %v3721 = vadd.f32 0.0, %v3720
      %v3722 = vpop.f32.mrf.mxu0
      %v3723 = vpop.f32.mrf.mxu0
      %v3724 = vadd.f32 0.0, %v3723
      %v3725 = vpop.f32.mrf.mxu0
      %3726 = vmatprep.mubr.bf16.mxu0 0
      %3727 = vmatmul.mubr.bf16.gmra.mxu0 %v3560
      %v3728 = vpop.f32.mrf.mxu0
      %v3729 = vadd.f32 0.0, %v3728
      %v3730 = vpop.f32.mrf.mxu0
      %v3731 = vpop.f32.mrf.mxu0
      %v3732 = vadd.f32 0.0, %v3731
      %v3733 = vpop.f32.mrf.mxu0
      %3734 = vmatprep.mubr.bf16.mxu0 0
      %3735 = vmatmul.mubr.bf16.gmra.mxu0 %v3563
      %v3736 = vpop.f32.mrf.mxu0
      %v3737 = vadd.f32 0.0, %v3736
      %v3738 = vpop.f32.mrf.mxu0
      %v3739 = vpop.f32.mrf.mxu0
      %v3740 = vadd.f32 0.0, %v3739
      %v3741 = vpop.f32.mrf.mxu0
      %3742 = vmatprep.mubr.bf16.mxu0 0
      %3743 = vmatmul.mubr.bf16.gmra.mxu0 %v3566
      %v3744 = vpop.f32.mrf.mxu0
      %v3745 = vadd.f32 0.0, %v3744
      %v3746 = vpop.f32.mrf.mxu0
      %v3747 = vpop.f32.mrf.mxu0
      %v3748 = vadd.f32 0.0, %v3747
      %v3749 = vpop.f32.mrf.mxu0
      %3750 = vmatprep.mubr.bf16.mxu0 0
      %3751 = vmatmul.mubr.bf16.gmra.mxu0 %v3569
      %v3752 = vpop.f32.mrf.mxu0
      %v3753 = vadd.f32 0.0, %v3752
      %v3754 = vpop.f32.mrf.mxu0
      %v3755 = vpop.f32.mrf.mxu0
      %v3756 = vadd.f32 0.0, %v3755
      %v3757 = vpop.f32.mrf.mxu0
      %3758 = vmatprep.mubr.bf16.mxu0 0
      %3759 = vmatmul.mubr.bf16.gmra.mxu0 %v3572
      %v3760 = vpop.f32.mrf.mxu0
      %v3761 = vadd.f32 0.0, %v3760
      %v3762 = vpop.f32.mrf.mxu0
      %v3763 = vpop.f32.mrf.mxu0
      %v3764 = vadd.f32 0.0, %v3763
      %v3765 = vpop.f32.mrf.mxu0
      %3766 = vmatprep.mubr.bf16.mxu0 0
      %3767 = vmatmul.mubr.bf16.gmra.mxu0 %v3575
      %v3768 = vpop.f32.mrf.mxu0
      %v3769 = vadd.f32 0.0, %v3768
      %v3770 = vpop.f32.mrf.mxu0
      %v3771 = vpop.f32.mrf.mxu0
      %v3772 = vadd.f32 0.0, %v3771
      %v3773 = vpop.f32.mrf.mxu0
      %3774 = vmatprep.mubr.bf16.mxu0 0
      %3775 = vmatmul.mubr.bf16.gmra.mxu0 %v3578
      %v3776 = vpop.f32.mrf.mxu0
      %v3777 = vadd.f32 0.0, %v3776
      %v3778 = vpop.f32.mrf.mxu0
      %v3779 = vpop.f32.mrf.mxu0
      %v3780 = vadd.f32 0.0, %v3779
      %v3781 = vpop.f32.mrf.mxu0
      %3782 = vmatprep.mubr.bf16.mxu0 0
      %3783 = vmatmul.mubr.bf16.gmra.mxu0 %v3581
      %v3784 = vpop.f32.mrf.mxu0
      %v3785 = vadd.f32 0.0, %v3784
      %v3786 = vpop.f32.mrf.mxu0
      %v3787 = vpop.f32.mrf.mxu0
      %v3788 = vadd.f32 0.0, %v3787
      %v3789 = vpop.f32.mrf.mxu0
      %3790 = vmatprep.mubr.bf16.mxu0 0
      %3791 = vmatmul.mubr.bf16.gmra.mxu0 %v3584
      %v3792 = vpop.f32.mrf.mxu0
      %v3793 = vadd.f32 0.0, %v3792
      %v3794 = vpop.f32.mrf.mxu0
      %v3795 = vpop.f32.mrf.mxu0
      %v3796 = vadd.f32 0.0, %v3795
      %v3797 = vpop.f32.mrf.mxu0
      %3798 = vmatprep.mubr.bf16.mxu0 0
      %3799 = vmatmul.mubr.bf16.gmra.mxu0 %v3587
      %v3800 = vpop.f32.mrf.mxu0
      %v3801 = vadd.f32 0.0, %v3800
      %v3802 = vpop.f32.mrf.mxu0
      %v3803 = vpop.f32.mrf.mxu0
      %v3804 = vadd.f32 0.0, %v3803
      %v3805 = vpop.f32.mrf.mxu0
      %3806 = vmatprep.mubr.bf16.mxu0 0
      %3807 = vmatmul.mubr.bf16.gmra.mxu0 %v3590
      %v3808 = vpop.f32.mrf.mxu0
      %v3809 = vadd.f32 0.0, %v3808
      %v3810 = vpop.f32.mrf.mxu0
      %v3811 = vpop.f32.mrf.mxu0
      %v3812 = vadd.f32 0.0, %v3811
      %v3813 = vpop.f32.mrf.mxu0
      %3814 = vmatprep.mubr.bf16.mxu0 0
      %3815 = vmatmul.mubr.bf16.gmra.mxu0 %v3593
      %v3816 = vpop.f32.mrf.mxu0
      %v3817 = vadd.f32 0.0, %v3816
      %v3818 = vpop.f32.mrf.mxu0
      %v3819 = vpop.f32.mrf.mxu0
      %v3820 = vadd.f32 0.0, %v3819
      %v3821 = vpop.f32.mrf.mxu0
      %3822 = vdwg.mxu0
      %v3823 = vadd.f32 %v3106, %v3633
      %v3824 = vadd.f32 %v3107, %v3636
      %v3825 = vadd.f32 %v3108, %v3641
      %v3826 = vadd.f32 %v3109, %v3644
      %v3827 = vadd.f32 %v3110, %v3649
      %v3828 = vadd.f32 %v3111, %v3652
      %v3829 = vadd.f32 %v3112, %v3657
      %v3830 = vadd.f32 %v3113, %v3660
      %v3831 = vadd.f32 %v3114, %v3665
      %v3832 = vadd.f32 %v3115, %v3668
      %v3833 = vadd.f32 %v3116, %v3673
      %v3834 = vadd.f32 %v3117, %v3676
      %v3835 = vadd.f32 %v3118, %v3681
      %v3836 = vadd.f32 %v3119, %v3684
      %v3837 = vadd.f32 %v3120, %v3689
      %v3838 = vadd.f32 %v3121, %v3692
      %v3839 = vadd.f32 %v3122, %v3697
      %v3840 = vadd.f32 %v3123, %v3700
      %v3841 = vadd.f32 %v3124, %v3705
      %v3842 = vadd.f32 %v3125, %v3708
      %v3843 = vadd.f32 %v3126, %v3713
      %v3844 = vadd.f32 %v3127, %v3716
      %v3845 = vadd.f32 %v3128, %v3721
      %v3846 = vadd.f32 %v3129, %v3724
      %v3847 = vadd.f32 %v3130, %v3729
      %v3848 = vadd.f32 %v3131, %v3732
      %v3849 = vadd.f32 %v3132, %v3737
      %v3850 = vadd.f32 %v3133, %v3740
      %v3851 = vadd.f32 %v3134, %v3745
      %v3852 = vadd.f32 %v3135, %v3748
      %v3853 = vadd.f32 %v3136, %v3753
      %v3854 = vadd.f32 %v3137, %v3756
      %v3855 = vadd.f32 %v3138, %v3761
      %v3856 = vadd.f32 %v3139, %v3764
      %v3857 = vadd.f32 %v3140, %v3769
      %v3858 = vadd.f32 %v3141, %v3772
      %v3859 = vadd.f32 %v3142, %v3777
      %v3860 = vadd.f32 %v3143, %v3780
      %v3861 = vadd.f32 %v3144, %v3785
      %v3862 = vadd.f32 %v3145, %v3788
      %v3863 = vadd.f32 %v3146, %v3793
      %v3864 = vadd.f32 %v3147, %v3796
      %v3865 = vadd.f32 %v3148, %v3801
      %v3866 = vadd.f32 %v3149, %v3804
      %v3867 = vadd.f32 %v3150, %v3809
      %v3868 = vadd.f32 %v3151, %v3812
      %v3869 = vadd.f32 %v3152, %v3817
      %v3870 = vadd.f32 %v3153, %v3820
      %v3871 = vld [vmem:[%s271 + $0x18] sm:$0x8]
      %v3872 = vld [vmem:[%s271 + $0x1c] sm:$0xf]
      %v3873 = vld [vmem:[%s271 + $0x20] sm:$0xf]
      %v3874 = vld [vmem:[%s271 + $0x24] sm:$0xf]
      %v3875 = vld [vmem:[%s271 + $0x28] sm:$0xf]
      %v3876 = vld [vmem:[%s271 + $0x2c] sm:$0xf]
      %v3877 = vld [vmem:[%s271 + $0x30] sm:$0xf]
      %v3878 = vld [vmem:[%s271 + $0x34] sm:$0xf]
      %v3879 = vld [vmem:[%s271 + $0x38] sm:$0xf]
      %v3880 = vld [vmem:[%s271 + $0x3c] sm:$0xf]
      %v3881 = vld [vmem:[%s271 + $0x40] sm:$0xf]
      %v3882 = vld [vmem:[%s271 + $0x44] sm:$0xf]
      %v3883 = vld [vmem:[%s271 + $0x48] sm:$0xf]
      %v3884 = vld [vmem:[%s271 + $0x4c] sm:$0xf]
      %v3885 = vld [vmem:[%s271 + $0x50] sm:$0xf]
      %v3886 = vld [vmem:[%s271 + $0x54] sm:$0xf]
      %v3887 = vld [vmem:[%s271 + $0x58] sm:$0xf]
      %v3888 = vld [vmem:[%s271 + $0x5c] sm:$0xf]
      %v3889 = vld [vmem:[%s271 + $0x60] sm:$0xf]
      %v3890 = vld [vmem:[%s271 + $0x64] sm:$0xf]
      %v3891 = vld [vmem:[%s271 + $0x68] sm:$0xf]
      %v3892 = vld [vmem:[%s271 + $0x6c] sm:$0xf]
      %v3893 = vld [vmem:[%s271 + $0x70] sm:$0xf]
      %v3894 = vld [vmem:[%s271 + $0x74] sm:$0xf]
      %v3895 = vld [vmem:[%s271 + $0x78] sm:$0xf]
      %v3896 = vld [vmem:[%s271 + $0x7c] sm:$0xf]
      %v3897 = vld [vmem:[%s271 + $0x80] sm:$0xf]
      %v3898 = vld [vmem:[%s271 + $0x84] sm:$0xf]
      %v3899 = vld [vmem:[%s271 + $0x88] sm:$0xf]
      %v3900 = vld [vmem:[%s271 + $0x8c] sm:$0xf]
      %v3901 = vld [vmem:[%s271 + $0x90] sm:$0xf]
      %v3902 = vld [vmem:[%s271 + $0x94] sm:$0xf]
      %v3903 = vld [vmem:[%s271 + $0x98] sm:$0xf]
      %v3904 = vld [vmem:[%s271 + $0x9c] sm:$0xf]
      %v3905 = vld [vmem:[%s271 + $0xa0] sm:$0xf]
      %v3906 = vld [vmem:[%s271 + $0xa4] sm:$0xf]
      %v3907 = vld [vmem:[%s271 + $0xa8] sm:$0xf]
      %v3908 = vld [vmem:[%s271 + $0xac] sm:$0xf]
      %v3909 = vld [vmem:[%s271 + $0xb0] sm:$0xf]
      %v3910 = vld [vmem:[%s271 + $0xb4] sm:$0xf]
      %v3911 = vld [vmem:[%s271 + $0xb8] sm:$0xf]
      %v3912 = vld [vmem:[%s271 + $0xbc] sm:$0xf]
      %v3913 = vld [vmem:[%s271 + $0xc0] sm:$0xf]
      %v3914 = vld [vmem:[%s271 + $0xc4] sm:$0xf]
      %v3915 = vld [vmem:[%s271 + $0xc8] sm:$0xf]
      %v3916 = vld [vmem:[%s271 + $0xcc] sm:$0xf]
      %v3917 = vld [vmem:[%s271 + $0xd0] sm:$0xf]
      %v3918 = vld [vmem:[%s271 + $0xd4] sm:$0xf]
      %v3919 = vld [vmem:[%s271 + $0xd8] sm:$0xf]
      %v3920 = vld [vmem:[%s275 + $0x18] sm:$0xf]
      %v3970 = vunpack.c.l.b16 %v3871
      %v3971 = vunpack.c.l.b16 %v3872
      %v3972 = vunpack.c.l.b16 %v3873
      %v3973 = vunpack.c.l.b16 %v3874
      %v3974 = vunpack.c.l.b16 %v3875
      %v3975 = vunpack.c.l.b16 %v3876
      %v3976 = vunpack.c.l.b16 %v3877
      %v3977 = vunpack.c.l.b16 %v3878
      %v3978 = vunpack.c.l.b16 %v3879
      %v3979 = vunpack.c.l.b16 %v3880
      %v3980 = vunpack.c.l.b16 %v3881
      %v3981 = vunpack.c.l.b16 %v3882
      %v3982 = vunpack.c.l.b16 %v3883
      %v3983 = vunpack.c.l.b16 %v3884
      %v3984 = vunpack.c.l.b16 %v3885
      %v3985 = vunpack.c.l.b16 %v3886
      %v3986 = vunpack.c.l.b16 %v3887
      %v3987 = vunpack.c.l.b16 %v3888
      %v3988 = vunpack.c.l.b16 %v3889
      %v3989 = vunpack.c.l.b16 %v3890
      %v3990 = vunpack.c.l.b16 %v3891
      %v3991 = vunpack.c.l.b16 %v3892
      %v3992 = vunpack.c.l.b16 %v3893
      %v3993 = vunpack.c.l.b16 %v3894
      %v3994 = vunpack.c.l.b16 %v3895
      %v3995 = vunpack.c.l.b16 %v3896
      %v3996 = vunpack.c.l.b16 %v3897
      %v3997 = vunpack.c.l.b16 %v3898
      %v3998 = vunpack.c.l.b16 %v3899
      %v3999 = vunpack.c.l.b16 %v3900
      %v4000 = vunpack.c.l.b16 %v3901
      %v4001 = vunpack.c.l.b16 %v3902
      %v4002 = vunpack.c.l.b16 %v3903
      %v4003 = vunpack.c.l.b16 %v3904
      %v4004 = vunpack.c.l.b16 %v3905
      %v4005 = vunpack.c.l.b16 %v3906
      %v4006 = vunpack.c.l.b16 %v3907
      %v4007 = vunpack.c.l.b16 %v3908
      %v4008 = vunpack.c.l.b16 %v3909
      %v4009 = vunpack.c.l.b16 %v3910
      %v4010 = vunpack.c.l.b16 %v3911
      %v4011 = vunpack.c.l.b16 %v3912
      %v4012 = vunpack.c.l.b16 %v3913
      %v4013 = vunpack.c.l.b16 %v3914
      %v4014 = vunpack.c.l.b16 %v3915
      %v4015 = vunpack.c.l.b16 %v3916
      %v4016 = vunpack.c.l.b16 %v3917
      %v4017 = vunpack.c.l.b16 %v3918
      %v4018 = vunpack.c.l.b16 %v3919
      %v4019 = vpack.c.b16 %v3971, %v3970
      %v4020 = vpack.c.b16 %v3973, %v3972
      %v4021 = vpack.c.b16 %v3975, %v3974
      %v4022 = vpack.c.b16 %v3977, %v3976
      %v4023 = vpack.c.b16 %v3979, %v3978
      %v4024 = vpack.c.b16 %v3981, %v3980
      %v4025 = vpack.c.b16 %v3983, %v3982
      %v4026 = vpack.c.b16 %v3985, %v3984
      %v4027 = vpack.c.b16 %v3987, %v3986
      %v4028 = vpack.c.b16 %v3989, %v3988
      %v4029 = vpack.c.b16 %v3991, %v3990
      %v4030 = vpack.c.b16 %v3993, %v3992
      %v4031 = vpack.c.b16 %v3995, %v3994
      %v4032 = vpack.c.b16 %v3997, %v3996
      %v4033 = vpack.c.b16 %v3999, %v3998
      %v4034 = vpack.c.b16 %v4001, %v4000
      %v4035 = vpack.c.b16 %v4003, %v4002
      %v4036 = vpack.c.b16 %v4005, %v4004
      %v4037 = vpack.c.b16 %v4007, %v4006
      %v4038 = vpack.c.b16 %v4009, %v4008
      %v4039 = vpack.c.b16 %v4011, %v4010
      %v4040 = vpack.c.b16 %v4013, %v4012
      %v4041 = vpack.c.b16 %v4015, %v4014
      %v4042 = vpack.c.b16 %v4017, %v4016
      %v4043 = vpack.c.b16 %v4018, %v4018
      %v4045 = vshrl.u32 %v4019, 16
      %v4047 = vrot.slane %v4045, 3
      %v4048 = vshll.u32 %v4019, 16
      %v4050 = vrot.slane %v4048, 4
      %v4051 = vor.u32 %v4047, %v4050
      %v4053 = vshrl.u32 %v4020, 16
      %v4055 = vrot.slane %v4053, 3
      %v4056 = vshll.u32 %v4020, 16
      %v4058 = vrot.slane %v4056, 4
      %v4059 = vor.u32 %v4055, %v4058
      %v4060 = vsel %vm793, %v4051, %v4059
      %v4062 = vshrl.u32 %v4021, 16
      %v4064 = vrot.slane %v4062, 3
      %v4065 = vshll.u32 %v4021, 16
      %v4067 = vrot.slane %v4065, 4
      %v4068 = vor.u32 %v4064, %v4067
      %v4069 = vsel %vm793, %v4059, %v4068
      %v4071 = vshrl.u32 %v4022, 16
      %v4073 = vrot.slane %v4071, 3
      %v4074 = vshll.u32 %v4022, 16
      %v4076 = vrot.slane %v4074, 4
      %v4077 = vor.u32 %v4073, %v4076
      %v4078 = vsel %vm793, %v4068, %v4077
      %v4080 = vshrl.u32 %v4023, 16
      %v4082 = vrot.slane %v4080, 3
      %v4083 = vshll.u32 %v4023, 16
      %v4085 = vrot.slane %v4083, 4
      %v4086 = vor.u32 %v4082, %v4085
      %v4087 = vsel %vm793, %v4077, %v4086
      %v4089 = vshrl.u32 %v4024, 16
      %v4091 = vrot.slane %v4089, 3
      %v4092 = vshll.u32 %v4024, 16
      %v4094 = vrot.slane %v4092, 4
      %v4095 = vor.u32 %v4091, %v4094
      %v4096 = vsel %vm793, %v4086, %v4095
      %v4098 = vshrl.u32 %v4025, 16
      %v4100 = vrot.slane %v4098, 3
      %v4101 = vshll.u32 %v4025, 16
      %v4103 = vrot.slane %v4101, 4
      %v4104 = vor.u32 %v4100, %v4103
      %v4105 = vsel %vm793, %v4095, %v4104
      %v4107 = vshrl.u32 %v4026, 16
      %v4109 = vrot.slane %v4107, 3
      %v4110 = vshll.u32 %v4026, 16
      %v4112 = vrot.slane %v4110, 4
      %v4113 = vor.u32 %v4109, %v4112
      %v4114 = vsel %vm793, %v4104, %v4113
      %v4116 = vshrl.u32 %v4027, 16
      %v4118 = vrot.slane %v4116, 3
      %v4119 = vshll.u32 %v4027, 16
      %v4121 = vrot.slane %v4119, 4
      %v4122 = vor.u32 %v4118, %v4121
      %v4123 = vsel %vm793, %v4113, %v4122
      %v4125 = vshrl.u32 %v4028, 16
      %v4127 = vrot.slane %v4125, 3
      %v4128 = vshll.u32 %v4028, 16
      %v4130 = vrot.slane %v4128, 4
      %v4131 = vor.u32 %v4127, %v4130
      %v4132 = vsel %vm793, %v4122, %v4131
      %v4134 = vshrl.u32 %v4029, 16
      %v4136 = vrot.slane %v4134, 3
      %v4137 = vshll.u32 %v4029, 16
      %v4139 = vrot.slane %v4137, 4
      %v4140 = vor.u32 %v4136, %v4139
      %v4141 = vsel %vm793, %v4131, %v4140
      %v4143 = vshrl.u32 %v4030, 16
      %v4145 = vrot.slane %v4143, 3
      %v4146 = vshll.u32 %v4030, 16
      %v4148 = vrot.slane %v4146, 4
      %v4149 = vor.u32 %v4145, %v4148
      %v4150 = vsel %vm793, %v4140, %v4149
      %v4152 = vshrl.u32 %v4031, 16
      %v4154 = vrot.slane %v4152, 3
      %v4155 = vshll.u32 %v4031, 16
      %v4157 = vrot.slane %v4155, 4
      %v4158 = vor.u32 %v4154, %v4157
      %v4159 = vsel %vm793, %v4149, %v4158
      %v4161 = vshrl.u32 %v4032, 16
      %v4163 = vrot.slane %v4161, 3
      %v4164 = vshll.u32 %v4032, 16
      %v4166 = vrot.slane %v4164, 4
      %v4167 = vor.u32 %v4163, %v4166
      %v4168 = vsel %vm793, %v4158, %v4167
      %v4170 = vshrl.u32 %v4033, 16
      %v4172 = vrot.slane %v4170, 3
      %v4173 = vshll.u32 %v4033, 16
      %v4175 = vrot.slane %v4173, 4
      %v4176 = vor.u32 %v4172, %v4175
      %v4177 = vsel %vm793, %v4167, %v4176
      %v4179 = vshrl.u32 %v4034, 16
      %v4181 = vrot.slane %v4179, 3
      %v4182 = vshll.u32 %v4034, 16
      %v4184 = vrot.slane %v4182, 4
      %v4185 = vor.u32 %v4181, %v4184
      %v4186 = vsel %vm793, %v4176, %v4185
      %v4188 = vshrl.u32 %v4035, 16
      %v4190 = vrot.slane %v4188, 3
      %v4191 = vshll.u32 %v4035, 16
      %v4193 = vrot.slane %v4191, 4
      %v4194 = vor.u32 %v4190, %v4193
      %v4195 = vsel %vm793, %v4185, %v4194
      %v4197 = vshrl.u32 %v4036, 16
      %v4199 = vrot.slane %v4197, 3
      %v4200 = vshll.u32 %v4036, 16
      %v4202 = vrot.slane %v4200, 4
      %v4203 = vor.u32 %v4199, %v4202
      %v4204 = vsel %vm793, %v4194, %v4203
      %v4206 = vshrl.u32 %v4037, 16
      %v4208 = vrot.slane %v4206, 3
      %v4209 = vshll.u32 %v4037, 16
      %v4211 = vrot.slane %v4209, 4
      %v4212 = vor.u32 %v4208, %v4211
      %v4213 = vsel %vm793, %v4203, %v4212
      %v4215 = vshrl.u32 %v4038, 16
      %v4217 = vrot.slane %v4215, 3
      %v4218 = vshll.u32 %v4038, 16
      %v4220 = vrot.slane %v4218, 4
      %v4221 = vor.u32 %v4217, %v4220
      %v4222 = vsel %vm793, %v4212, %v4221
      %v4224 = vshrl.u32 %v4039, 16
      %v4226 = vrot.slane %v4224, 3
      %v4227 = vshll.u32 %v4039, 16
      %v4229 = vrot.slane %v4227, 4
      %v4230 = vor.u32 %v4226, %v4229
      %v4231 = vsel %vm793, %v4221, %v4230
      %v4233 = vshrl.u32 %v4040, 16
      %v4235 = vrot.slane %v4233, 3
      %v4236 = vshll.u32 %v4040, 16
      %v4238 = vrot.slane %v4236, 4
      %v4239 = vor.u32 %v4235, %v4238
      %v4240 = vsel %vm793, %v4230, %v4239
      %v4242 = vshrl.u32 %v4041, 16
      %v4244 = vrot.slane %v4242, 3
      %v4245 = vshll.u32 %v4041, 16
      %v4247 = vrot.slane %v4245, 4
      %v4248 = vor.u32 %v4244, %v4247
      %v4249 = vsel %vm793, %v4239, %v4248
      %v4251 = vshrl.u32 %v4042, 16
      %v4253 = vrot.slane %v4251, 3
      %v4254 = vshll.u32 %v4042, 16
      %v4256 = vrot.slane %v4254, 4
      %v4257 = vor.u32 %v4253, %v4256
      %v4258 = vsel %vm793, %v4248, %v4257
      %v4260 = vshrl.u32 %v4043, 16
      %v4262 = vrot.slane %v4260, 3
      %v4263 = vshll.u32 %v4043, 16
      %v4265 = vrot.slane %v4263, 4
      %v4266 = vor.u32 %v4262, %v4265
      %v4267 = vsel %vm793, %v4257, %v4266
      %v4269 = vsel %vm464, %v4060, 0
      %v4272 = vsel %vm464, %v4069, 0
      %v4275 = vsel %vm464, %v4078, 0
      %v4278 = vsel %vm464, %v4087, 0
      %v4281 = vsel %vm464, %v4096, 0
      %v4284 = vsel %vm464, %v4105, 0
      %v4287 = vsel %vm464, %v4114, 0
      %v4290 = vsel %vm464, %v4123, 0
      %v4293 = vsel %vm464, %v4132, 0
      %v4296 = vsel %vm464, %v4141, 0
      %v4299 = vsel %vm464, %v4150, 0
      %v4302 = vsel %vm464, %v4159, 0
      %v4305 = vsel %vm464, %v4168, 0
      %v4308 = vsel %vm464, %v4177, 0
      %v4311 = vsel %vm464, %v4186, 0
      %v4314 = vsel %vm464, %v4195, 0
      %v4317 = vsel %vm464, %v4204, 0
      %v4320 = vsel %vm464, %v4213, 0
      %v4323 = vsel %vm464, %v4222, 0
      %v4326 = vsel %vm464, %v4231, 0
      %v4329 = vsel %vm464, %v4240, 0
      %v4332 = vsel %vm464, %v4249, 0
      %v4335 = vsel %vm464, %v4258, 0
      %v4338 = vsel %vm464, %v4267, 0
      %v4341 = vsel %vm537, %v3920, 0
      %4343 = vmatprep.subr.bf16.mxu0 0
      %4344 = vmatpush1.bf16.msra.mxu0 0
      %4345 = vmatprep.subr.bf16.mxu0 0
      %4346 = vmatpush1.bf16.msra.mxu0 0
      %4347 = vmatprep.subr.bf16.mxu0 0
      %4348 = vmatpush1.bf16.msra.mxu0 0
      %4349 = vmatprep.subr.bf16.mxu0 0
      %4350 = vmatpush1.bf16.msra.mxu0 0
      %4351 = vmatprep.subr.bf16.mxu0 0
      %4352 = vmatpush1.bf16.msra.mxu0 0
      %4353 = vmatprep.subr.bf16.mxu0 0
      %4354 = vmatpush1.bf16.msra.mxu0 0
      %4355 = vmatprep.subr.bf16.mxu0 0
      %4356 = vmatpush1.bf16.msra.mxu0 0
      %4357 = vmatprep.subr.bf16.mxu0 0
      %4358 = vmatpush1.bf16.msra.mxu0 %v4341
      %4359 = vmatprep.subr.bf16.mxu0 0
      %4360 = vmatpush2.bf16.msra.mxu0 0
      %4361 = vmatprep.subr.bf16.mxu0 0
      %4362 = vmatpush2.bf16.msra.mxu0 0
      %4363 = vmatprep.subr.bf16.mxu0 0
      %4364 = vmatpush2.bf16.msra.mxu0 0
      %4365 = vmatprep.subr.bf16.mxu0 0
      %4366 = vmatpush2.bf16.msra.mxu0 0
      %4367 = vmatprep.subr.bf16.mxu0 0
      %4368 = vmatpush2.bf16.msra.mxu0 0
      %4369 = vmatprep.subr.bf16.mxu0 0
      %4370 = vmatpush2.bf16.msra.mxu0 0
      %4371 = vmatprep.subr.bf16.mxu0 0
      %4372 = vmatpush2.bf16.msra.mxu0 0
      %4373 = vmatprep.subr.bf16.mxu0 0
      %4374 = vmatpush2.bf16.msra.mxu0 0
      %4375 = vmatprep.mubr.bf16.mxu0 0
      %4376 = vmatmul.mubr.bf16.gmra.mxu0 %v4269
      %v4377 = vpop.f32.mrf.mxu0
      %v4378 = vadd.f32 0.0, %v4377
      %v4379 = vpop.f32.mrf.mxu0
      %v4380 = vpop.f32.mrf.mxu0
      %v4381 = vadd.f32 0.0, %v4380
      %v4382 = vpop.f32.mrf.mxu0
      %4383 = vmatprep.mubr.bf16.mxu0 0
      %4384 = vmatmul.mubr.bf16.gmra.mxu0 %v4272
      %v4385 = vpop.f32.mrf.mxu0
      %v4386 = vadd.f32 0.0, %v4385
      %v4387 = vpop.f32.mrf.mxu0
      %v4388 = vpop.f32.mrf.mxu0
      %v4389 = vadd.f32 0.0, %v4388
      %v4390 = vpop.f32.mrf.mxu0
      %4391 = vmatprep.mubr.bf16.mxu0 0
      %4392 = vmatmul.mubr.bf16.gmra.mxu0 %v4275
      %v4393 = vpop.f32.mrf.mxu0
      %v4394 = vadd.f32 0.0, %v4393
      %v4395 = vpop.f32.mrf.mxu0
      %v4396 = vpop.f32.mrf.mxu0
      %v4397 = vadd.f32 0.0, %v4396
      %v4398 = vpop.f32.mrf.mxu0
      %4399 = vmatprep.mubr.bf16.mxu0 0
      %4400 = vmatmul.mubr.bf16.gmra.mxu0 %v4278
      %v4401 = vpop.f32.mrf.mxu0
      %v4402 = vadd.f32 0.0, %v4401
      %v4403 = vpop.f32.mrf.mxu0
      %v4404 = vpop.f32.mrf.mxu0
      %v4405 = vadd.f32 0.0, %v4404
      %v4406 = vpop.f32.mrf.mxu0
      %4407 = vmatprep.mubr.bf16.mxu0 0
      %4408 = vmatmul.mubr.bf16.gmra.mxu0 %v4281
      %v4409 = vpop.f32.mrf.mxu0
      %v4410 = vadd.f32 0.0, %v4409
      %v4411 = vpop.f32.mrf.mxu0
      %v4412 = vpop.f32.mrf.mxu0
      %v4413 = vadd.f32 0.0, %v4412
      %v4414 = vpop.f32.mrf.mxu0
      %4415 = vmatprep.mubr.bf16.mxu0 0
      %4416 = vmatmul.mubr.bf16.gmra.mxu0 %v4284
      %v4417 = vpop.f32.mrf.mxu0
      %v4418 = vadd.f32 0.0, %v4417
      %v4419 = vpop.f32.mrf.mxu0
      %v4420 = vpop.f32.mrf.mxu0
      %v4421 = vadd.f32 0.0, %v4420
      %v4422 = vpop.f32.mrf.mxu0
      %4423 = vmatprep.mubr.bf16.mxu0 0
      %4424 = vmatmul.mubr.bf16.gmra.mxu0 %v4287
      %v4425 = vpop.f32.mrf.mxu0
      %v4426 = vadd.f32 0.0, %v4425
      %v4427 = vpop.f32.mrf.mxu0
      %v4428 = vpop.f32.mrf.mxu0
      %v4429 = vadd.f32 0.0, %v4428
      %v4430 = vpop.f32.mrf.mxu0
      %4431 = vmatprep.mubr.bf16.mxu0 0
      %4432 = vmatmul.mubr.bf16.gmra.mxu0 %v4290
      %v4433 = vpop.f32.mrf.mxu0
      %v4434 = vadd.f32 0.0, %v4433
      %v4435 = vpop.f32.mrf.mxu0
      %v4436 = vpop.f32.mrf.mxu0
      %v4437 = vadd.f32 0.0, %v4436
      %v4438 = vpop.f32.mrf.mxu0
      %4439 = vmatprep.mubr.bf16.mxu0 0
      %4440 = vmatmul.mubr.bf16.gmra.mxu0 %v4293
      %v4441 = vpop.f32.mrf.mxu0
      %v4442 = vadd.f32 0.0, %v4441
      %v4443 = vpop.f32.mrf.mxu0
      %v4444 = vpop.f32.mrf.mxu0
      %v4445 = vadd.f32 0.0, %v4444
      %v4446 = vpop.f32.mrf.mxu0
      %4447 = vmatprep.mubr.bf16.mxu0 0
      %4448 = vmatmul.mubr.bf16.gmra.mxu0 %v4296
      %v4449 = vpop.f32.mrf.mxu0
      %v4450 = vadd.f32 0.0, %v4449
      %v4451 = vpop.f32.mrf.mxu0
      %v4452 = vpop.f32.mrf.mxu0
      %v4453 = vadd.f32 0.0, %v4452
      %v4454 = vpop.f32.mrf.mxu0
      %4455 = vmatprep.mubr.bf16.mxu0 0
      %4456 = vmatmul.mubr.bf16.gmra.mxu0 %v4299
      %v4457 = vpop.f32.mrf.mxu0
      %v4458 = vadd.f32 0.0, %v4457
      %v4459 = vpop.f32.mrf.mxu0
      %v4460 = vpop.f32.mrf.mxu0
      %v4461 = vadd.f32 0.0, %v4460
      %v4462 = vpop.f32.mrf.mxu0
      %4463 = vmatprep.mubr.bf16.mxu0 0
      %4464 = vmatmul.mubr.bf16.gmra.mxu0 %v4302
      %v4465 = vpop.f32.mrf.mxu0
      %v4466 = vadd.f32 0.0, %v4465
      %v4467 = vpop.f32.mrf.mxu0
      %v4468 = vpop.f32.mrf.mxu0
      %v4469 = vadd.f32 0.0, %v4468
      %v4470 = vpop.f32.mrf.mxu0
      %4471 = vmatprep.mubr.bf16.mxu0 0
      %4472 = vmatmul.mubr.bf16.gmra.mxu0 %v4305
      %v4473 = vpop.f32.mrf.mxu0
      %v4474 = vadd.f32 0.0, %v4473
      %v4475 = vpop.f32.mrf.mxu0
      %v4476 = vpop.f32.mrf.mxu0
      %v4477 = vadd.f32 0.0, %v4476
      %v4478 = vpop.f32.mrf.mxu0
      %4479 = vmatprep.mubr.bf16.mxu0 0
      %4480 = vmatmul.mubr.bf16.gmra.mxu0 %v4308
      %v4481 = vpop.f32.mrf.mxu0
      %v4482 = vadd.f32 0.0, %v4481
      %v4483 = vpop.f32.mrf.mxu0
      %v4484 = vpop.f32.mrf.mxu0
      %v4485 = vadd.f32 0.0, %v4484
      %v4486 = vpop.f32.mrf.mxu0
      %4487 = vmatprep.mubr.bf16.mxu0 0
      %4488 = vmatmul.mubr.bf16.gmra.mxu0 %v4311
      %v4489 = vpop.f32.mrf.mxu0
      %v4490 = vadd.f32 0.0, %v4489
      %v4491 = vpop.f32.mrf.mxu0
      %v4492 = vpop.f32.mrf.mxu0
      %v4493 = vadd.f32 0.0, %v4492
      %v4494 = vpop.f32.mrf.mxu0
      %4495 = vmatprep.mubr.bf16.mxu0 0
      %4496 = vmatmul.mubr.bf16.gmra.mxu0 %v4314
      %v4497 = vpop.f32.mrf.mxu0
      %v4498 = vadd.f32 0.0, %v4497
      %v4499 = vpop.f32.mrf.mxu0
      %v4500 = vpop.f32.mrf.mxu0
      %v4501 = vadd.f32 0.0, %v4500
      %v4502 = vpop.f32.mrf.mxu0
      %4503 = vmatprep.mubr.bf16.mxu0 0
      %4504 = vmatmul.mubr.bf16.gmra.mxu0 %v4317
      %v4505 = vpop.f32.mrf.mxu0
      %v4506 = vadd.f32 0.0, %v4505
      %v4507 = vpop.f32.mrf.mxu0
      %v4508 = vpop.f32.mrf.mxu0
      %v4509 = vadd.f32 0.0, %v4508
      %v4510 = vpop.f32.mrf.mxu0
      %4511 = vmatprep.mubr.bf16.mxu0 0
      %4512 = vmatmul.mubr.bf16.gmra.mxu0 %v4320
      %v4513 = vpop.f32.mrf.mxu0
      %v4514 = vadd.f32 0.0, %v4513
      %v4515 = vpop.f32.mrf.mxu0
      %v4516 = vpop.f32.mrf.mxu0
      %v4517 = vadd.f32 0.0, %v4516
      %v4518 = vpop.f32.mrf.mxu0
      %4519 = vmatprep.mubr.bf16.mxu0 0
      %4520 = vmatmul.mubr.bf16.gmra.mxu0 %v4323
      %v4521 = vpop.f32.mrf.mxu0
      %v4522 = vadd.f32 0.0, %v4521
      %v4523 = vpop.f32.mrf.mxu0
      %v4524 = vpop.f32.mrf.mxu0
      %v4525 = vadd.f32 0.0, %v4524
      %v4526 = vpop.f32.mrf.mxu0
      %4527 = vmatprep.mubr.bf16.mxu0 0
      %4528 = vmatmul.mubr.bf16.gmra.mxu0 %v4326
      %v4529 = vpop.f32.mrf.mxu0
      %v4530 = vadd.f32 0.0, %v4529
      %v4531 = vpop.f32.mrf.mxu0
      %v4532 = vpop.f32.mrf.mxu0
      %v4533 = vadd.f32 0.0, %v4532
      %v4534 = vpop.f32.mrf.mxu0
      %4535 = vmatprep.mubr.bf16.mxu0 0
      %4536 = vmatmul.mubr.bf16.gmra.mxu0 %v4329
      %v4537 = vpop.f32.mrf.mxu0
      %v4538 = vadd.f32 0.0, %v4537
      %v4539 = vpop.f32.mrf.mxu0
      %v4540 = vpop.f32.mrf.mxu0
      %v4541 = vadd.f32 0.0, %v4540
      %v4542 = vpop.f32.mrf.mxu0
      %4543 = vmatprep.mubr.bf16.mxu0 0
      %4544 = vmatmul.mubr.bf16.gmra.mxu0 %v4332
      %v4545 = vpop.f32.mrf.mxu0
      %v4546 = vadd.f32 0.0, %v4545
      %v4547 = vpop.f32.mrf.mxu0
      %v4548 = vpop.f32.mrf.mxu0
      %v4549 = vadd.f32 0.0, %v4548
      %v4550 = vpop.f32.mrf.mxu0
      %4551 = vmatprep.mubr.bf16.mxu0 0
      %4552 = vmatmul.mubr.bf16.gmra.mxu0 %v4335
      %v4553 = vpop.f32.mrf.mxu0
      %v4554 = vadd.f32 0.0, %v4553
      %v4555 = vpop.f32.mrf.mxu0
      %v4556 = vpop.f32.mrf.mxu0
      %v4557 = vadd.f32 0.0, %v4556
      %v4558 = vpop.f32.mrf.mxu0
      %4559 = vmatprep.mubr.bf16.mxu0 0
      %4560 = vmatmul.mubr.bf16.gmra.mxu0 %v4338
      %v4561 = vpop.f32.mrf.mxu0
      %v4562 = vadd.f32 0.0, %v4561
      %v4563 = vpop.f32.mrf.mxu0
      %v4564 = vpop.f32.mrf.mxu0
      %v4565 = vadd.f32 0.0, %v4564
      %v4566 = vpop.f32.mrf.mxu0
      %4567 = vdwg.mxu0
      %v4568 = vadd.f32 %v3823, %v4378
      %v4569 = vadd.f32 %v3824, %v4381
      %v4570 = vadd.f32 %v3825, %v4386
      %v4571 = vadd.f32 %v3826, %v4389
      %v4572 = vadd.f32 %v3827, %v4394
      %v4573 = vadd.f32 %v3828, %v4397
      %v4574 = vadd.f32 %v3829, %v4402
      %v4575 = vadd.f32 %v3830, %v4405
      %v4576 = vadd.f32 %v3831, %v4410
      %v4577 = vadd.f32 %v3832, %v4413
      %v4578 = vadd.f32 %v3833, %v4418
      %v4579 = vadd.f32 %v3834, %v4421
      %v4580 = vadd.f32 %v3835, %v4426
      %v4581 = vadd.f32 %v3836, %v4429
      %v4582 = vadd.f32 %v3837, %v4434
      %v4583 = vadd.f32 %v3838, %v4437
      %v4584 = vadd.f32 %v3839, %v4442
      %v4585 = vadd.f32 %v3840, %v4445
      %v4586 = vadd.f32 %v3841, %v4450
      %v4587 = vadd.f32 %v3842, %v4453
      %v4588 = vadd.f32 %v3843, %v4458
      %v4589 = vadd.f32 %v3844, %v4461
      %v4590 = vadd.f32 %v3845, %v4466
      %v4591 = vadd.f32 %v3846, %v4469
      %v4592 = vadd.f32 %v3847, %v4474
      %v4593 = vadd.f32 %v3848, %v4477
      %v4594 = vadd.f32 %v3849, %v4482
      %v4595 = vadd.f32 %v3850, %v4485
      %v4596 = vadd.f32 %v3851, %v4490
      %v4597 = vadd.f32 %v3852, %v4493
      %v4598 = vadd.f32 %v3853, %v4498
      %v4599 = vadd.f32 %v3854, %v4501
      %v4600 = vadd.f32 %v3855, %v4506
      %v4601 = vadd.f32 %v3856, %v4509
      %v4602 = vadd.f32 %v3857, %v4514
      %v4603 = vadd.f32 %v3858, %v4517
      %v4604 = vadd.f32 %v3859, %v4522
      %v4605 = vadd.f32 %v3860, %v4525
      %v4606 = vadd.f32 %v3861, %v4530
      %v4607 = vadd.f32 %v3862, %v4533
      %v4608 = vadd.f32 %v3863, %v4538
      %v4609 = vadd.f32 %v3864, %v4541
      %v4610 = vadd.f32 %v3865, %v4546
      %v4611 = vadd.f32 %v3866, %v4549
      %v4612 = vadd.f32 %v3867, %v4554
      %v4613 = vadd.f32 %v3868, %v4557
      %v4614 = vadd.f32 %v3869, %v4562
      %v4615 = vadd.f32 %v3870, %v4565
      %v4616 = vld [vmem:[%s275 + $0x1c] sm:$0xf]
      %v4617 = vpack.c.b16 %v3972, %v3971
      %v4618 = vpack.c.b16 %v3974, %v3973
      %v4619 = vpack.c.b16 %v3976, %v3975
      %v4620 = vpack.c.b16 %v3978, %v3977
      %v4621 = vpack.c.b16 %v3980, %v3979
      %v4622 = vpack.c.b16 %v3982, %v3981
      %v4623 = vpack.c.b16 %v3984, %v3983
      %v4624 = vpack.c.b16 %v3986, %v3985
      %v4625 = vpack.c.b16 %v3988, %v3987
      %v4626 = vpack.c.b16 %v3990, %v3989
      %v4627 = vpack.c.b16 %v3992, %v3991
      %v4628 = vpack.c.b16 %v3994, %v3993
      %v4629 = vpack.c.b16 %v3996, %v3995
      %v4630 = vpack.c.b16 %v3998, %v3997
      %v4631 = vpack.c.b16 %v4000, %v3999
      %v4632 = vpack.c.b16 %v4002, %v4001
      %v4633 = vpack.c.b16 %v4004, %v4003
      %v4634 = vpack.c.b16 %v4006, %v4005
      %v4635 = vpack.c.b16 %v4008, %v4007
      %v4636 = vpack.c.b16 %v4010, %v4009
      %v4637 = vpack.c.b16 %v4012, %v4011
      %v4638 = vpack.c.b16 %v4014, %v4013
      %v4639 = vpack.c.b16 %v4016, %v4015
      %v4640 = vpack.c.b16 %v4018, %v4017
      %v4642 = vsel %vm464, %v4617, 0
      %v4645 = vsel %vm464, %v4618, 0
      %v4648 = vsel %vm464, %v4619, 0
      %v4651 = vsel %vm464, %v4620, 0
      %v4654 = vsel %vm464, %v4621, 0
      %v4657 = vsel %vm464, %v4622, 0
      %v4660 = vsel %vm464, %v4623, 0
      %v4663 = vsel %vm464, %v4624, 0
      %v4666 = vsel %vm464, %v4625, 0
      %v4669 = vsel %vm464, %v4626, 0
      %v4672 = vsel %vm464, %v4627, 0
      %v4675 = vsel %vm464, %v4628, 0
      %v4678 = vsel %vm464, %v4629, 0
      %v4681 = vsel %vm464, %v4630, 0
      %v4684 = vsel %vm464, %v4631, 0
      %v4687 = vsel %vm464, %v4632, 0
      %v4690 = vsel %vm464, %v4633, 0
      %v4693 = vsel %vm464, %v4634, 0
      %v4696 = vsel %vm464, %v4635, 0
      %v4699 = vsel %vm464, %v4636, 0
      %v4702 = vsel %vm464, %v4637, 0
      %v4705 = vsel %vm464, %v4638, 0
      %v4708 = vsel %vm464, %v4639, 0
      %v4711 = vsel %vm464, %v4640, 0
      %v4714 = vsel %vm537, %v4616, 0
      %4716 = vmatprep.subr.bf16.mxu0 0
      %4717 = vmatpush1.bf16.msra.mxu0 0
      %4718 = vmatprep.subr.bf16.mxu0 0
      %4719 = vmatpush1.bf16.msra.mxu0 0
      %4720 = vmatprep.subr.bf16.mxu0 0
      %4721 = vmatpush1.bf16.msra.mxu0 0
      %4722 = vmatprep.subr.bf16.mxu0 0
      %4723 = vmatpush1.bf16.msra.mxu0 0
      %4724 = vmatprep.subr.bf16.mxu0 0
      %4725 = vmatpush1.bf16.msra.mxu0 0
      %4726 = vmatprep.subr.bf16.mxu0 0
      %4727 = vmatpush1.bf16.msra.mxu0 0
      %4728 = vmatprep.subr.bf16.mxu0 0
      %4729 = vmatpush1.bf16.msra.mxu0 0
      %4730 = vmatprep.subr.bf16.mxu0 0
      %4731 = vmatpush1.bf16.msra.mxu0 %v4714
      %4732 = vmatprep.subr.bf16.mxu0 0
      %4733 = vmatpush2.bf16.msra.mxu0 0
      %4734 = vmatprep.subr.bf16.mxu0 0
      %4735 = vmatpush2.bf16.msra.mxu0 0
      %4736 = vmatprep.subr.bf16.mxu0 0
      %4737 = vmatpush2.bf16.msra.mxu0 0
      %4738 = vmatprep.subr.bf16.mxu0 0
      %4739 = vmatpush2.bf16.msra.mxu0 0
      %4740 = vmatprep.subr.bf16.mxu0 0
      %4741 = vmatpush2.bf16.msra.mxu0 0
      %4742 = vmatprep.subr.bf16.mxu0 0
      %4743 = vmatpush2.bf16.msra.mxu0 0
      %4744 = vmatprep.subr.bf16.mxu0 0
      %4745 = vmatpush2.bf16.msra.mxu0 0
      %4746 = vmatprep.subr.bf16.mxu0 0
      %4747 = vmatpush2.bf16.msra.mxu0 0
      %4748 = vmatprep.mubr.bf16.mxu0 0
      %4749 = vmatmul.mubr.bf16.gmra.mxu0 %v4642
      %v4750 = vpop.f32.mrf.mxu0
      %v4751 = vadd.f32 0.0, %v4750
      %v4752 = vpop.f32.mrf.mxu0
      %v4753 = vpop.f32.mrf.mxu0
      %v4754 = vadd.f32 0.0, %v4753
      %v4755 = vpop.f32.mrf.mxu0
      %4756 = vmatprep.mubr.bf16.mxu0 0
      %4757 = vmatmul.mubr.bf16.gmra.mxu0 %v4645
      %v4758 = vpop.f32.mrf.mxu0
      %v4759 = vadd.f32 0.0, %v4758
      %v4760 = vpop.f32.mrf.mxu0
      %v4761 = vpop.f32.mrf.mxu0
      %v4762 = vadd.f32 0.0, %v4761
      %v4763 = vpop.f32.mrf.mxu0
      %4764 = vmatprep.mubr.bf16.mxu0 0
      %4765 = vmatmul.mubr.bf16.gmra.mxu0 %v4648
      %v4766 = vpop.f32.mrf.mxu0
      %v4767 = vadd.f32 0.0, %v4766
      %v4768 = vpop.f32.mrf.mxu0
      %v4769 = vpop.f32.mrf.mxu0
      %v4770 = vadd.f32 0.0, %v4769
      %v4771 = vpop.f32.mrf.mxu0
      %4772 = vmatprep.mubr.bf16.mxu0 0
      %4773 = vmatmul.mubr.bf16.gmra.mxu0 %v4651
      %v4774 = vpop.f32.mrf.mxu0
      %v4775 = vadd.f32 0.0, %v4774
      %v4776 = vpop.f32.mrf.mxu0
      %v4777 = vpop.f32.mrf.mxu0
      %v4778 = vadd.f32 0.0, %v4777
      %v4779 = vpop.f32.mrf.mxu0
      %4780 = vmatprep.mubr.bf16.mxu0 0
      %4781 = vmatmul.mubr.bf16.gmra.mxu0 %v4654
      %v4782 = vpop.f32.mrf.mxu0
      %v4783 = vadd.f32 0.0, %v4782
      %v4784 = vpop.f32.mrf.mxu0
      %v4785 = vpop.f32.mrf.mxu0
      %v4786 = vadd.f32 0.0, %v4785
      %v4787 = vpop.f32.mrf.mxu0
      %4788 = vmatprep.mubr.bf16.mxu0 0
      %4789 = vmatmul.mubr.bf16.gmra.mxu0 %v4657
      %v4790 = vpop.f32.mrf.mxu0
      %v4791 = vadd.f32 0.0, %v4790
      %v4792 = vpop.f32.mrf.mxu0
      %v4793 = vpop.f32.mrf.mxu0
      %v4794 = vadd.f32 0.0, %v4793
      %v4795 = vpop.f32.mrf.mxu0
      %4796 = vmatprep.mubr.bf16.mxu0 0
      %4797 = vmatmul.mubr.bf16.gmra.mxu0 %v4660
      %v4798 = vpop.f32.mrf.mxu0
      %v4799 = vadd.f32 0.0, %v4798
      %v4800 = vpop.f32.mrf.mxu0
      %v4801 = vpop.f32.mrf.mxu0
      %v4802 = vadd.f32 0.0, %v4801
      %v4803 = vpop.f32.mrf.mxu0
      %4804 = vmatprep.mubr.bf16.mxu0 0
      %4805 = vmatmul.mubr.bf16.gmra.mxu0 %v4663
      %v4806 = vpop.f32.mrf.mxu0
      %v4807 = vadd.f32 0.0, %v4806
      %v4808 = vpop.f32.mrf.mxu0
      %v4809 = vpop.f32.mrf.mxu0
      %v4810 = vadd.f32 0.0, %v4809
      %v4811 = vpop.f32.mrf.mxu0
      %4812 = vmatprep.mubr.bf16.mxu0 0
      %4813 = vmatmul.mubr.bf16.gmra.mxu0 %v4666
      %v4814 = vpop.f32.mrf.mxu0
      %v4815 = vadd.f32 0.0, %v4814
      %v4816 = vpop.f32.mrf.mxu0
      %v4817 = vpop.f32.mrf.mxu0
      %v4818 = vadd.f32 0.0, %v4817
      %v4819 = vpop.f32.mrf.mxu0
      %4820 = vmatprep.mubr.bf16.mxu0 0
      %4821 = vmatmul.mubr.bf16.gmra.mxu0 %v4669
      %v4822 = vpop.f32.mrf.mxu0
      %v4823 = vadd.f32 0.0, %v4822
      %v4824 = vpop.f32.mrf.mxu0
      %v4825 = vpop.f32.mrf.mxu0
      %v4826 = vadd.f32 0.0, %v4825
      %v4827 = vpop.f32.mrf.mxu0
      %4828 = vmatprep.mubr.bf16.mxu0 0
      %4829 = vmatmul.mubr.bf16.gmra.mxu0 %v4672
      %v4830 = vpop.f32.mrf.mxu0
      %v4831 = vadd.f32 0.0, %v4830
      %v4832 = vpop.f32.mrf.mxu0
      %v4833 = vpop.f32.mrf.mxu0
      %v4834 = vadd.f32 0.0, %v4833
      %v4835 = vpop.f32.mrf.mxu0
      %4836 = vmatprep.mubr.bf16.mxu0 0
      %4837 = vmatmul.mubr.bf16.gmra.mxu0 %v4675
      %v4838 = vpop.f32.mrf.mxu0
      %v4839 = vadd.f32 0.0, %v4838
      %v4840 = vpop.f32.mrf.mxu0
      %v4841 = vpop.f32.mrf.mxu0
      %v4842 = vadd.f32 0.0, %v4841
      %v4843 = vpop.f32.mrf.mxu0
      %4844 = vmatprep.mubr.bf16.mxu0 0
      %4845 = vmatmul.mubr.bf16.gmra.mxu0 %v4678
      %v4846 = vpop.f32.mrf.mxu0
      %v4847 = vadd.f32 0.0, %v4846
      %v4848 = vpop.f32.mrf.mxu0
      %v4849 = vpop.f32.mrf.mxu0
      %v4850 = vadd.f32 0.0, %v4849
      %v4851 = vpop.f32.mrf.mxu0
      %4852 = vmatprep.mubr.bf16.mxu0 0
      %4853 = vmatmul.mubr.bf16.gmra.mxu0 %v4681
      %v4854 = vpop.f32.mrf.mxu0
      %v4855 = vadd.f32 0.0, %v4854
      %v4856 = vpop.f32.mrf.mxu0
      %v4857 = vpop.f32.mrf.mxu0
      %v4858 = vadd.f32 0.0, %v4857
      %v4859 = vpop.f32.mrf.mxu0
      %4860 = vmatprep.mubr.bf16.mxu0 0
      %4861 = vmatmul.mubr.bf16.gmra.mxu0 %v4684
      %v4862 = vpop.f32.mrf.mxu0
      %v4863 = vadd.f32 0.0, %v4862
      %v4864 = vpop.f32.mrf.mxu0
      %v4865 = vpop.f32.mrf.mxu0
      %v4866 = vadd.f32 0.0, %v4865
      %v4867 = vpop.f32.mrf.mxu0
      %4868 = vmatprep.mubr.bf16.mxu0 0
      %4869 = vmatmul.mubr.bf16.gmra.mxu0 %v4687
      %v4870 = vpop.f32.mrf.mxu0
      %v4871 = vadd.f32 0.0, %v4870
      %v4872 = vpop.f32.mrf.mxu0
      %v4873 = vpop.f32.mrf.mxu0
      %v4874 = vadd.f32 0.0, %v4873
      %v4875 = vpop.f32.mrf.mxu0
      %4876 = vmatprep.mubr.bf16.mxu0 0
      %4877 = vmatmul.mubr.bf16.gmra.mxu0 %v4690
      %v4878 = vpop.f32.mrf.mxu0
      %v4879 = vadd.f32 0.0, %v4878
      %v4880 = vpop.f32.mrf.mxu0
      %v4881 = vpop.f32.mrf.mxu0
      %v4882 = vadd.f32 0.0, %v4881
      %v4883 = vpop.f32.mrf.mxu0
      %4884 = vmatprep.mubr.bf16.mxu0 0
      %4885 = vmatmul.mubr.bf16.gmra.mxu0 %v4693
      %v4886 = vpop.f32.mrf.mxu0
      %v4887 = vadd.f32 0.0, %v4886
      %v4888 = vpop.f32.mrf.mxu0
      %v4889 = vpop.f32.mrf.mxu0
      %v4890 = vadd.f32 0.0, %v4889
      %v4891 = vpop.f32.mrf.mxu0
      %4892 = vmatprep.mubr.bf16.mxu0 0
      %4893 = vmatmul.mubr.bf16.gmra.mxu0 %v4696
      %v4894 = vpop.f32.mrf.mxu0
      %v4895 = vadd.f32 0.0, %v4894
      %v4896 = vpop.f32.mrf.mxu0
      %v4897 = vpop.f32.mrf.mxu0
      %v4898 = vadd.f32 0.0, %v4897
      %v4899 = vpop.f32.mrf.mxu0
      %4900 = vmatprep.mubr.bf16.mxu0 0
      %4901 = vmatmul.mubr.bf16.gmra.mxu0 %v4699
      %v4902 = vpop.f32.mrf.mxu0
      %v4903 = vadd.f32 0.0, %v4902
      %v4904 = vpop.f32.mrf.mxu0
      %v4905 = vpop.f32.mrf.mxu0
      %v4906 = vadd.f32 0.0, %v4905
      %v4907 = vpop.f32.mrf.mxu0
      %4908 = vmatprep.mubr.bf16.mxu0 0
      %4909 = vmatmul.mubr.bf16.gmra.mxu0 %v4702
      %v4910 = vpop.f32.mrf.mxu0
      %v4911 = vadd.f32 0.0, %v4910
      %v4912 = vpop.f32.mrf.mxu0
      %v4913 = vpop.f32.mrf.mxu0
      %v4914 = vadd.f32 0.0, %v4913
      %v4915 = vpop.f32.mrf.mxu0
      %4916 = vmatprep.mubr.bf16.mxu0 0
      %4917 = vmatmul.mubr.bf16.gmra.mxu0 %v4705
      %v4918 = vpop.f32.mrf.mxu0
      %v4919 = vadd.f32 0.0, %v4918
      %v4920 = vpop.f32.mrf.mxu0
      %v4921 = vpop.f32.mrf.mxu0
      %v4922 = vadd.f32 0.0, %v4921
      %v4923 = vpop.f32.mrf.mxu0
      %4924 = vmatprep.mubr.bf16.mxu0 0
      %4925 = vmatmul.mubr.bf16.gmra.mxu0 %v4708
      %v4926 = vpop.f32.mrf.mxu0
      %v4927 = vadd.f32 0.0, %v4926
      %v4928 = vpop.f32.mrf.mxu0
      %v4929 = vpop.f32.mrf.mxu0
      %v4930 = vadd.f32 0.0, %v4929
      %v4931 = vpop.f32.mrf.mxu0
      %4932 = vmatprep.mubr.bf16.mxu0 0
      %4933 = vmatmul.mubr.bf16.gmra.mxu0 %v4711
      %v4934 = vpop.f32.mrf.mxu0
      %v4935 = vadd.f32 0.0, %v4934
      %v4936 = vpop.f32.mrf.mxu0
      %v4937 = vpop.f32.mrf.mxu0
      %v4938 = vadd.f32 0.0, %v4937
      %v4939 = vpop.f32.mrf.mxu0
      %4940 = vdwg.mxu0
      %v4941 = vadd.f32 %v4568, %v4751
      %v4942 = vadd.f32 %v4569, %v4754
      %v4943 = vadd.f32 %v4570, %v4759
      %v4944 = vadd.f32 %v4571, %v4762
      %v4945 = vadd.f32 %v4572, %v4767
      %v4946 = vadd.f32 %v4573, %v4770
      %v4947 = vadd.f32 %v4574, %v4775
      %v4948 = vadd.f32 %v4575, %v4778
      %v4949 = vadd.f32 %v4576, %v4783
      %v4950 = vadd.f32 %v4577, %v4786
      %v4951 = vadd.f32 %v4578, %v4791
      %v4952 = vadd.f32 %v4579, %v4794
      %v4953 = vadd.f32 %v4580, %v4799
      %v4954 = vadd.f32 %v4581, %v4802
      %v4955 = vadd.f32 %v4582, %v4807
      %v4956 = vadd.f32 %v4583, %v4810
      %v4957 = vadd.f32 %v4584, %v4815
      %v4958 = vadd.f32 %v4585, %v4818
      %v4959 = vadd.f32 %v4586, %v4823
      %v4960 = vadd.f32 %v4587, %v4826
      %v4961 = vadd.f32 %v4588, %v4831
      %v4962 = vadd.f32 %v4589, %v4834
      %v4963 = vadd.f32 %v4590, %v4839
      %v4964 = vadd.f32 %v4591, %v4842
      %v4965 = vadd.f32 %v4592, %v4847
      %v4966 = vadd.f32 %v4593, %v4850
      %v4967 = vadd.f32 %v4594, %v4855
      %v4968 = vadd.f32 %v4595, %v4858
      %v4969 = vadd.f32 %v4596, %v4863
      %v4970 = vadd.f32 %v4597, %v4866
      %v4971 = vadd.f32 %v4598, %v4871
      %v4972 = vadd.f32 %v4599, %v4874
      %v4973 = vadd.f32 %v4600, %v4879
      %v4974 = vadd.f32 %v4601, %v4882
      %v4975 = vadd.f32 %v4602, %v4887
      %v4976 = vadd.f32 %v4603, %v4890
      %v4977 = vadd.f32 %v4604, %v4895
      %v4978 = vadd.f32 %v4605, %v4898
      %v4979 = vadd.f32 %v4606, %v4903
      %v4980 = vadd.f32 %v4607, %v4906
      %v4981 = vadd.f32 %v4608, %v4911
      %v4982 = vadd.f32 %v4609, %v4914
      %v4983 = vadd.f32 %v4610, %v4919
      %v4984 = vadd.f32 %v4611, %v4922
      %v4985 = vadd.f32 %v4612, %v4927
      %v4986 = vadd.f32 %v4613, %v4930
      %v4987 = vadd.f32 %v4614, %v4935
      %v4988 = vadd.f32 %v4615, %v4938
      %v4989 = vld [vmem:[%s271 + $0x1c] sm:$0xf]
      %v4990 = vld [vmem:[%s271 + $0x20] sm:$0xf]
      %v4991 = vld [vmem:[%s271 + $0x24] sm:$0xf]
      %v4992 = vld [vmem:[%s271 + $0x28] sm:$0xf]
      %v4993 = vld [vmem:[%s271 + $0x2c] sm:$0xf]
      %v4994 = vld [vmem:[%s271 + $0x30] sm:$0xf]
      %v4995 = vld [vmem:[%s271 + $0x34] sm:$0xf]
      %v4996 = vld [vmem:[%s271 + $0x38] sm:$0xf]
      %v4997 = vld [vmem:[%s271 + $0x3c] sm:$0xf]
      %v4998 = vld [vmem:[%s271 + $0x40] sm:$0xf]
      %v4999 = vld [vmem:[%s271 + $0x44] sm:$0xf]
      %v5000 = vld [vmem:[%s271 + $0x48] sm:$0xf]
      %v5001 = vld [vmem:[%s271 + $0x4c] sm:$0xf]
      %v5002 = vld [vmem:[%s271 + $0x50] sm:$0xf]
      %v5003 = vld [vmem:[%s271 + $0x54] sm:$0xf]
      %v5004 = vld [vmem:[%s271 + $0x58] sm:$0xf]
      %v5005 = vld [vmem:[%s271 + $0x5c] sm:$0xf]
      %v5006 = vld [vmem:[%s271 + $0x60] sm:$0xf]
      %v5007 = vld [vmem:[%s271 + $0x64] sm:$0xf]
      %v5008 = vld [vmem:[%s271 + $0x68] sm:$0xf]
      %v5009 = vld [vmem:[%s271 + $0x6c] sm:$0xf]
      %v5010 = vld [vmem:[%s271 + $0x70] sm:$0xf]
      %v5011 = vld [vmem:[%s271 + $0x74] sm:$0xf]
      %v5012 = vld [vmem:[%s271 + $0x78] sm:$0xf]
      %v5013 = vld [vmem:[%s271 + $0x7c] sm:$0xf]
      %v5014 = vld [vmem:[%s271 + $0x80] sm:$0xf]
      %v5015 = vld [vmem:[%s271 + $0x84] sm:$0xf]
      %v5016 = vld [vmem:[%s271 + $0x88] sm:$0xf]
      %v5017 = vld [vmem:[%s271 + $0x8c] sm:$0xf]
      %v5018 = vld [vmem:[%s271 + $0x90] sm:$0xf]
      %v5019 = vld [vmem:[%s271 + $0x94] sm:$0xf]
      %v5020 = vld [vmem:[%s271 + $0x98] sm:$0xf]
      %v5021 = vld [vmem:[%s271 + $0x9c] sm:$0xf]
      %v5022 = vld [vmem:[%s271 + $0xa0] sm:$0xf]
      %v5023 = vld [vmem:[%s271 + $0xa4] sm:$0xf]
      %v5024 = vld [vmem:[%s271 + $0xa8] sm:$0xf]
      %v5025 = vld [vmem:[%s271 + $0xac] sm:$0xf]
      %v5026 = vld [vmem:[%s271 + $0xb0] sm:$0xf]
      %v5027 = vld [vmem:[%s271 + $0xb4] sm:$0xf]
      %v5028 = vld [vmem:[%s271 + $0xb8] sm:$0xf]
      %v5029 = vld [vmem:[%s271 + $0xbc] sm:$0xf]
      %v5030 = vld [vmem:[%s271 + $0xc0] sm:$0xf]
      %v5031 = vld [vmem:[%s271 + $0xc4] sm:$0xf]
      %v5032 = vld [vmem:[%s271 + $0xc8] sm:$0xf]
      %v5033 = vld [vmem:[%s271 + $0xcc] sm:$0xf]
      %v5034 = vld [vmem:[%s271 + $0xd0] sm:$0xf]
      %v5035 = vld [vmem:[%s271 + $0xd4] sm:$0xf]
      %v5036 = vld [vmem:[%s271 + $0xd8] sm:$0xf]
      %v5037 = vld [vmem:[%s271 + $0xdc] sm:$0x1]
      %v5038 = vld [vmem:[%s275 + $0x20] sm:$0xf]
      %v5088 = vunpack.c.l.b16 %v4989
      %v5089 = vunpack.c.l.b16 %v4990
      %v5090 = vunpack.c.l.b16 %v4991
      %v5091 = vunpack.c.l.b16 %v4992
      %v5092 = vunpack.c.l.b16 %v4993
      %v5093 = vunpack.c.l.b16 %v4994
      %v5094 = vunpack.c.l.b16 %v4995
      %v5095 = vunpack.c.l.b16 %v4996
      %v5096 = vunpack.c.l.b16 %v4997
      %v5097 = vunpack.c.l.b16 %v4998
      %v5098 = vunpack.c.l.b16 %v4999
      %v5099 = vunpack.c.l.b16 %v5000
      %v5100 = vunpack.c.l.b16 %v5001
      %v5101 = vunpack.c.l.b16 %v5002
      %v5102 = vunpack.c.l.b16 %v5003
      %v5103 = vunpack.c.l.b16 %v5004
      %v5104 = vunpack.c.l.b16 %v5005
      %v5105 = vunpack.c.l.b16 %v5006
      %v5106 = vunpack.c.l.b16 %v5007
      %v5107 = vunpack.c.l.b16 %v5008
      %v5108 = vunpack.c.l.b16 %v5009
      %v5109 = vunpack.c.l.b16 %v5010
      %v5110 = vunpack.c.l.b16 %v5011
      %v5111 = vunpack.c.l.b16 %v5012
      %v5112 = vunpack.c.l.b16 %v5013
      %v5113 = vunpack.c.l.b16 %v5014
      %v5114 = vunpack.c.l.b16 %v5015
      %v5115 = vunpack.c.l.b16 %v5016
      %v5116 = vunpack.c.l.b16 %v5017
      %v5117 = vunpack.c.l.b16 %v5018
      %v5118 = vunpack.c.l.b16 %v5019
      %v5119 = vunpack.c.l.b16 %v5020
      %v5120 = vunpack.c.l.b16 %v5021
      %v5121 = vunpack.c.l.b16 %v5022
      %v5122 = vunpack.c.l.b16 %v5023
      %v5123 = vunpack.c.l.b16 %v5024
      %v5124 = vunpack.c.l.b16 %v5025
      %v5125 = vunpack.c.l.b16 %v5026
      %v5126 = vunpack.c.l.b16 %v5027
      %v5127 = vunpack.c.l.b16 %v5028
      %v5128 = vunpack.c.l.b16 %v5029
      %v5129 = vunpack.c.l.b16 %v5030
      %v5130 = vunpack.c.l.b16 %v5031
      %v5131 = vunpack.c.l.b16 %v5032
      %v5132 = vunpack.c.l.b16 %v5033
      %v5133 = vunpack.c.l.b16 %v5034
      %v5134 = vunpack.c.l.b16 %v5035
      %v5135 = vunpack.c.l.b16 %v5036
      %v5136 = vunpack.c.l.b16 %v5037
      %v5137 = vpack.c.b16 %v5089, %v5088
      %v5138 = vpack.c.b16 %v5091, %v5090
      %v5139 = vpack.c.b16 %v5093, %v5092
      %v5140 = vpack.c.b16 %v5095, %v5094
      %v5141 = vpack.c.b16 %v5097, %v5096
      %v5142 = vpack.c.b16 %v5099, %v5098
      %v5143 = vpack.c.b16 %v5101, %v5100
      %v5144 = vpack.c.b16 %v5103, %v5102
      %v5145 = vpack.c.b16 %v5105, %v5104
      %v5146 = vpack.c.b16 %v5107, %v5106
      %v5147 = vpack.c.b16 %v5109, %v5108
      %v5148 = vpack.c.b16 %v5111, %v5110
      %v5149 = vpack.c.b16 %v5113, %v5112
      %v5150 = vpack.c.b16 %v5115, %v5114
      %v5151 = vpack.c.b16 %v5117, %v5116
      %v5152 = vpack.c.b16 %v5119, %v5118
      %v5153 = vpack.c.b16 %v5121, %v5120
      %v5154 = vpack.c.b16 %v5123, %v5122
      %v5155 = vpack.c.b16 %v5125, %v5124
      %v5156 = vpack.c.b16 %v5127, %v5126
      %v5157 = vpack.c.b16 %v5129, %v5128
      %v5158 = vpack.c.b16 %v5131, %v5130
      %v5159 = vpack.c.b16 %v5133, %v5132
      %v5160 = vpack.c.b16 %v5135, %v5134
      %v5161 = vpack.c.b16 %v5136, %v5136
      %v5163 = vshrl.u32 %v5137, 16
      %v5165 = vshll.u32 %v5137, 16
      %v5167 = vrot.slane %v5165, 1
      %v5168 = vor.u32 %v5163, %v5167
      %v5170 = vshll.u32 %v5138, 16
      %v5172 = vrot.slane %v5170, 1
      %v5173 = vsel %vm1491, %v5168, %v5172
      %v5174 = vshrl.u32 %v5138, 16
      %v5176 = vor.u32 %v5174, %v5172
      %v5178 = vshll.u32 %v5139, 16
      %v5180 = vrot.slane %v5178, 1
      %v5181 = vsel %vm1491, %v5176, %v5180
      %v5182 = vshrl.u32 %v5139, 16
      %v5184 = vor.u32 %v5182, %v5180
      %v5186 = vshll.u32 %v5140, 16
      %v5188 = vrot.slane %v5186, 1
      %v5189 = vsel %vm1491, %v5184, %v5188
      %v5190 = vshrl.u32 %v5140, 16
      %v5192 = vor.u32 %v5190, %v5188
      %v5194 = vshll.u32 %v5141, 16
      %v5196 = vrot.slane %v5194, 1
      %v5197 = vsel %vm1491, %v5192, %v5196
      %v5198 = vshrl.u32 %v5141, 16
      %v5200 = vor.u32 %v5198, %v5196
      %v5202 = vshll.u32 %v5142, 16
      %v5204 = vrot.slane %v5202, 1
      %v5205 = vsel %vm1491, %v5200, %v5204
      %v5206 = vshrl.u32 %v5142, 16
      %v5208 = vor.u32 %v5206, %v5204
      %v5210 = vshll.u32 %v5143, 16
      %v5212 = vrot.slane %v5210, 1
      %v5213 = vsel %vm1491, %v5208, %v5212
      %v5214 = vshrl.u32 %v5143, 16
      %v5216 = vor.u32 %v5214, %v5212
      %v5218 = vshll.u32 %v5144, 16
      %v5220 = vrot.slane %v5218, 1
      %v5221 = vsel %vm1491, %v5216, %v5220
      %v5222 = vshrl.u32 %v5144, 16
      %v5224 = vor.u32 %v5222, %v5220
      %v5226 = vshll.u32 %v5145, 16
      %v5228 = vrot.slane %v5226, 1
      %v5229 = vsel %vm1491, %v5224, %v5228
      %v5230 = vshrl.u32 %v5145, 16
      %v5232 = vor.u32 %v5230, %v5228
      %v5234 = vshll.u32 %v5146, 16
      %v5236 = vrot.slane %v5234, 1
      %v5237 = vsel %vm1491, %v5232, %v5236
      %v5238 = vshrl.u32 %v5146, 16
      %v5240 = vor.u32 %v5238, %v5236
      %v5242 = vshll.u32 %v5147, 16
      %v5244 = vrot.slane %v5242, 1
      %v5245 = vsel %vm1491, %v5240, %v5244
      %v5246 = vshrl.u32 %v5147, 16
      %v5248 = vor.u32 %v5246, %v5244
      %v5250 = vshll.u32 %v5148, 16
      %v5252 = vrot.slane %v5250, 1
      %v5253 = vsel %vm1491, %v5248, %v5252
      %v5254 = vshrl.u32 %v5148, 16
      %v5256 = vor.u32 %v5254, %v5252
      %v5258 = vshll.u32 %v5149, 16
      %v5260 = vrot.slane %v5258, 1
      %v5261 = vsel %vm1491, %v5256, %v5260
      %v5262 = vshrl.u32 %v5149, 16
      %v5264 = vor.u32 %v5262, %v5260
      %v5266 = vshll.u32 %v5150, 16
      %v5268 = vrot.slane %v5266, 1
      %v5269 = vsel %vm1491, %v5264, %v5268
      %v5270 = vshrl.u32 %v5150, 16
      %v5272 = vor.u32 %v5270, %v5268
      %v5274 = vshll.u32 %v5151, 16
      %v5276 = vrot.slane %v5274, 1
      %v5277 = vsel %vm1491, %v5272, %v5276
      %v5278 = vshrl.u32 %v5151, 16
      %v5280 = vor.u32 %v5278, %v5276
      %v5282 = vshll.u32 %v5152, 16
      %v5284 = vrot.slane %v5282, 1
      %v5285 = vsel %vm1491, %v5280, %v5284
      %v5286 = vshrl.u32 %v5152, 16
      %v5288 = vor.u32 %v5286, %v5284
      %v5290 = vshll.u32 %v5153, 16
      %v5292 = vrot.slane %v5290, 1
      %v5293 = vsel %vm1491, %v5288, %v5292
      %v5294 = vshrl.u32 %v5153, 16
      %v5296 = vor.u32 %v5294, %v5292
      %v5298 = vshll.u32 %v5154, 16
      %v5300 = vrot.slane %v5298, 1
      %v5301 = vsel %vm1491, %v5296, %v5300
      %v5302 = vshrl.u32 %v5154, 16
      %v5304 = vor.u32 %v5302, %v5300
      %v5306 = vshll.u32 %v5155, 16
      %v5308 = vrot.slane %v5306, 1
      %v5309 = vsel %vm1491, %v5304, %v5308
      %v5310 = vshrl.u32 %v5155, 16
      %v5312 = vor.u32 %v5310, %v5308
      %v5314 = vshll.u32 %v5156, 16
      %v5316 = vrot.slane %v5314, 1
      %v5317 = vsel %vm1491, %v5312, %v5316
      %v5318 = vshrl.u32 %v5156, 16
      %v5320 = vor.u32 %v5318, %v5316
      %v5322 = vshll.u32 %v5157, 16
      %v5324 = vrot.slane %v5322, 1
      %v5325 = vsel %vm1491, %v5320, %v5324
      %v5326 = vshrl.u32 %v5157, 16
      %v5328 = vor.u32 %v5326, %v5324
      %v5330 = vshll.u32 %v5158, 16
      %v5332 = vrot.slane %v5330, 1
      %v5333 = vsel %vm1491, %v5328, %v5332
      %v5334 = vshrl.u32 %v5158, 16
      %v5336 = vor.u32 %v5334, %v5332
      %v5338 = vshll.u32 %v5159, 16
      %v5340 = vrot.slane %v5338, 1
      %v5341 = vsel %vm1491, %v5336, %v5340
      %v5342 = vshrl.u32 %v5159, 16
      %v5344 = vor.u32 %v5342, %v5340
      %v5346 = vshll.u32 %v5160, 16
      %v5348 = vrot.slane %v5346, 1
      %v5349 = vsel %vm1491, %v5344, %v5348
      %v5350 = vshrl.u32 %v5160, 16
      %v5352 = vor.u32 %v5350, %v5348
      %v5354 = vshll.u32 %v5161, 16
      %v5356 = vrot.slane %v5354, 1
      %v5357 = vsel %vm1491, %v5352, %v5356
      %v5359 = vsel %vm464, %v5173, 0
      %v5362 = vsel %vm464, %v5181, 0
      %v5365 = vsel %vm464, %v5189, 0
      %v5368 = vsel %vm464, %v5197, 0
      %v5371 = vsel %vm464, %v5205, 0
      %v5374 = vsel %vm464, %v5213, 0
      %v5377 = vsel %vm464, %v5221, 0
      %v5380 = vsel %vm464, %v5229, 0
      %v5383 = vsel %vm464, %v5237, 0
      %v5386 = vsel %vm464, %v5245, 0
      %v5389 = vsel %vm464, %v5253, 0
      %v5392 = vsel %vm464, %v5261, 0
      %v5395 = vsel %vm464, %v5269, 0
      %v5398 = vsel %vm464, %v5277, 0
      %v5401 = vsel %vm464, %v5285, 0
      %v5404 = vsel %vm464, %v5293, 0
      %v5407 = vsel %vm464, %v5301, 0
      %v5410 = vsel %vm464, %v5309, 0
      %v5413 = vsel %vm464, %v5317, 0
      %v5416 = vsel %vm464, %v5325, 0
      %v5419 = vsel %vm464, %v5333, 0
      %v5422 = vsel %vm464, %v5341, 0
      %v5425 = vsel %vm464, %v5349, 0
      %v5428 = vsel %vm464, %v5357, 0
      %v5431 = vsel %vm537, %v5038, 0
      %5433 = vmatprep.subr.bf16.mxu0 0
      %5434 = vmatpush1.bf16.msra.mxu0 0
      %5435 = vmatprep.subr.bf16.mxu0 0
      %5436 = vmatpush1.bf16.msra.mxu0 0
      %5437 = vmatprep.subr.bf16.mxu0 0
      %5438 = vmatpush1.bf16.msra.mxu0 0
      %5439 = vmatprep.subr.bf16.mxu0 0
      %5440 = vmatpush1.bf16.msra.mxu0 0
      %5441 = vmatprep.subr.bf16.mxu0 0
      %5442 = vmatpush1.bf16.msra.mxu0 0
      %5443 = vmatprep.subr.bf16.mxu0 0
      %5444 = vmatpush1.bf16.msra.mxu0 0
      %5445 = vmatprep.subr.bf16.mxu0 0
      %5446 = vmatpush1.bf16.msra.mxu0 0
      %5447 = vmatprep.subr.bf16.mxu0 0
      %5448 = vmatpush1.bf16.msra.mxu0 %v5431
      %5449 = vmatprep.subr.bf16.mxu0 0
      %5450 = vmatpush2.bf16.msra.mxu0 0
      %5451 = vmatprep.subr.bf16.mxu0 0
      %5452 = vmatpush2.bf16.msra.mxu0 0
      %5453 = vmatprep.subr.bf16.mxu0 0
      %5454 = vmatpush2.bf16.msra.mxu0 0
      %5455 = vmatprep.subr.bf16.mxu0 0
      %5456 = vmatpush2.bf16.msra.mxu0 0
      %5457 = vmatprep.subr.bf16.mxu0 0
      %5458 = vmatpush2.bf16.msra.mxu0 0
      %5459 = vmatprep.subr.bf16.mxu0 0
      %5460 = vmatpush2.bf16.msra.mxu0 0
      %5461 = vmatprep.subr.bf16.mxu0 0
      %5462 = vmatpush2.bf16.msra.mxu0 0
      %5463 = vmatprep.subr.bf16.mxu0 0
      %5464 = vmatpush2.bf16.msra.mxu0 0
      %5465 = vmatprep.mubr.bf16.mxu0 0
      %5466 = vmatmul.mubr.bf16.gmra.mxu0 %v5359
      %v5467 = vpop.f32.mrf.mxu0
      %v5468 = vadd.f32 0.0, %v5467
      %v5469 = vpop.f32.mrf.mxu0
      %v5470 = vpop.f32.mrf.mxu0
      %v5471 = vadd.f32 0.0, %v5470
      %v5472 = vpop.f32.mrf.mxu0
      %5473 = vmatprep.mubr.bf16.mxu0 0
      %5474 = vmatmul.mubr.bf16.gmra.mxu0 %v5362
      %v5475 = vpop.f32.mrf.mxu0
      %v5476 = vadd.f32 0.0, %v5475
      %v5477 = vpop.f32.mrf.mxu0
      %v5478 = vpop.f32.mrf.mxu0
      %v5479 = vadd.f32 0.0, %v5478
      %v5480 = vpop.f32.mrf.mxu0
      %5481 = vmatprep.mubr.bf16.mxu0 0
      %5482 = vmatmul.mubr.bf16.gmra.mxu0 %v5365
      %v5483 = vpop.f32.mrf.mxu0
      %v5484 = vadd.f32 0.0, %v5483
      %v5485 = vpop.f32.mrf.mxu0
      %v5486 = vpop.f32.mrf.mxu0
      %v5487 = vadd.f32 0.0, %v5486
      %v5488 = vpop.f32.mrf.mxu0
      %5489 = vmatprep.mubr.bf16.mxu0 0
      %5490 = vmatmul.mubr.bf16.gmra.mxu0 %v5368
      %v5491 = vpop.f32.mrf.mxu0
      %v5492 = vadd.f32 0.0, %v5491
      %v5493 = vpop.f32.mrf.mxu0
      %v5494 = vpop.f32.mrf.mxu0
      %v5495 = vadd.f32 0.0, %v5494
      %v5496 = vpop.f32.mrf.mxu0
      %5497 = vmatprep.mubr.bf16.mxu0 0
      %5498 = vmatmul.mubr.bf16.gmra.mxu0 %v5371
      %v5499 = vpop.f32.mrf.mxu0
      %v5500 = vadd.f32 0.0, %v5499
      %v5501 = vpop.f32.mrf.mxu0
      %v5502 = vpop.f32.mrf.mxu0
      %v5503 = vadd.f32 0.0, %v5502
      %v5504 = vpop.f32.mrf.mxu0
      %5505 = vmatprep.mubr.bf16.mxu0 0
      %5506 = vmatmul.mubr.bf16.gmra.mxu0 %v5374
      %v5507 = vpop.f32.mrf.mxu0
      %v5508 = vadd.f32 0.0, %v5507
      %v5509 = vpop.f32.mrf.mxu0
      %v5510 = vpop.f32.mrf.mxu0
      %v5511 = vadd.f32 0.0, %v5510
      %v5512 = vpop.f32.mrf.mxu0
      %5513 = vmatprep.mubr.bf16.mxu0 0
      %5514 = vmatmul.mubr.bf16.gmra.mxu0 %v5377
      %v5515 = vpop.f32.mrf.mxu0
      %v5516 = vadd.f32 0.0, %v5515
      %v5517 = vpop.f32.mrf.mxu0
      %v5518 = vpop.f32.mrf.mxu0
      %v5519 = vadd.f32 0.0, %v5518
      %v5520 = vpop.f32.mrf.mxu0
      %5521 = vmatprep.mubr.bf16.mxu0 0
      %5522 = vmatmul.mubr.bf16.gmra.mxu0 %v5380
      %v5523 = vpop.f32.mrf.mxu0
      %v5524 = vadd.f32 0.0, %v5523
      %v5525 = vpop.f32.mrf.mxu0
      %v5526 = vpop.f32.mrf.mxu0
      %v5527 = vadd.f32 0.0, %v5526
      %v5528 = vpop.f32.mrf.mxu0
      %5529 = vmatprep.mubr.bf16.mxu0 0
      %5530 = vmatmul.mubr.bf16.gmra.mxu0 %v5383
      %v5531 = vpop.f32.mrf.mxu0
      %v5532 = vadd.f32 0.0, %v5531
      %v5533 = vpop.f32.mrf.mxu0
      %v5534 = vpop.f32.mrf.mxu0
      %v5535 = vadd.f32 0.0, %v5534
      %v5536 = vpop.f32.mrf.mxu0
      %5537 = vmatprep.mubr.bf16.mxu0 0
      %5538 = vmatmul.mubr.bf16.gmra.mxu0 %v5386
      %v5539 = vpop.f32.mrf.mxu0
      %v5540 = vadd.f32 0.0, %v5539
      %v5541 = vpop.f32.mrf.mxu0
      %v5542 = vpop.f32.mrf.mxu0
      %v5543 = vadd.f32 0.0, %v5542
      %v5544 = vpop.f32.mrf.mxu0
      %5545 = vmatprep.mubr.bf16.mxu0 0
      %5546 = vmatmul.mubr.bf16.gmra.mxu0 %v5389
      %v5547 = vpop.f32.mrf.mxu0
      %v5548 = vadd.f32 0.0, %v5547
      %v5549 = vpop.f32.mrf.mxu0
      %v5550 = vpop.f32.mrf.mxu0
      %v5551 = vadd.f32 0.0, %v5550
      %v5552 = vpop.f32.mrf.mxu0
      %5553 = vmatprep.mubr.bf16.mxu0 0
      %5554 = vmatmul.mubr.bf16.gmra.mxu0 %v5392
      %v5555 = vpop.f32.mrf.mxu0
      %v5556 = vadd.f32 0.0, %v5555
      %v5557 = vpop.f32.mrf.mxu0
      %v5558 = vpop.f32.mrf.mxu0
      %v5559 = vadd.f32 0.0, %v5558
      %v5560 = vpop.f32.mrf.mxu0
      %5561 = vmatprep.mubr.bf16.mxu0 0
      %5562 = vmatmul.mubr.bf16.gmra.mxu0 %v5395
      %v5563 = vpop.f32.mrf.mxu0
      %v5564 = vadd.f32 0.0, %v5563
      %v5565 = vpop.f32.mrf.mxu0
      %v5566 = vpop.f32.mrf.mxu0
      %v5567 = vadd.f32 0.0, %v5566
      %v5568 = vpop.f32.mrf.mxu0
      %5569 = vmatprep.mubr.bf16.mxu0 0
      %5570 = vmatmul.mubr.bf16.gmra.mxu0 %v5398
      %v5571 = vpop.f32.mrf.mxu0
      %v5572 = vadd.f32 0.0, %v5571
      %v5573 = vpop.f32.mrf.mxu0
      %v5574 = vpop.f32.mrf.mxu0
      %v5575 = vadd.f32 0.0, %v5574
      %v5576 = vpop.f32.mrf.mxu0
      %5577 = vmatprep.mubr.bf16.mxu0 0
      %5578 = vmatmul.mubr.bf16.gmra.mxu0 %v5401
      %v5579 = vpop.f32.mrf.mxu0
      %v5580 = vadd.f32 0.0, %v5579
      %v5581 = vpop.f32.mrf.mxu0
      %v5582 = vpop.f32.mrf.mxu0
      %v5583 = vadd.f32 0.0, %v5582
      %v5584 = vpop.f32.mrf.mxu0
      %5585 = vmatprep.mubr.bf16.mxu0 0
      %5586 = vmatmul.mubr.bf16.gmra.mxu0 %v5404
      %v5587 = vpop.f32.mrf.mxu0
      %v5588 = vadd.f32 0.0, %v5587
      %v5589 = vpop.f32.mrf.mxu0
      %v5590 = vpop.f32.mrf.mxu0
      %v5591 = vadd.f32 0.0, %v5590
      %v5592 = vpop.f32.mrf.mxu0
      %5593 = vmatprep.mubr.bf16.mxu0 0
      %5594 = vmatmul.mubr.bf16.gmra.mxu0 %v5407
      %v5595 = vpop.f32.mrf.mxu0
      %v5596 = vadd.f32 0.0, %v5595
      %v5597 = vpop.f32.mrf.mxu0
      %v5598 = vpop.f32.mrf.mxu0
      %v5599 = vadd.f32 0.0, %v5598
      %v5600 = vpop.f32.mrf.mxu0
      %5601 = vmatprep.mubr.bf16.mxu0 0
      %5602 = vmatmul.mubr.bf16.gmra.mxu0 %v5410
      %v5603 = vpop.f32.mrf.mxu0
      %v5604 = vadd.f32 0.0, %v5603
      %v5605 = vpop.f32.mrf.mxu0
      %v5606 = vpop.f32.mrf.mxu0
      %v5607 = vadd.f32 0.0, %v5606
      %v5608 = vpop.f32.mrf.mxu0
      %5609 = vmatprep.mubr.bf16.mxu0 0
      %5610 = vmatmul.mubr.bf16.gmra.mxu0 %v5413
      %v5611 = vpop.f32.mrf.mxu0
      %v5612 = vadd.f32 0.0, %v5611
      %v5613 = vpop.f32.mrf.mxu0
      %v5614 = vpop.f32.mrf.mxu0
      %v5615 = vadd.f32 0.0, %v5614
      %v5616 = vpop.f32.mrf.mxu0
      %5617 = vmatprep.mubr.bf16.mxu0 0
      %5618 = vmatmul.mubr.bf16.gmra.mxu0 %v5416
      %v5619 = vpop.f32.mrf.mxu0
      %v5620 = vadd.f32 0.0, %v5619
      %v5621 = vpop.f32.mrf.mxu0
      %v5622 = vpop.f32.mrf.mxu0
      %v5623 = vadd.f32 0.0, %v5622
      %v5624 = vpop.f32.mrf.mxu0
      %5625 = vmatprep.mubr.bf16.mxu0 0
      %5626 = vmatmul.mubr.bf16.gmra.mxu0 %v5419
      %v5627 = vpop.f32.mrf.mxu0
      %v5628 = vadd.f32 0.0, %v5627
      %v5629 = vpop.f32.mrf.mxu0
      %v5630 = vpop.f32.mrf.mxu0
      %v5631 = vadd.f32 0.0, %v5630
      %v5632 = vpop.f32.mrf.mxu0
      %5633 = vmatprep.mubr.bf16.mxu0 0
      %5634 = vmatmul.mubr.bf16.gmra.mxu0 %v5422
      %v5635 = vpop.f32.mrf.mxu0
      %v5636 = vadd.f32 0.0, %v5635
      %v5637 = vpop.f32.mrf.mxu0
      %v5638 = vpop.f32.mrf.mxu0
      %v5639 = vadd.f32 0.0, %v5638
      %v5640 = vpop.f32.mrf.mxu0
      %5641 = vmatprep.mubr.bf16.mxu0 0
      %5642 = vmatmul.mubr.bf16.gmra.mxu0 %v5425
      %v5643 = vpop.f32.mrf.mxu0
      %v5644 = vadd.f32 0.0, %v5643
      %v5645 = vpop.f32.mrf.mxu0
      %v5646 = vpop.f32.mrf.mxu0
      %v5647 = vadd.f32 0.0, %v5646
      %v5648 = vpop.f32.mrf.mxu0
      %5649 = vmatprep.mubr.bf16.mxu0 0
      %5650 = vmatmul.mubr.bf16.gmra.mxu0 %v5428
      %v5651 = vpop.f32.mrf.mxu0
      %v5652 = vadd.f32 0.0, %v5651
      %v5653 = vpop.f32.mrf.mxu0
      %v5654 = vpop.f32.mrf.mxu0
      %v5655 = vadd.f32 0.0, %v5654
      %v5656 = vpop.f32.mrf.mxu0
      %5657 = vdwg.mxu0
      %v5658 = vadd.f32 %v4941, %v5468
      %v5659 = vadd.f32 %v4942, %v5471
      %v5660 = vadd.f32 %v4943, %v5476
      %v5661 = vadd.f32 %v4944, %v5479
      %v5662 = vadd.f32 %v4945, %v5484
      %v5663 = vadd.f32 %v4946, %v5487
      %v5664 = vadd.f32 %v4947, %v5492
      %v5665 = vadd.f32 %v4948, %v5495
      %v5666 = vadd.f32 %v4949, %v5500
      %v5667 = vadd.f32 %v4950, %v5503
      %v5668 = vadd.f32 %v4951, %v5508
      %v5669 = vadd.f32 %v4952, %v5511
      %v5670 = vadd.f32 %v4953, %v5516
      %v5671 = vadd.f32 %v4954, %v5519
      %v5672 = vadd.f32 %v4955, %v5524
      %v5673 = vadd.f32 %v4956, %v5527
      %v5674 = vadd.f32 %v4957, %v5532
      %v5675 = vadd.f32 %v4958, %v5535
      %v5676 = vadd.f32 %v4959, %v5540
      %v5677 = vadd.f32 %v4960, %v5543
      %v5678 = vadd.f32 %v4961, %v5548
      %v5679 = vadd.f32 %v4962, %v5551
      %v5680 = vadd.f32 %v4963, %v5556
      %v5681 = vadd.f32 %v4964, %v5559
      %v5682 = vadd.f32 %v4965, %v5564
      %v5683 = vadd.f32 %v4966, %v5567
      %v5684 = vadd.f32 %v4967, %v5572
      %v5685 = vadd.f32 %v4968, %v5575
      %v5686 = vadd.f32 %v4969, %v5580
      %v5687 = vadd.f32 %v4970, %v5583
      %v5688 = vadd.f32 %v4971, %v5588
      %v5689 = vadd.f32 %v4972, %v5591
      %v5690 = vadd.f32 %v4973, %v5596
      %v5691 = vadd.f32 %v4974, %v5599
      %v5692 = vadd.f32 %v4975, %v5604
      %v5693 = vadd.f32 %v4976, %v5607
      %v5694 = vadd.f32 %v4977, %v5612
      %v5695 = vadd.f32 %v4978, %v5615
      %v5696 = vadd.f32 %v4979, %v5620
      %v5697 = vadd.f32 %v4980, %v5623
      %v5698 = vadd.f32 %v4981, %v5628
      %v5699 = vadd.f32 %v4982, %v5631
      %v5700 = vadd.f32 %v4983, %v5636
      %v5701 = vadd.f32 %v4984, %v5639
      %v5702 = vadd.f32 %v4985, %v5644
      %v5703 = vadd.f32 %v4986, %v5647
      %v5704 = vadd.f32 %v4987, %v5652
      %v5705 = vadd.f32 %v4988, %v5655
      %v5707 = vlaneseq
      %v5708 = vshrl.u32 %v5707, 7
      %v5709 = vsub.s32 0, %v5708
      %v5710 = vrot.slane %v291, %v5709
      %v5712 = vmul.f32 %v5658, %v5710
      %v5713 = vmul.f32 %v5659, %v5710
      %v5714 = vmul.f32 %v5660, %v5710
      %v5715 = vmul.f32 %v5661, %v5710
      %v5716 = vmul.f32 %v5662, %v5710
      %v5717 = vmul.f32 %v5663, %v5710
      %v5718 = vmul.f32 %v5664, %v5710
      %v5719 = vmul.f32 %v5665, %v5710
      %v5720 = vmul.f32 %v5666, %v5710
      %v5721 = vmul.f32 %v5667, %v5710
      %v5722 = vmul.f32 %v5668, %v5710
      %v5723 = vmul.f32 %v5669, %v5710
      %v5724 = vmul.f32 %v5670, %v5710
      %v5725 = vmul.f32 %v5671, %v5710
      %v5726 = vmul.f32 %v5672, %v5710
      %v5727 = vmul.f32 %v5673, %v5710
      %v5728 = vmul.f32 %v5674, %v5710
      %v5729 = vmul.f32 %v5675, %v5710
      %v5730 = vmul.f32 %v5676, %v5710
      %v5731 = vmul.f32 %v5677, %v5710
      %v5732 = vmul.f32 %v5678, %v5710
      %v5733 = vmul.f32 %v5679, %v5710
      %v5734 = vmul.f32 %v5680, %v5710
      %v5735 = vmul.f32 %v5681, %v5710
      %v5736 = vmul.f32 %v5682, %v5710
      %v5737 = vmul.f32 %v5683, %v5710
      %v5738 = vmul.f32 %v5684, %v5710
      %v5739 = vmul.f32 %v5685, %v5710
      %v5740 = vmul.f32 %v5686, %v5710
      %v5741 = vmul.f32 %v5687, %v5710
      %v5742 = vmul.f32 %v5688, %v5710
      %v5743 = vmul.f32 %v5689, %v5710
      %v5744 = vmul.f32 %v5690, %v5710
      %v5745 = vmul.f32 %v5691, %v5710
      %v5746 = vmul.f32 %v5692, %v5710
      %v5747 = vmul.f32 %v5693, %v5710
      %v5748 = vmul.f32 %v5694, %v5710
      %v5749 = vmul.f32 %v5695, %v5710
      %v5750 = vmul.f32 %v5696, %v5710
      %v5751 = vmul.f32 %v5697, %v5710
      %v5752 = vmul.f32 %v5698, %v5710
      %v5753 = vmul.f32 %v5699, %v5710
      %v5754 = vmul.f32 %v5700, %v5710
      %v5755 = vmul.f32 %v5701, %v5710
      %v5756 = vmul.f32 %v5702, %v5710
      %v5757 = vmul.f32 %v5703, %v5710
      %v5758 = vmul.f32 %v5704, %v5710
      %v5759 = vmul.f32 %v5705, %v5710
      %v5761 = vlaneseq
      %v5762 = vshrl.u32 %v5761, 7
      %v5763 = vsub.s32 0, %v5762
      %v5764 = vrot.slane %v292, %v5763
      %v5766 = vadd.f32 %v5712, %v5764
      %v5767 = vadd.f32 %v5713, %v5764
      %v5768 = vadd.f32 %v5714, %v5764
      %v5769 = vadd.f32 %v5715, %v5764
      %v5770 = vadd.f32 %v5716, %v5764
      %v5771 = vadd.f32 %v5717, %v5764
      %v5772 = vadd.f32 %v5718, %v5764
      %v5773 = vadd.f32 %v5719, %v5764
      %v5774 = vadd.f32 %v5720, %v5764
      %v5775 = vadd.f32 %v5721, %v5764
      %v5776 = vadd.f32 %v5722, %v5764
      %v5777 = vadd.f32 %v5723, %v5764
      %v5778 = vadd.f32 %v5724, %v5764
      %v5779 = vadd.f32 %v5725, %v5764
      %v5780 = vadd.f32 %v5726, %v5764
      %v5781 = vadd.f32 %v5727, %v5764
      %v5782 = vadd.f32 %v5728, %v5764
      %v5783 = vadd.f32 %v5729, %v5764
      %v5784 = vadd.f32 %v5730, %v5764
      %v5785 = vadd.f32 %v5731, %v5764
      %v5786 = vadd.f32 %v5732, %v5764
      %v5787 = vadd.f32 %v5733, %v5764
      %v5788 = vadd.f32 %v5734, %v5764
      %v5789 = vadd.f32 %v5735, %v5764
      %v5790 = vadd.f32 %v5736, %v5764
      %v5791 = vadd.f32 %v5737, %v5764
      %v5792 = vadd.f32 %v5738, %v5764
      %v5793 = vadd.f32 %v5739, %v5764
      %v5794 = vadd.f32 %v5740, %v5764
      %v5795 = vadd.f32 %v5741, %v5764
      %v5796 = vadd.f32 %v5742, %v5764
      %v5797 = vadd.f32 %v5743, %v5764
      %v5798 = vadd.f32 %v5744, %v5764
      %v5799 = vadd.f32 %v5745, %v5764
      %v5800 = vadd.f32 %v5746, %v5764
      %v5801 = vadd.f32 %v5747, %v5764
      %v5802 = vadd.f32 %v5748, %v5764
      %v5803 = vadd.f32 %v5749, %v5764
      %v5804 = vadd.f32 %v5750, %v5764
      %v5805 = vadd.f32 %v5751, %v5764
      %v5806 = vadd.f32 %v5752, %v5764
      %v5807 = vadd.f32 %v5753, %v5764
      %v5808 = vadd.f32 %v5754, %v5764
      %v5809 = vadd.f32 %v5755, %v5764
      %v5810 = vadd.f32 %v5756, %v5764
      %v5811 = vadd.f32 %v5757, %v5764
      %v5812 = vadd.f32 %v5758, %v5764
      %v5813 = vadd.f32 %v5759, %v5764
      %v5814 = vmax.f32 %v5766, 0.0
      %v5815 = vmax.f32 %v5767, 0.0
      %v5816 = vmax.f32 %v5768, 0.0
      %v5817 = vmax.f32 %v5769, 0.0
      %v5818 = vmax.f32 %v5770, 0.0
      %v5819 = vmax.f32 %v5771, 0.0
      %v5820 = vmax.f32 %v5772, 0.0
      %v5821 = vmax.f32 %v5773, 0.0
      %v5822 = vmax.f32 %v5774, 0.0
      %v5823 = vmax.f32 %v5775, 0.0
      %v5824 = vmax.f32 %v5776, 0.0
      %v5825 = vmax.f32 %v5777, 0.0
      %v5826 = vmax.f32 %v5778, 0.0
      %v5827 = vmax.f32 %v5779, 0.0
      %v5828 = vmax.f32 %v5780, 0.0
      %v5829 = vmax.f32 %v5781, 0.0
      %v5830 = vmax.f32 %v5782, 0.0
      %v5831 = vmax.f32 %v5783, 0.0
      %v5832 = vmax.f32 %v5784, 0.0
      %v5833 = vmax.f32 %v5785, 0.0
      %v5834 = vmax.f32 %v5786, 0.0
      %v5835 = vmax.f32 %v5787, 0.0
      %v5836 = vmax.f32 %v5788, 0.0
      %v5837 = vmax.f32 %v5789, 0.0
      %v5838 = vmax.f32 %v5790, 0.0
      %v5839 = vmax.f32 %v5791, 0.0
      %v5840 = vmax.f32 %v5792, 0.0
      %v5841 = vmax.f32 %v5793, 0.0
      %v5842 = vmax.f32 %v5794, 0.0
      %v5843 = vmax.f32 %v5795, 0.0
      %v5844 = vmax.f32 %v5796, 0.0
      %v5845 = vmax.f32 %v5797, 0.0
      %v5846 = vmax.f32 %v5798, 0.0
      %v5847 = vmax.f32 %v5799, 0.0
      %v5848 = vmax.f32 %v5800, 0.0
      %v5849 = vmax.f32 %v5801, 0.0
      %v5850 = vmax.f32 %v5802, 0.0
      %v5851 = vmax.f32 %v5803, 0.0
      %v5852 = vmax.f32 %v5804, 0.0
      %v5853 = vmax.f32 %v5805, 0.0
      %v5854 = vmax.f32 %v5806, 0.0
      %v5855 = vmax.f32 %v5807, 0.0
      %v5856 = vmax.f32 %v5808, 0.0
      %v5857 = vmax.f32 %v5809, 0.0
      %v5858 = vmax.f32 %v5810, 0.0
      %v5859 = vmax.f32 %v5811, 0.0
      %v5860 = vmax.f32 %v5812, 0.0
      %v5861 = vmax.f32 %v5813, 0.0
      %v5862 = vld [vmem:[%s4] sm:$0xff]
      %v5863 = vld [vmem:[%s4 + $0x8] sm:$0xff]
      %v5864 = vld [vmem:[%s4 + $0x10] sm:$0xff]
      %v5865 = vld [vmem:[%s4 + $0x18] sm:$0xff]
      %v5866 = vld [vmem:[%s4 + $0x20] sm:$0xff]
      %v5867 = vld [vmem:[%s4 + $0x28] sm:$0xff]
      %v5868 = vld [vmem:[%s4 + $0x30] sm:$0xff]
      %v5869 = vld [vmem:[%s4 + $0x38] sm:$0xff]
      %v5870 = vld [vmem:[%s4 + $0x40] sm:$0xff]
      %v5871 = vld [vmem:[%s4 + $0x48] sm:$0xff]
      %v5872 = vld [vmem:[%s4 + $0x50] sm:$0xff]
      %v5873 = vld [vmem:[%s4 + $0x58] sm:$0xff]
      %v5874 = vld [vmem:[%s4 + $0x60] sm:$0xff]
      %v5875 = vld [vmem:[%s4 + $0x68] sm:$0xff]
      %v5876 = vld [vmem:[%s4 + $0x70] sm:$0xff]
      %v5877 = vld [vmem:[%s4 + $0x78] sm:$0xff]
      %v5878 = vld [vmem:[%s4 + $0x80] sm:$0xff]
      %v5879 = vld [vmem:[%s4 + $0x88] sm:$0xff]
      %v5880 = vld [vmem:[%s4 + $0x90] sm:$0xff]
      %v5881 = vld [vmem:[%s4 + $0x98] sm:$0xff]
      %v5882 = vld [vmem:[%s4 + $0xa0] sm:$0xff]
      %v5883 = vld [vmem:[%s4 + $0xa8] sm:$0xff]
      %v5884 = vld [vmem:[%s4 + $0xb0] sm:$0xff]
      %v5885 = vld [vmem:[%s4 + $0xb8] sm:$0xff]
      %v5886 = vld [vmem:[%s4 + $0xc0] sm:$0xff]
      %v5887 = vld [vmem:[%s4 + $0xc8] sm:$0xff]
      %v5888 = vld [vmem:[%s4 + $0xd0] sm:$0xff]
      %v5889 = vld [vmem:[%s4 + $0xd8] sm:$0xff]
      %v5890 = vld [vmem:[%s4 + $0xe0] sm:$0xff]
      %v5891 = vld [vmem:[%s4 + $0xe8] sm:$0xff]
      %v5892 = vld [vmem:[%s4 + $0xf0] sm:$0xff]
      %v5893 = vld [vmem:[%s4 + $0xf8] sm:$0xff]
      %v5894 = vld [vmem:[%s4 + $0x100] sm:$0xff]
      %v5895 = vld [vmem:[%s4 + $0x108] sm:$0xff]
      %v5896 = vld [vmem:[%s4 + $0x110] sm:$0xff]
      %v5897 = vld [vmem:[%s4 + $0x118] sm:$0xff]
      %v5898 = vld [vmem:[%s4 + $0x120] sm:$0xff]
      %v5899 = vld [vmem:[%s4 + $0x128] sm:$0xff]
      %v5900 = vld [vmem:[%s4 + $0x130] sm:$0xff]
      %v5901 = vld [vmem:[%s4 + $0x138] sm:$0xff]
      %v5902 = vld [vmem:[%s4 + $0x140] sm:$0xff]
      %v5903 = vld [vmem:[%s4 + $0x148] sm:$0xff]
      %v5904 = vld [vmem:[%s4 + $0x150] sm:$0xff]
      %v5905 = vld [vmem:[%s4 + $0x158] sm:$0xff]
      %v5906 = vld [vmem:[%s4 + $0x160] sm:$0xff]
      %v5907 = vld [vmem:[%s4 + $0x168] sm:$0xff]
      %v5908 = vld [vmem:[%s4 + $0x170] sm:$0xff]
      %v5909 = vld [vmem:[%s4 + $0x178] sm:$0xff]
      %5911 = vset.pattern.permute.xlu0 0
      %5912 = vperm.xlu0 %5911, %v5862
      %v5913 = vpop.permute.xlu0 %5912
      %5916 = vset.pattern.permute.xlu0 0
      %5917 = vperm.xlu0 %5916, %v5863
      %v5918 = vpop.permute.xlu0 %5917
      %5921 = vset.pattern.permute.xlu0 0
      %5922 = vperm.xlu0 %5921, %v5864
      %v5923 = vpop.permute.xlu0 %5922
      %5926 = vset.pattern.permute.xlu0 0
      %5927 = vperm.xlu0 %5926, %v5865
      %v5928 = vpop.permute.xlu0 %5927
      %5931 = vset.pattern.permute.xlu0 0
      %5932 = vperm.xlu0 %5931, %v5866
      %v5933 = vpop.permute.xlu0 %5932
      %5936 = vset.pattern.permute.xlu0 0
      %5937 = vperm.xlu0 %5936, %v5867
      %v5938 = vpop.permute.xlu0 %5937
      %5941 = vset.pattern.permute.xlu0 0
      %5942 = vperm.xlu0 %5941, %v5868
      %v5943 = vpop.permute.xlu0 %5942
      %5946 = vset.pattern.permute.xlu0 0
      %5947 = vperm.xlu0 %5946, %v5869
      %v5948 = vpop.permute.xlu0 %5947
      %5951 = vset.pattern.permute.xlu0 0
      %5952 = vperm.xlu0 %5951, %v5870
      %v5953 = vpop.permute.xlu0 %5952
      %5956 = vset.pattern.permute.xlu0 0
      %5957 = vperm.xlu0 %5956, %v5871
      %v5958 = vpop.permute.xlu0 %5957
      %5961 = vset.pattern.permute.xlu0 0
      %5962 = vperm.xlu0 %5961, %v5872
      %v5963 = vpop.permute.xlu0 %5962
      %5966 = vset.pattern.permute.xlu0 0
      %5967 = vperm.xlu0 %5966, %v5873
      %v5968 = vpop.permute.xlu0 %5967
      %5971 = vset.pattern.permute.xlu0 0
      %5972 = vperm.xlu0 %5971, %v5874
      %v5973 = vpop.permute.xlu0 %5972
      %5976 = vset.pattern.permute.xlu0 0
      %5977 = vperm.xlu0 %5976, %v5875
      %v5978 = vpop.permute.xlu0 %5977
      %5981 = vset.pattern.permute.xlu0 0
      %5982 = vperm.xlu0 %5981, %v5876
      %v5983 = vpop.permute.xlu0 %5982
      %5986 = vset.pattern.permute.xlu0 0
      %5987 = vperm.xlu0 %5986, %v5877
      %v5988 = vpop.permute.xlu0 %5987
      %5991 = vset.pattern.permute.xlu0 0
      %5992 = vperm.xlu0 %5991, %v5878
      %v5993 = vpop.permute.xlu0 %5992
      %5996 = vset.pattern.permute.xlu0 0
      %5997 = vperm.xlu0 %5996, %v5879
      %v5998 = vpop.permute.xlu0 %5997
      %6001 = vset.pattern.permute.xlu0 0
      %6002 = vperm.xlu0 %6001, %v5880
      %v6003 = vpop.permute.xlu0 %6002
      %6006 = vset.pattern.permute.xlu0 0
      %6007 = vperm.xlu0 %6006, %v5881
      %v6008 = vpop.permute.xlu0 %6007
      %6011 = vset.pattern.permute.xlu0 0
      %6012 = vperm.xlu0 %6011, %v5882
      %v6013 = vpop.permute.xlu0 %6012
      %6016 = vset.pattern.permute.xlu0 0
      %6017 = vperm.xlu0 %6016, %v5883
      %v6018 = vpop.permute.xlu0 %6017
      %6021 = vset.pattern.permute.xlu0 0
      %6022 = vperm.xlu0 %6021, %v5884
      %v6023 = vpop.permute.xlu0 %6022
      %6026 = vset.pattern.permute.xlu0 0
      %6027 = vperm.xlu0 %6026, %v5885
      %v6028 = vpop.permute.xlu0 %6027
      %6031 = vset.pattern.permute.xlu0 0
      %6032 = vperm.xlu0 %6031, %v5886
      %v6033 = vpop.permute.xlu0 %6032
      %6036 = vset.pattern.permute.xlu0 0
      %6037 = vperm.xlu0 %6036, %v5887
      %v6038 = vpop.permute.xlu0 %6037
      %6041 = vset.pattern.permute.xlu0 0
      %6042 = vperm.xlu0 %6041, %v5888
      %v6043 = vpop.permute.xlu0 %6042
      %6046 = vset.pattern.permute.xlu0 0
      %6047 = vperm.xlu0 %6046, %v5889
      %v6048 = vpop.permute.xlu0 %6047
      %6051 = vset.pattern.permute.xlu0 0
      %6052 = vperm.xlu0 %6051, %v5890
      %v6053 = vpop.permute.xlu0 %6052
      %6056 = vset.pattern.permute.xlu0 0
      %6057 = vperm.xlu0 %6056, %v5891
      %v6058 = vpop.permute.xlu0 %6057
      %6061 = vset.pattern.permute.xlu0 0
      %6062 = vperm.xlu0 %6061, %v5892
      %v6063 = vpop.permute.xlu0 %6062
      %6066 = vset.pattern.permute.xlu0 0
      %6067 = vperm.xlu0 %6066, %v5893
      %v6068 = vpop.permute.xlu0 %6067
      %6071 = vset.pattern.permute.xlu0 0
      %6072 = vperm.xlu0 %6071, %v5894
      %v6073 = vpop.permute.xlu0 %6072
      %6076 = vset.pattern.permute.xlu0 0
      %6077 = vperm.xlu0 %6076, %v5895
      %v6078 = vpop.permute.xlu0 %6077
      %6081 = vset.pattern.permute.xlu0 0
      %6082 = vperm.xlu0 %6081, %v5896
      %v6083 = vpop.permute.xlu0 %6082
      %6086 = vset.pattern.permute.xlu0 0
      %6087 = vperm.xlu0 %6086, %v5897
      %v6088 = vpop.permute.xlu0 %6087
      %6091 = vset.pattern.permute.xlu0 0
      %6092 = vperm.xlu0 %6091, %v5898
      %v6093 = vpop.permute.xlu0 %6092
      %6096 = vset.pattern.permute.xlu0 0
      %6097 = vperm.xlu0 %6096, %v5899
      %v6098 = vpop.permute.xlu0 %6097
      %6101 = vset.pattern.permute.xlu0 0
      %6102 = vperm.xlu0 %6101, %v5900
      %v6103 = vpop.permute.xlu0 %6102
      %6106 = vset.pattern.permute.xlu0 0
      %6107 = vperm.xlu0 %6106, %v5901
      %v6108 = vpop.permute.xlu0 %6107
      %6111 = vset.pattern.permute.xlu0 0
      %6112 = vperm.xlu0 %6111, %v5902
      %v6113 = vpop.permute.xlu0 %6112
      %6116 = vset.pattern.permute.xlu0 0
      %6117 = vperm.xlu0 %6116, %v5903
      %v6118 = vpop.permute.xlu0 %6117
      %6121 = vset.pattern.permute.xlu0 0
      %6122 = vperm.xlu0 %6121, %v5904
      %v6123 = vpop.permute.xlu0 %6122
      %6126 = vset.pattern.permute.xlu0 0
      %6127 = vperm.xlu0 %6126, %v5905
      %v6128 = vpop.permute.xlu0 %6127
      %6131 = vset.pattern.permute.xlu0 0
      %6132 = vperm.xlu0 %6131, %v5906
      %v6133 = vpop.permute.xlu0 %6132
      %6136 = vset.pattern.permute.xlu0 0
      %6137 = vperm.xlu0 %6136, %v5907
      %v6138 = vpop.permute.xlu0 %6137
      %6141 = vset.pattern.permute.xlu0 0
      %6142 = vperm.xlu0 %6141, %v5908
      %v6143 = vpop.permute.xlu0 %6142
      %6146 = vset.pattern.permute.xlu0 0
      %6147 = vperm.xlu0 %6146, %v5909
      %v6148 = vpop.permute.xlu0 %6147
      %v6150 = vmul.f32 %v5814, %v5913
      %v6151 = vmul.f32 %v5815, %v5918
      %v6152 = vmul.f32 %v5816, %v5923
      %v6153 = vmul.f32 %v5817, %v5928
      %v6154 = vmul.f32 %v5818, %v5933
      %v6155 = vmul.f32 %v5819, %v5938
      %v6156 = vmul.f32 %v5820, %v5943
      %v6157 = vmul.f32 %v5821, %v5948
      %v6158 = vmul.f32 %v5822, %v5953
      %v6159 = vmul.f32 %v5823, %v5958
      %v6160 = vmul.f32 %v5824, %v5963
      %v6161 = vmul.f32 %v5825, %v5968
      %v6162 = vmul.f32 %v5826, %v5973
      %v6163 = vmul.f32 %v5827, %v5978
      %v6164 = vmul.f32 %v5828, %v5983
      %v6165 = vmul.f32 %v5829, %v5988
      %v6166 = vmul.f32 %v5830, %v5993
      %v6167 = vmul.f32 %v5831, %v5998
      %v6168 = vmul.f32 %v5832, %v6003
      %v6169 = vmul.f32 %v5833, %v6008
      %v6170 = vmul.f32 %v5834, %v6013
      %v6171 = vmul.f32 %v5835, %v6018
      %v6172 = vmul.f32 %v5836, %v6023
      %v6173 = vmul.f32 %v5837, %v6028
      %v6174 = vmul.f32 %v5838, %v6033
      %v6175 = vmul.f32 %v5839, %v6038
      %v6176 = vmul.f32 %v5840, %v6043
      %v6177 = vmul.f32 %v5841, %v6048
      %v6178 = vmul.f32 %v5842, %v6053
      %v6179 = vmul.f32 %v5843, %v6058
      %v6180 = vmul.f32 %v5844, %v6063
      %v6181 = vmul.f32 %v5845, %v6068
      %v6182 = vmul.f32 %v5846, %v6073
      %v6183 = vmul.f32 %v5847, %v6078
      %v6184 = vmul.f32 %v5848, %v6083
      %v6185 = vmul.f32 %v5849, %v6088
      %v6186 = vmul.f32 %v5850, %v6093
      %v6187 = vmul.f32 %v5851, %v6098
      %v6188 = vmul.f32 %v5852, %v6103
      %v6189 = vmul.f32 %v5853, %v6108
      %v6190 = vmul.f32 %v5854, %v6113
      %v6191 = vmul.f32 %v5855, %v6118
      %v6192 = vmul.f32 %v5856, %v6123
      %v6193 = vmul.f32 %v5857, %v6128
      %v6194 = vmul.f32 %v5858, %v6133
      %v6195 = vmul.f32 %v5859, %v6138
      %v6196 = vmul.f32 %v5860, %v6143
      %v6197 = vmul.f32 %v5861, %v6148
      %vm6198 = vcmask 519168
      %6199 = vst.msk [vmem:[%s289] sm:$0xf] %vm6198, 0
      %6200 = vst.msk [vmem:[%s289 + $0x4] sm:$0xf] %vm6198, 0
      %6201 = vst.msk [vmem:[%s289 + $0x8] sm:$0xf] %vm6198, 0
      %6202 = vst.msk [vmem:[%s289 + $0xc] sm:$0xf] %vm6198, 0
      %v6203 = vpack.c.bf16 %v6151, %v6150
      %v6204 = vpack.c.bf16 %v6153, %v6152
      %v6205 = vpack.c.bf16 %v6155, %v6154
      %v6206 = vpack.c.bf16 %v6157, %v6156
      %v6207 = vpack.c.bf16 %v6159, %v6158
      %v6208 = vpack.c.bf16 %v6161, %v6160
      %v6209 = vpack.c.bf16 %v6163, %v6162
      %v6210 = vpack.c.bf16 %v6165, %v6164
      %v6211 = vpack.c.bf16 %v6167, %v6166
      %v6212 = vpack.c.bf16 %v6169, %v6168
      %v6213 = vpack.c.bf16 %v6171, %v6170
      %v6214 = vpack.c.bf16 %v6173, %v6172
      %v6215 = vpack.c.bf16 %v6175, %v6174
      %v6216 = vpack.c.bf16 %v6177, %v6176
      %v6217 = vpack.c.bf16 %v6179, %v6178
      %v6218 = vpack.c.bf16 %v6181, %v6180
      %v6219 = vpack.c.bf16 %v6183, %v6182
      %v6220 = vpack.c.bf16 %v6185, %v6184
      %v6221 = vpack.c.bf16 %v6187, %v6186
      %v6222 = vpack.c.bf16 %v6189, %v6188
      %v6223 = vpack.c.bf16 %v6191, %v6190
      %v6224 = vpack.c.bf16 %v6193, %v6192
      %v6225 = vpack.c.bf16 %v6195, %v6194
      %v6226 = vpack.c.bf16 %v6197, %v6196
      %v6251 = vunpack.c.l.b16 %v6203
      %v6252 = vunpack.c.h.b16 %v6203
      %v6253 = vunpack.c.l.b16 %v6204
      %v6254 = vunpack.c.h.b16 %v6204
      %v6255 = vunpack.c.l.b16 %v6205
      %v6256 = vunpack.c.h.b16 %v6205
      %v6257 = vunpack.c.l.b16 %v6206
      %v6258 = vunpack.c.h.b16 %v6206
      %v6259 = vunpack.c.l.b16 %v6207
      %v6260 = vunpack.c.h.b16 %v6207
      %v6261 = vunpack.c.l.b16 %v6208
      %v6262 = vunpack.c.h.b16 %v6208
      %v6263 = vunpack.c.l.b16 %v6209
      %v6264 = vunpack.c.h.b16 %v6209
      %v6265 = vunpack.c.l.b16 %v6210
      %v6266 = vunpack.c.h.b16 %v6210
      %v6267 = vunpack.c.l.b16 %v6211
      %v6268 = vunpack.c.h.b16 %v6211
      %v6269 = vunpack.c.l.b16 %v6212
      %v6270 = vunpack.c.h.b16 %v6212
      %v6271 = vunpack.c.l.b16 %v6213
      %v6272 = vunpack.c.h.b16 %v6213
      %v6273 = vunpack.c.l.b16 %v6214
      %v6274 = vunpack.c.h.b16 %v6214
      %v6275 = vunpack.c.l.b16 %v6215
      %v6276 = vunpack.c.h.b16 %v6215
      %v6277 = vunpack.c.l.b16 %v6216
      %v6278 = vunpack.c.h.b16 %v6216
      %v6279 = vunpack.c.l.b16 %v6217
      %v6280 = vunpack.c.h.b16 %v6217
      %v6281 = vunpack.c.l.b16 %v6218
      %v6282 = vunpack.c.h.b16 %v6218
      %v6283 = vunpack.c.l.b16 %v6219
      %v6284 = vunpack.c.h.b16 %v6219
      %v6285 = vunpack.c.l.b16 %v6220
      %v6286 = vunpack.c.h.b16 %v6220
      %v6287 = vunpack.c.l.b16 %v6221
      %v6288 = vunpack.c.h.b16 %v6221
      %v6289 = vunpack.c.l.b16 %v6222
      %v6290 = vunpack.c.h.b16 %v6222
      %v6291 = vunpack.c.l.b16 %v6223
      %v6292 = vunpack.c.h.b16 %v6223
      %v6293 = vunpack.c.l.b16 %v6224
      %v6294 = vunpack.c.h.b16 %v6224
      %v6295 = vunpack.c.l.b16 %v6225
      %v6296 = vunpack.c.h.b16 %v6225
      %v6297 = vunpack.c.l.b16 %v6226
      %v6298 = vunpack.c.h.b16 %v6226
      %v6299 = vpack.c.b16 %v6251, %v6251
      %v6300 = vpack.c.b16 %v6252, %v6252
      %v6301 = vpack.c.b16 %v6253, %v6253
      %v6302 = vpack.c.b16 %v6254, %v6254
      %v6303 = vpack.c.b16 %v6255, %v6255
      %v6304 = vpack.c.b16 %v6256, %v6256
      %v6305 = vpack.c.b16 %v6257, %v6257
      %v6306 = vpack.c.b16 %v6258, %v6258
      %v6307 = vpack.c.b16 %v6259, %v6259
      %v6308 = vpack.c.b16 %v6260, %v6260
      %v6309 = vpack.c.b16 %v6261, %v6261
      %v6310 = vpack.c.b16 %v6262, %v6262
      %v6311 = vpack.c.b16 %v6263, %v6263
      %v6312 = vpack.c.b16 %v6264, %v6264
      %v6313 = vpack.c.b16 %v6265, %v6265
      %v6314 = vpack.c.b16 %v6266, %v6266
      %v6315 = vpack.c.b16 %v6267, %v6267
      %v6316 = vpack.c.b16 %v6268, %v6268
      %v6317 = vpack.c.b16 %v6269, %v6269
      %v6318 = vpack.c.b16 %v6270, %v6270
      %v6319 = vpack.c.b16 %v6271, %v6271
      %v6320 = vpack.c.b16 %v6272, %v6272
      %v6321 = vpack.c.b16 %v6273, %v6273
      %v6322 = vpack.c.b16 %v6274, %v6274
      %v6323 = vpack.c.b16 %v6275, %v6275
      %v6324 = vpack.c.b16 %v6276, %v6276
      %v6325 = vpack.c.b16 %v6277, %v6277
      %v6326 = vpack.c.b16 %v6278, %v6278
      %v6327 = vpack.c.b16 %v6279, %v6279
      %v6328 = vpack.c.b16 %v6280, %v6280
      %v6329 = vpack.c.b16 %v6281, %v6281
      %v6330 = vpack.c.b16 %v6282, %v6282
      %v6331 = vpack.c.b16 %v6283, %v6283
      %v6332 = vpack.c.b16 %v6284, %v6284
      %v6333 = vpack.c.b16 %v6285, %v6285
      %v6334 = vpack.c.b16 %v6286, %v6286
      %v6335 = vpack.c.b16 %v6287, %v6287
      %v6336 = vpack.c.b16 %v6288, %v6288
      %v6337 = vpack.c.b16 %v6289, %v6289
      %v6338 = vpack.c.b16 %v6290, %v6290
      %v6339 = vpack.c.b16 %v6291, %v6291
      %v6340 = vpack.c.b16 %v6292, %v6292
      %v6341 = vpack.c.b16 %v6293, %v6293
      %v6342 = vpack.c.b16 %v6294, %v6294
      %v6343 = vpack.c.b16 %v6295, %v6295
      %v6344 = vpack.c.b16 %v6296, %v6296
      %v6345 = vpack.c.b16 %v6297, %v6297
      %v6346 = vpack.c.b16 %v6298, %v6298
      %6395 = vst.msk [vmem:[%s289 + $0x10] sm:$0xf] %vm6198, %v6299
      %6396 = vst.msk [vmem:[%s289 + $0x14] sm:$0xf] %vm6198, %v6300
      %6397 = vst.msk [vmem:[%s289 + $0x18] sm:$0xf] %vm6198, %v6301
      %6398 = vst.msk [vmem:[%s289 + $0x1c] sm:$0xf] %vm6198, %v6302
      %6399 = vst.msk [vmem:[%s289 + $0x20] sm:$0xf] %vm6198, %v6303
      %6400 = vst.msk [vmem:[%s289 + $0x24] sm:$0xf] %vm6198, %v6304
      %6401 = vst.msk [vmem:[%s289 + $0x28] sm:$0xf] %vm6198, %v6305
      %6402 = vst.msk [vmem:[%s289 + $0x2c] sm:$0xf] %vm6198, %v6306
      %6403 = vst.msk [vmem:[%s289 + $0x30] sm:$0xf] %vm6198, %v6307
      %6404 = vst.msk [vmem:[%s289 + $0x34] sm:$0xf] %vm6198, %v6308
      %6405 = vst.msk [vmem:[%s289 + $0x38] sm:$0xf] %vm6198, %v6309
      %6406 = vst.msk [vmem:[%s289 + $0x3c] sm:$0xf] %vm6198, %v6310
      %6407 = vst.msk [vmem:[%s289 + $0x40] sm:$0xf] %vm6198, %v6311
      %6408 = vst.msk [vmem:[%s289 + $0x44] sm:$0xf] %vm6198, %v6312
      %6409 = vst.msk [vmem:[%s289 + $0x48] sm:$0xf] %vm6198, %v6313
      %6410 = vst.msk [vmem:[%s289 + $0x4c] sm:$0xf] %vm6198, %v6314
      %6411 = vst.msk [vmem:[%s289 + $0x50] sm:$0xf] %vm6198, %v6315
      %6412 = vst.msk [vmem:[%s289 + $0x54] sm:$0xf] %vm6198, %v6316
      %6413 = vst.msk [vmem:[%s289 + $0x58] sm:$0xf] %vm6198, %v6317
      %6414 = vst.msk [vmem:[%s289 + $0x5c] sm:$0xf] %vm6198, %v6318
      %6415 = vst.msk [vmem:[%s289 + $0x60] sm:$0xf] %vm6198, %v6319
      %6416 = vst.msk [vmem:[%s289 + $0x64] sm:$0xf] %vm6198, %v6320
      %6417 = vst.msk [vmem:[%s289 + $0x68] sm:$0xf] %vm6198, %v6321
      %6418 = vst.msk [vmem:[%s289 + $0x6c] sm:$0xf] %vm6198, %v6322
      %6419 = vst.msk [vmem:[%s289 + $0x70] sm:$0xf] %vm6198, %v6323
      %6420 = vst.msk [vmem:[%s289 + $0x74] sm:$0xf] %vm6198, %v6324
      %6421 = vst.msk [vmem:[%s289 + $0x78] sm:$0xf] %vm6198, %v6325
      %6422 = vst.msk [vmem:[%s289 + $0x7c] sm:$0xf] %vm6198, %v6326
      %6423 = vst.msk [vmem:[%s289 + $0x80] sm:$0xf] %vm6198, %v6327
      %6424 = vst.msk [vmem:[%s289 + $0x84] sm:$0xf] %vm6198, %v6328
      %6425 = vst.msk [vmem:[%s289 + $0x88] sm:$0xf] %vm6198, %v6329
      %6426 = vst.msk [vmem:[%s289 + $0x8c] sm:$0xf] %vm6198, %v6330
      %6427 = vst.msk [vmem:[%s289 + $0x90] sm:$0xf] %vm6198, %v6331
      %6428 = vst.msk [vmem:[%s289 + $0x94] sm:$0xf] %vm6198, %v6332
      %6429 = vst.msk [vmem:[%s289 + $0x98] sm:$0xf] %vm6198, %v6333
      %6430 = vst.msk [vmem:[%s289 + $0x9c] sm:$0xf] %vm6198, %v6334
      %6431 = vst.msk [vmem:[%s289 + $0xa0] sm:$0xf] %vm6198, %v6335
      %6432 = vst.msk [vmem:[%s289 + $0xa4] sm:$0xf] %vm6198, %v6336
      %6433 = vst.msk [vmem:[%s289 + $0xa8] sm:$0xf] %vm6198, %v6337
      %6434 = vst.msk [vmem:[%s289 + $0xac] sm:$0xf] %vm6198, %v6338
      %6435 = vst.msk [vmem:[%s289 + $0xb0] sm:$0xf] %vm6198, %v6339
      %6436 = vst.msk [vmem:[%s289 + $0xb4] sm:$0xf] %vm6198, %v6340
      %6437 = vst.msk [vmem:[%s289 + $0xb8] sm:$0xf] %vm6198, %v6341
      %6438 = vst.msk [vmem:[%s289 + $0xbc] sm:$0xf] %vm6198, %v6342
      %6439 = vst.msk [vmem:[%s289 + $0xc0] sm:$0xf] %vm6198, %v6343
      %6440 = vst.msk [vmem:[%s289 + $0xc4] sm:$0xf] %vm6198, %v6344
      %6441 = vst.msk [vmem:[%s289 + $0xc8] sm:$0xf] %vm6198, %v6345
      %6442 = vst.msk [vmem:[%s289 + $0xcc] sm:$0xf] %vm6198, %v6346
      %6443 = vst.msk [vmem:[%s289 + $0xd0] sm:$0xf] %vm6198, 0
      %6444 = vst.msk [vmem:[%s289 + $0xd4] sm:$0xf] %vm6198, 0
      %6445 = vst.msk [vmem:[%s289 + $0xd8] sm:$0xf] %vm6198, 0
      %6446 = vst.msk [vmem:[%s289 + $0xdc] sm:$0xf] %vm6198, 0
      %p6447 = scmp.lt.s32.totalorder %s20, 1
      %s6448 = scalar_select %p6447, %s20, 1
      %p6449 = scmp.lt.s32.totalorder %s21, 0
      %s6450 = scalar_select %p6449, %s21, 0
      %s6451 = smul.addr %s6448, 56
      %s6452 = sadd.s32 %s6450, %s6451
      %s6453 = smul.addr %s6452, 4
      %s6454 = scalar_lea.vmem %s5, %s6453
      // Predicated region
      $region41: #{tpu_custom_call.1} parent=39 // pred_check
        %p6455 = pneg %p173
      $region42: #{tpu_custom_call.1} parent=39 // pred_check_branch
        %6457 = sbr.rel (%p6455) target = $region44
      $region43: #{tpu_custom_call.1} parent=39 // pred_region
        _
      $region44: #{tpu_custom_call.1} parent=39 // pred_fallthru
        _
    $region40: #{tpu_custom_call.1} parent=5 // pred_fallthru
      _
    %p6458 = scmp.le.s32.totalorder 2, %s11
    // Predicated region
    $region45: #{tpu_custom_call.1} parent=5 // pred_check
      %p6459 = pneg %p6458
    $region46: #{tpu_custom_call.1} parent=5 // pred_check_branch
      %6461 = sbr.rel (%p6459) target = $region48
    $region47: #{tpu_custom_call.1} parent=5 // pred_region
      %s6462 = ssub.s32 %s11, 2
      // Predicated region
      $region49: #{tpu_custom_call.1} parent=47 // pred_check
        %p6463 = pneg %p179
      $region50: #{tpu_custom_call.1} parent=47 // pred_check_branch
        %6465 = sbr.rel (%p6463) target = $region52
      $region51: #{tpu_custom_call.1} parent=47 // pred_region
        %p6466 = scmp.lt.s32.totalorder %s22, 1
        %s6467 = scalar_select %p6466, %s22, 1
        %p6468 = scmp.lt.s32.totalorder %s23, 0
        %s6469 = scalar_select %p6468, %s23, 0
        %s6470 = smul.addr %s6467, 56
        %s6471 = sadd.s32 %s6469, %s6470
        %s6472 = smul.addr %s6471, 4
        %s6473 = scalar_lea.vmem %s5, %s6472
      $region52: #{tpu_custom_call.1} parent=47 // pred_fallthru
        _
    $region48: #{tpu_custom_call.1} parent=5 // pred_fallthru
      _
  $region6: #{tpu_custom_call.1} parent=0 // loop_footer
    %s15 = sadd.s32 1, %s11
  $region7: #{tpu_custom_call.1} parent=0 // loop_footer_branch
    %10 = sbr.rel target = $region3
  $region8: #{tpu_custom_call.1} parent=0 // loop_exit
    _

</llo_original>
